<compile_context>
chip_gen: v7x
topology: tpu7x:2x2x1
jax: 0.10.0
libtpu: 0.0.40
codegen_flags: <defaults>
</compile_context>

<pallas_src>
import math
from functools import partial

import jax
import jax.numpy as jnp
from jax.experimental import pallas as pl
from jax.experimental.pallas import tpu as pltpu

MATMUL_DTYPE = jnp.bfloat16      # MXU operand dtype; accumulation stays f32


def _dot(a, b):
    return jnp.dot(a.astype(MATMUL_DTYPE), b.astype(MATMUL_DTYPE),
                   preferred_element_type=jnp.float32)


_VMEM_BUDGET = None


def _vmem_budget():
    """~75% of physical VMEM: ~96 MiB on v5e/v6e (128 MiB), ~48 MiB on v7x (64 MiB)."""
    global _VMEM_BUDGET
    if _VMEM_BUDGET is None:
        cap = 64 * 1024 * 1024
        try:
            cap = int(pltpu.get_tpu_info().vmem_capacity_bytes)
        except Exception:
            pass
        _VMEM_BUDGET = int(min(cap * 3 // 4, 112 * 1024 * 1024))
    return _VMEM_BUDGET


def _pick_tq(n, dx, de, dim_ffe, budget):
    """Largest query-row tile (a divisor of n, multiple of 8 when possible) whose f32
    per-step temporaries fit the VMEM budget (E tile, e12, ybig, FFN temps, resident K/V)."""
    per_q = 4 * n * (3 * de + 6 * dx + dim_ffe)
    fixed = 4 * (2 * n * 3 * dx + dx * (3 * dx + de) + de * (2 * dx + 2 * dim_ffe))
    cap = max(1, (budget // 2 - fixed) // max(per_q, 1))
    if cap >= n:
        return n
    best = 0
    for t in range(8, min(cap, n) + 1, 8):
        if n % t == 0:
            best = t
    return best if best else n   # TODO(synk): ragged query tiles for n not a multiple of 8


def _pick_rows(m, d, h, budget):
    """Row tile for the flattened token axis of the X-stream FFN kernel."""
    per_row = 4 * (4 * d + 2 * h)
    cap = max(8, budget // (2 * max(per_row, 1)))
    if cap >= m:
        return m
    return max(8, (cap // 8) * 8)


def _ln(v, g, b, eps):
    mu = jnp.mean(v, axis=-1, keepdims=True)
    d = v - mu
    var = jnp.mean(d * d, axis=-1, keepdims=True)      # biased variance (torch LayerNorm)
    return d * jax.lax.rsqrt(var + eps) * g + b


# -------------------- 1. fused masked Q|K|V projection + Xtoy pooling --------------------

def _qkv_pool_kernel(x_ref, m_ref, w_ref, b_ref, qkv_ref, px_ref, *, n, dx):
    x = x_ref[0]                                            # (n, dx) raw X for this graph
    qkv_ref[0] = (_dot(x, w_ref[...]) + b_ref[...]) * m_ref[0]

    # Xtoy pooling on the raw X (whole graph resident -> two-pass variance, torch ddof=1).
    mean = jnp.mean(x, axis=0, keepdims=True)
    mn = jnp.min(x, axis=0, keepdims=True)
    mx = jnp.max(x, axis=0, keepdims=True)
    d = x - mean
    var = jnp.sum(d * d, axis=0, keepdims=True) * (1.0 / max(n - 1, 1))
    std = jnp.sqrt(var)                                     # guarded (torch gives NaN for n==1)
    px_ref[0, :, 0 * dx:1 * dx] = mean
    px_ref[0, :, 1 * dx:2 * dx] = mn
    px_ref[0, :, 2 * dx:3 * dx] = mx
    px_ref[0, :, 3 * dx:4 * dx] = std


def qkv_pool(X, x_mask3, w, b):
    bs, n, dx = X.shape
    return pl.pallas_call(
        partial(_qkv_pool_kernel, n=n, dx=dx),
        grid=(bs,),
        in_specs=[pl.BlockSpec((1, n, dx), lambda b_: (b_, 0, 0)),
                  pl.BlockSpec((1, n, 1), lambda b_: (b_, 0, 0)),
                  pl.BlockSpec((dx, 3 * dx), lambda b_: (0, 0)),
                  pl.BlockSpec((1, 3 * dx), lambda b_: (0, 0))],
        out_specs=[pl.BlockSpec((1, n, 3 * dx), lambda b_: (b_, 0, 0)),
                   pl.BlockSpec((1, 1, 4 * dx), lambda b_: (b_, 0, 0))],
        out_shape=(jax.ShapeDtypeStruct((bs, n, 3 * dx), jnp.float32),
                   jax.ShapeDtypeStruct((bs, 1, 4 * dx), jnp.float32)),
        compiler_params=pltpu.CompilerParams(dimension_semantics=("parallel",)),
    )(X, x_mask3, w, b)


# ---------- 2. attention core + E-stream residual/LN/FFN/LN + streaming Etoy pool ----------

def _attn_e_kernel(qkv_ref, e_ref, m_ref, y_ref,
                   wyc_ref, byc_ref, w_ep_ref, b_ep_ref, w_eo_ref, b_eo_ref,
                   w_xo_ref, b_xo_ref,
                   ge1_ref, be1_ref, wf1_ref, bf1_ref, wf2_ref, bf2_ref,
                   ge2_ref, be2_ref,
                   eo_ref, newx_ref, pe_ref,
                   psum, pssq, pmin, pmax,
                   *, df, dx, de, n, tq, eps):
    qi = pl.program_id(1)
    last_qi = pl.num_programs(1) - 1

    @pl.when(qi == 0)
    def _():
        psum[...] = jnp.zeros_like(psum)
        pssq[...] = jnp.zeros_like(pssq)
        pmin[...] = jnp.full(pmin.shape, jnp.inf, jnp.float32)
        pmax[...] = jnp.full(pmax.shape, -jnp.inf, jnp.float32)

    kv = qkv_ref[0]                                    # (n, 3dx) resident masked Q|K|V
    k = kv[:, dx:2 * dx]
    v = kv[:, 2 * dx:]
    row_start = qi * tq
    q = qkv_ref[0, pl.ds(row_start, tq), :][:, :dx]    # Q rows sliced from the resident block
    mask_all = m_ref[0]                                # (n, 1) key-axis node mask
    rowm = m_ref[0, pl.ds(row_start, tq), :]           # (tq, 1) query-row node mask

    # y FiLM coefficients computed in-kernel (one tiny matmul per step).
    yc = _dot(y_ref[0], wyc_ref[...]) + byc_ref[...]   # (1, 4dx)
    ye_add, ye_mul = yc[:, :dx], yc[:, dx:2 * dx]
    yx_add, yx_mul = yc[:, 2 * dx:3 * dx], yc[:, 3 * dx:]

    # 2-D edge mask rebuilt on-chip from the 1-D node mask (never materialized in HBM).
    em = rowm[:, None, :] * mask_all[None, :, :]       # (tq, n, 1)

    e_raw = e_ref[0]                                   # (tq, n, de) raw E tile
    ef = e_raw.reshape(tq * n, de)

    # e_mul | e_add projections fused into one on-chip matmul over the raw E tile.
    e12 = (_dot(ef, w_ep_ref[...]) + b_ep_ref[...]).reshape(tq, n, 2 * dx)
    e1m = e12[:, :, :dx] * em
    e2m = e12[:, :, dx:] * em

    yh = (q[:, None, :] * k[None, :, :]) * (1.0 / math.sqrt(df))   # (tq, n, dx)
    ybig = yh * (e1m + 1.0) + e2m                                  # (tq, n, dx)

    # ---- edge stream: y-FiLM, e_out, mask, residual + LN + FFN + LN, all on-chip ----
    newe_pre = ye_add[None, :, :] + (ye_mul[None, :, :] + 1.0) * ybig
    newe = _dot(newe_pre.reshape(tq * n, dx), w_eo_ref[...]) + b_eo_ref[...]
    newe3 = newe.reshape(tq, n, de) * em               # masked newE (never hits HBM)
    e1 = _ln((e_raw + newe3).reshape(tq * n, de), ge1_ref[...], be1_ref[...], eps)
    h = jnp.maximum(_dot(e1, wf1_ref[...]) + bf1_ref[...], 0.0)
    ff = _dot(h, wf2_ref[...]) + bf2_ref[...]
    eo = _ln(e1 + ff, ge2_ref[...], be2_ref[...], eps)
    eo_ref[0] = eo.reshape(tq, n, de)
    # TODO(synk): lane-dense (tq, n*de) repack of this store pending Mosaic relayout support.

    # ---- streaming Etoy pooling over the raw E tile (accumulated across qi) ----
    psum[...] += jnp.sum(ef, axis=0, keepdims=True)
    pssq[...] += jnp.sum(ef * ef, axis=0, keepdims=True)
    pmin[...] = jnp.minimum(pmin[...], jnp.min(ef, axis=0, keepdims=True))
    pmax[...] = jnp.maximum(pmax[...], jnp.max(ef, axis=0, keepdims=True))

    @pl.when(qi == last_qi)
    def _():
        cnt = float(n * n)
        mean = psum[...] * (1.0 / cnt)
        var = (pssq[...] - cnt * mean * mean) * (1.0 / max(n * n - 1, 1))
        std = jnp.sqrt(jnp.maximum(var, 0.0))          # guarded (torch gives NaN for count==1)
        pe_ref[0, :, 0 * de:1 * de] = mean
        pe_ref[0, :, 1 * de:2 * de] = pmin[...]
        pe_ref[0, :, 2 * de:3 * de] = pmax[...]
        pe_ref[0, :, 3 * de:4 * de] = std

    # ---- node stream: masked softmax over keys, weighted V, y-FiLM, x_out ----
    # TODO(synk): torch masked_softmax's early-return when ALL nodes of ALL graphs are
    # masked is not reproduced; the denominator guard keeps fully padded graphs finite.
    colm3 = mask_all[None, :, :]
    neg = jnp.where(colm3 > 0.0, ybig, jnp.float32(-1e30))
    mx = jnp.max(neg, axis=1, keepdims=True)
    ex = jnp.exp(neg - mx)
    ex = jnp.where(colm3 > 0.0, ex, 0.0)
    denom = jnp.maximum(jnp.sum(ex, axis=1, keepdims=True), jnp.float32(1e-30))
    attn = ex / denom
    wv = jnp.sum(attn * v[None, :, :], axis=1)         # (tq, dx)
    newx_pre = yx_add + (yx_mul + 1.0) * wv
    newx_ref[0] = (_dot(newx_pre, w_xo_ref[...]) + b_xo_ref[...]) * rowm


def attn_core(qkv, E, x_mask3, y3, p, *, df, eps):
    bs, n, dx3 = qkv.shape
    dx = dx3 // 3
    de = E.shape[-1]
    dy = y3.shape[-1]
    dim_ffe = p["linE1"][0].shape[1]
    budget = _vmem_budget()
    tq = _pick_tq(n, dx, de, dim_ffe, budget)
    nq = pl.cdiv(n, tq)

    def const(shape):
        return pl.BlockSpec(shape, lambda b, qi: (0,) * len(shape))

    weights = [*p["ycoef"], *p["e_proj"], *p["e_out"], *p["x_out"],
               *p["normE1"], *p["linE1"], *p["linE2"], *p["normE2"]]

    return pl.pallas_call(
        partial(_attn_e_kernel, df=df, dx=dx, de=de, n=n, tq=tq, eps=eps),
        grid=(bs, nq),
        in_specs=[
            pl.BlockSpec((1, n, 3 * dx), lambda b, qi: (b, 0, 0)),       # resident K/V (+Q rows)
            pl.BlockSpec((1, tq, n, de), lambda b, qi: (b, qi, 0, 0)),   # raw E row tile
            pl.BlockSpec((1, n, 1), lambda b, qi: (b, 0, 0)),            # node mask
            pl.BlockSpec((1, 1, dy), lambda b, qi: (b, 0, 0)),           # y row (for FiLM)
        ] + [const(w.shape) for w in weights],
        out_specs=[
            pl.BlockSpec((1, tq, n, de), lambda b, qi: (b, qi, 0, 0)),   # Eo (fused E stream)
            pl.BlockSpec((1, tq, dx), lambda b, qi: (b, qi, 0)),         # newX
            pl.BlockSpec((1, 1, 4 * de), lambda b, qi: (b, 0, 0)),       # Etoy pool stats
        ],
        out_shape=(jax.ShapeDtypeStruct((bs, n, n, de), jnp.float32),
                   jax.ShapeDtypeStruct((bs, n, dx), jnp.float32),
                   jax.ShapeDtypeStruct((bs, 1, 4 * de), jnp.float32)),
        scratch_shapes=[pltpu.VMEM((1, de), jnp.float32) for _ in range(4)],
        compiler_params=pltpu.CompilerParams(
            dimension_semantics=("parallel", "arbitrary"),
            vmem_limit_bytes=budget),
    )(qkv, E, x_mask3, y3, *weights)


# -------------------- 3. fused y head + y-stream residual/LN/FFN/LN --------------------

def _y_block_kernel(y_ref, px_ref, pe_ref,
                    wyy, byy, wxy, bxy, wey, bey, wo1, bo1, wo2, bo2,
                    g1, bn1, wf1, bf1, wf2, bf2, g2, bn2, o_ref, *, eps):
    y = y_ref[...]
    t = _dot(y, wyy[...]) + byy[...]
    t = t + _dot(px_ref[...], wxy[...]) + bxy[...]
    t = t + _dot(pe_ref[...], wey[...]) + bey[...]
    h = jnp.maximum(_dot(t, wo1[...]) + bo1[...], 0.0)
    new_y = _dot(h, wo2[...]) + bo2[...]
    y1 = _ln(y + new_y, g1[...], bn1[...], eps)
    hf = jnp.maximum(_dot(y1, wf1[...]) + bf1[...], 0.0)
    ff = _dot(hf, wf2[...]) + bf2[...]
    o_ref[...] = _ln(y1 + ff, g2[...], bn2[...], eps)


def y_block(y, pool_x, pool_e, p, *, eps):
    bs, dy = y.shape
    weights = [*p["y_y"], *p["x_y"], *p["e_y"], *p["y_out1"], *p["y_out2"],
               *p["norm_y1"], *p["lin_y1"], *p["lin_y2"], *p["norm_y2"]]

    def full(arr):
        return pl.BlockSpec(arr.shape, lambda i: (0,) * arr.ndim)

    return pl.pallas_call(
        partial(_y_block_kernel, eps=eps),
        grid=(1,),
        in_specs=[full(y), full(pool_x), full(pool_e)] + [full(w) for w in weights],
        out_specs=pl.BlockSpec((bs, dy), lambda i: (0, 0)),
        out_shape=jax.ShapeDtypeStruct((bs, dy), jnp.float32),
        compiler_params=pltpu.CompilerParams(dimension_semantics=("arbitrary",)),
    )(y, pool_x, pool_e, *weights)


# -------------------- 4. X-stream residual + LN + FFN + LN (row-tiled) --------------------

def _ffn_block_kernel(x_ref, a_ref, g1_ref, be1_ref, w1_ref, b1_ref,
                      w2_ref, b2_ref, g2_ref, be2_ref, o_ref, *, eps):
    xr = _ln(x_ref[...] + a_ref[...], g1_ref[...], be1_ref[...], eps)
    h = jnp.maximum(_dot(xr, w1_ref[...]) + b1_ref[...], 0.0)
    ff = _dot(h, w2_ref[...]) + b2_ref[...]
    o_ref[...] = _ln(xr + ff, g2_ref[...], be2_ref[...], eps)


def ffn_block(x, attn_out, ln1, lin1, lin2, ln2, eps):
    m, d = x.shape
    h = lin1[0].shape[1]
    budget = _vmem_budget()
    tm = _pick_rows(m, d, h, budget)
    row = pl.BlockSpec((tm, d), lambda i: (i, 0))

    def const(shape):
        return pl.BlockSpec(shape, lambda i: (0, 0))

    return pl.pallas_call(
        partial(_ffn_block_kernel, eps=eps),
        grid=(pl.cdiv(m, tm),),
        in_specs=[row, row,
                  const((1, d)), const((1, d)),
                  const((d, h)), const((1, h)),
                  const((h, d)), const((1, d)),
                  const((1, d)), const((1, d))],
        out_specs=pl.BlockSpec((tm, d), lambda i: (i, 0)),
        out_shape=jax.ShapeDtypeStruct((m, d), jnp.float32),
        compiler_params=pltpu.CompilerParams(dimension_semantics=("parallel",),
                                             vmem_limit_bytes=budget),
    )(x, attn_out, ln1[0], ln1[1], lin1[0], lin1[1], lin2[0], lin2[1], ln2[0], ln2[1])


# -------------------- parameters --------------------

def init_params(key, dx, de, dy, dim_ffX, dim_ffE, dim_ffy):
    params = {}

    def lin(name, din, dout):
        nonlocal key
        key, k1, k2 = jax.random.split(key, 3)
        bound = 1.0 / math.sqrt(din)
        params[name] = (jax.random.uniform(k1, (din, dout), jnp.float32, -bound, bound),
                        jax.random.uniform(k2, (1, dout), jnp.float32, -bound, bound))

    # fused projections (column-wise concatenation of the corresponding torch Linears)
    lin("qkv", dx, 3 * dx)                 # q | k | v
    lin("e_proj", de, 2 * dx)              # e_mul | e_add
    lin("ycoef", dy, 4 * dx)               # y_e_add | y_e_mul | y_x_add | y_x_mul
    lin("x_out", dx, dx)
    lin("e_out", dx, de)
    lin("y_y", dy, dy)
    lin("x_y", 4 * dx, dy)
    lin("e_y", 4 * de, dy)
    lin("y_out1", dy, dy)
    lin("y_out2", dy, dy)
    lin("linX1", dx, dim_ffX)
    lin("linX2", dim_ffX, dx)
    lin("linE1", de, dim_ffE)
    lin("linE2", dim_ffE, de)
    lin("lin_y1", dy, dim_ffy)
    lin("lin_y2", dim_ffy, dy)

    for nm, d in [("normX1", dx), ("normX2", dx), ("normE1", de), ("normE2", de),
                  ("norm_y1", dy), ("norm_y2", dy)]:
        params[nm] = (jnp.ones((1, d), jnp.float32), jnp.zeros((1, d), jnp.float32))
    return params


# -------------------- forward --------------------

def xey_transformer_layer(params, X, E, y, node_mask, n_head, eps=1e-5):
    p = params
    bs, n, dx = X.shape
    de = E.shape[-1]
    df = dx // n_head

    node_mask = node_mask.astype(jnp.float32)
    x_mask3 = node_mask[..., None]                       # (bs, n, 1)

    # 1. masked Q|K|V projection + Xtoy pooling (X read once)
    qkv, pool_x = qkv_pool(X, x_mask3, *p["qkv"])

    # 2. attention + edge update + fused E-stream LN/FFN/LN + Etoy pooling (E read once)
    Eo, newX, pool_e = attn_core(qkv, E, x_mask3, y.reshape(bs, 1, -1), p, df=df, eps=eps)

    # 3. y head + y-stream residual/LN/FFN/LN
    yo = y_block(y, pool_x.reshape(bs, -1), pool_e.reshape(bs, -1), p, eps=eps)

    # 4. X-stream residual + LayerNorm + FFN + LayerNorm (dropout == identity)
    Xo = ffn_block(X.reshape(bs * n, dx), newX.reshape(bs * n, dx),
                   p["normX1"], p["linX1"], p["linX2"], p["normX2"], eps)

    return Xo.reshape(bs, n, dx), Eo, yo


# -------------------- pure-jnp reference (mirrors the torch module) --------------------

def reference_forward(params, X, E, y, node_mask, n_head, eps=1e-5):
    p = params
    bs, n, dx = X.shape
    de = E.shape[-1]
    df = dx // n_head
    node_mask = node_mask.astype(jnp.float32)

    def lin(x, wb):
        w, b = wb
        # same matmul operand precision as the kernels (bf16 in, f32 accumulate) so the
        # check isolates kernel-structure errors from intentional MXU rounding.
        return jnp.dot(x.astype(MATMUL_DTYPE), w.astype(MATMUL_DTYPE),
                       preferred_element_type=jnp.float32) + b

    def ln(v, gb):
        g, b = gb
        mu = jnp.mean(v, axis=-1, keepdims=True)
        var = jnp.mean((v - mu) ** 2, axis=-1, keepdims=True)
        return (v - mu) * jax.lax.rsqrt(var + eps) * g + b

    xm = node_mask[..., None]
    em = xm[:, :, None, :] * xm[:, None, :, :]

    qkv = lin(X, p["qkv"]) * xm
    Q, K, V = qkv[..., :dx], qkv[..., dx:2 * dx], qkv[..., 2 * dx:]

    e12 = lin(E, p["e_proj"])
    E1, E2 = e12[..., :dx] * em, e12[..., dx:] * em

    Y = Q[:, :, None, :] * K[:, None, :, :] / math.sqrt(df)
    Y = Y * (E1 + 1.0) + E2

    yc = lin(y, p["ycoef"])
    ye_add, ye_mul = yc[:, :dx], yc[:, dx:2 * dx]
    yx_add, yx_mul = yc[:, 2 * dx:3 * dx], yc[:, 3 * dx:]

    newE = ye_add[:, None, None, :] + (ye_mul[:, None, None, :] + 1.0) * Y
    newE = lin(newE, p["e_out"]) * em

    colm = node_mask[:, None, :, None]
    neg = jnp.where(colm > 0.0, Y, -1e30)
    ex = jnp.exp(neg - jnp.max(neg, axis=2, keepdims=True))
    ex = jnp.where(colm > 0.0, ex, 0.0)
    attn = ex / jnp.maximum(jnp.sum(ex, axis=2, keepdims=True), 1e-30)

    wv = jnp.sum(attn * V[:, None, :, :], axis=2)
    newX = yx_add[:, None, :] + (yx_mul[:, None, :] + 1.0) * wv
    newX = lin(newX, p["x_out"]) * xm

    def pool(z):
        return jnp.concatenate([jnp.mean(z, axis=1), jnp.min(z, axis=1),
                                jnp.max(z, axis=1), jnp.std(z, axis=1, ddof=1)], axis=-1)

    new_y = (lin(y, p["y_y"]) + lin(pool(X), p["x_y"])
             + lin(pool(E.reshape(bs, n * n, de)), p["e_y"]))
    new_y = lin(jnp.maximum(lin(new_y, p["y_out1"]), 0.0), p["y_out2"])

    def ffn(x_in, a, ln1, l1, l2, ln2):
        xr = ln(x_in + a, ln1)
        h = jnp.maximum(lin(xr, l1), 0.0)
        return ln(xr + lin(h, l2), ln2)

    Xo = ffn(X, newX, p["normX1"], p["linX1"], p["linX2"], p["normX2"])
    Eo = ffn(E, newE, p["normE1"], p["linE1"], p["linE2"], p["normE2"])
    yo = ffn(y, new_y, p["norm_y1"], p["lin_y1"], p["lin_y2"], p["norm_y2"])
    return Xo, Eo, yo


# -------------------- main --------------------

if __name__ == "__main__":
    dx, de, dy, n_head = 32, 16, 16, 4
    dim_ffX, dim_ffE, dim_ffy = 64, 32, 64
    bs, n = 2, 8

    key = jax.random.PRNGKey(0)
    kX, kE, ky, kp = jax.random.split(key, 4)
    X = jax.random.normal(kX, (bs, n, dx), jnp.float32)
    E = jax.random.normal(kE, (bs, n, n, de), jnp.float32)
    y = jax.random.normal(ky, (bs, dy), jnp.float32)
    node_mask = jnp.ones((bs, n), jnp.float32).at[:, -2:].set(0.0)   # last 2 nodes padded

    params = init_params(kp, dx, de, dy, dim_ffX, dim_ffE, dim_ffy)

    fwd = jax.jit(partial(xey_transformer_layer, n_head=n_head))
    Xo, Eo, yo = fwd(params, X, E, y, node_mask)
    jax.block_until_ready((Xo, Eo, yo))

    ref = jax.jit(partial(reference_forward, n_head=n_head))
    Xr, Er, yr = ref(params, X, E, y, node_mask)
    jax.block_until_ready((Xr, Er, yr))

    assert Xo.shape == (bs, n, dx) and Eo.shape == (bs, n, n, de) and yo.shape == (bs, dy)
    # tolerance absorbs the single-pass Etoy variance and any residual MXU rounding
    # differences; both paths use bf16 MXU operands with f32 accumulation.
    for got, want, name in ((Xo, Xr, "X"), (Eo, Er, "E"), (yo, yr, "y")):
        assert bool(jnp.all(jnp.isfinite(got))), name
        err = float(jnp.max(jnp.abs(got - want)))
        assert err < 5e-2, f"{name} mismatch: max abs err {err}"

    print("KERNEL_OK")
</pallas_src>

<mosaic_0001>
module attributes {stable_mosaic.version = 11 : i64} {
  func.func @_qkv_pool_kernel(%arg0: i32, %arg1: memref<1x8x32xf32, #tpu.memory_space<vmem>>, %arg2: memref<1x8x1xf32, #tpu.memory_space<vmem>>, %arg3: memref<32x96xf32, #tpu.memory_space<vmem>>, %arg4: memref<1x96xf32, #tpu.memory_space<vmem>>, %arg5: memref<1x8x96xf32, #tpu.memory_space<vmem>>, %arg6: memref<1x1x128xf32, #tpu.memory_space<vmem>>) attributes {dimension_semantics = [#tpu.dimension_semantics<parallel>], iteration_bounds = array<i64: 2>, scalar_prefetch = 0 : i64, scratch_operands = 0 : i64, tpu.core_type = #tpu.core_type<tc>, window_params = [{transform_indices = @transform_0, window_bounds = array<i64: 1, 8, 32>}, {transform_indices = @transform_1, window_bounds = array<i64: 1, 8, 1>}, {pipeline_mode = #tpu.pipeline_mode<synchronous>, transform_indices = @transform_2, window_bounds = array<i64: 32, 96>}, {pipeline_mode = #tpu.pipeline_mode<synchronous>, transform_indices = @transform_3, window_bounds = array<i64: 1, 96>}, {transform_indices = @transform_4, window_bounds = array<i64: 1, 8, 96>}, {transform_indices = @transform_5, window_bounds = array<i64: 1, 1, 128>}]} {
    %c0 = arith.constant 0 : index
    %c0_0 = arith.constant 0 : index
    %c0_1 = arith.constant 0 : index
    %0 = vector.load %arg1[%c0, %c0_0, %c0_1] : memref<1x8x32xf32, #tpu.memory_space<vmem>>, vector<1x8x32xf32>
    %1 = vector.shape_cast %0 : vector<1x8x32xf32> to vector<8x32xf32>
    %c0_2 = arith.constant 0 : index
    %c0_3 = arith.constant 0 : index
    %2 = vector.load %arg3[%c0_2, %c0_3] : memref<32x96xf32, #tpu.memory_space<vmem>>, vector<32x96xf32>
    %3 = arith.truncf %1 : vector<8x32xf32> to vector<8x32xbf16>
    %4 = arith.truncf %2 : vector<32x96xf32> to vector<32x96xbf16>
    %cst = arith.constant dense<0.000000e+00> : vector<8x96xf32>
    %5 = tpu.matmul %3, %4, %cst {dimension_numbers = #tpu.dot_dimension_numbers<[1], [0], [0], [1], [0, 0, 1, 1], [], []>} : vector<8x32xbf16>, vector<32x96xbf16>, vector<8x96xf32> -> vector<8x96xf32>
    %c0_4 = arith.constant 0 : index
    %c0_5 = arith.constant 0 : index
    %6 = vector.load %arg4[%c0_4, %c0_5] : memref<1x96xf32, #tpu.memory_space<vmem>>, vector<1x96xf32>
    %7 = vector.broadcast %6 : vector<1x96xf32> to vector<8x96xf32>
    %8 = arith.addf %5, %7 : vector<8x96xf32>
    %c0_6 = arith.constant 0 : index
    %c0_7 = arith.constant 0 : index
    %c0_8 = arith.constant 0 : index
    %9 = vector.load %arg2[%c0_6, %c0_7, %c0_8] : memref<1x8x1xf32, #tpu.memory_space<vmem>>, vector<1x8x1xf32>
    %10 = vector.shape_cast %9 : vector<1x8x1xf32> to vector<8x1xf32>
    %11 = vector.broadcast %10 : vector<8x1xf32> to vector<8x96xf32>
    %12 = arith.mulf %8, %11 : vector<8x96xf32>
    %c0_9 = arith.constant 0 : index
    %c0_10 = arith.constant 0 : index
    %c0_11 = arith.constant 0 : index
    %13 = vector.load %arg5[%c0_9, %c0_10, %c0_11] : memref<1x8x96xf32, #tpu.memory_space<vmem>>, vector<1x8x96xf32>
    %14 = vector.shape_cast %13 : vector<1x8x96xf32> to vector<8x96xf32>
    %15 = vector.shape_cast %12 : vector<8x96xf32> to vector<1x8x96xf32>
    tpu.vector_store %arg5[%c0_9, %c0_10, %c0_11], %15 {strides = array<i32>} : memref<1x8x96xf32, #tpu.memory_space<vmem>>, vector<1x8x96xf32>,
    %cst_12 = arith.constant dense<0.000000e+00> : vector<32xf32>
    %16 = vector.multi_reduction <add>, %1, %cst_12 [0] : vector<8x32xf32> to vector<32xf32>
    %17 = vector.shape_cast %16 : vector<32xf32> to vector<1x32xf32>
    %cst_13 = arith.constant 8.000000e+00 : f32
    %18 = vector.broadcast %cst_13 : f32 to vector<1x32xf32>
    %19 = arith.divf %17, %18 : vector<1x32xf32>
    %cst_14 = arith.constant dense<0x7F800000> : vector<32xf32>
    %20 = vector.multi_reduction <minimumf>, %1, %cst_14 [0] : vector<8x32xf32> to vector<32xf32>
    %21 = vector.shape_cast %20 : vector<32xf32> to vector<1x32xf32>
    %cst_15 = arith.constant dense<0xFF800000> : vector<32xf32>
    %22 = vector.multi_reduction <maximumf>, %1, %cst_15 [0] : vector<8x32xf32> to vector<32xf32>
    %23 = vector.shape_cast %22 : vector<32xf32> to vector<1x32xf32>
    %24 = vector.broadcast %19 : vector<1x32xf32> to vector<8x32xf32>
    %25 = arith.subf %1, %24 : vector<8x32xf32>
    %26 = arith.mulf %25, %25 : vector<8x32xf32>
    %cst_16 = arith.constant dense<0.000000e+00> : vector<32xf32>
    %27 = vector.multi_reduction <add>, %26, %cst_16 [0] : vector<8x32xf32> to vector<32xf32>
    %28 = vector.shape_cast %27 : vector<32xf32> to vector<1x32xf32>
    %cst_17 = arith.constant 0.142857149 : f32
    %29 = vector.broadcast %cst_17 : f32 to vector<1x32xf32>
    %30 = arith.mulf %28, %29 : vector<1x32xf32>
    %31 = math.sqrt %30 : vector<1x32xf32>
    %c0_18 = arith.constant 0 : index
    %c0_19 = arith.constant 0 : index
    %c0_20 = arith.constant 0 : index
    %32 = vector.load %arg6[%c0_18, %c0_19, %c0_20] : memref<1x1x128xf32, #tpu.memory_space<vmem>>, vector<1x1x32xf32>
    %33 = vector.shape_cast %32 : vector<1x1x32xf32> to vector<1x32xf32>
    %34 = vector.shape_cast %19 : vector<1x32xf32> to vector<1x1x32xf32>
    tpu.vector_store %arg6[%c0_18, %c0_19, %c0_20], %34 {strides = array<i32>} : memref<1x1x128xf32, #tpu.memory_space<vmem>>, vector<1x1x32xf32>,
    %c0_21 = arith.constant 0 : index
    %c0_22 = arith.constant 0 : index
    %c32 = arith.constant 32 : index
    %35 = vector.load %arg6[%c0_21, %c0_22, %c32] : memref<1x1x128xf32, #tpu.memory_space<vmem>>, vector<1x1x32xf32>
    %36 = vector.shape_cast %35 : vector<1x1x32xf32> to vector<1x32xf32>
    %37 = vector.shape_cast %21 : vector<1x32xf32> to vector<1x1x32xf32>
    tpu.vector_store %arg6[%c0_21, %c0_22, %c32], %37 {strides = array<i32>} : memref<1x1x128xf32, #tpu.memory_space<vmem>>, vector<1x1x32xf32>,
    %c0_23 = arith.constant 0 : index
    %c0_24 = arith.constant 0 : index
    %c64 = arith.constant 64 : index
    %38 = vector.load %arg6[%c0_23, %c0_24, %c64] : memref<1x1x128xf32, #tpu.memory_space<vmem>>, vector<1x1x32xf32>
    %39 = vector.shape_cast %38 : vector<1x1x32xf32> to vector<1x32xf32>
    %40 = vector.shape_cast %23 : vector<1x32xf32> to vector<1x1x32xf32>
    tpu.vector_store %arg6[%c0_23, %c0_24, %c64], %40 {strides = array<i32>} : memref<1x1x128xf32, #tpu.memory_space<vmem>>, vector<1x1x32xf32>,
    %c0_25 = arith.constant 0 : index
    %c0_26 = arith.constant 0 : index
    %c96 = arith.constant 96 : index
    %41 = vector.load %arg6[%c0_25, %c0_26, %c96] : memref<1x1x128xf32, #tpu.memory_space<vmem>>, vector<1x1x32xf32>
    %42 = vector.shape_cast %41 : vector<1x1x32xf32> to vector<1x32xf32>
    %43 = vector.shape_cast %31 : vector<1x32xf32> to vector<1x1x32xf32>
    tpu.vector_store %arg6[%c0_25, %c0_26, %c96], %43 {strides = array<i32>} : memref<1x1x128xf32, #tpu.memory_space<vmem>>, vector<1x1x32xf32>,
    return
  }
  func.func @transform_0(%arg0: i32) -> (i32, i32, i32) {
    %c0_i32 = arith.constant 0 : i32
    %c0_i32_0 = arith.constant 0 : i32
    %c0_i32_1 = arith.constant 0 : i32
    return %arg0, %c0_i32, %c0_i32_0 : i32, i32, i32
  }
  func.func @transform_1(%arg0: i32) -> (i32, i32, i32) {
    %c0_i32 = arith.constant 0 : i32
    %c0_i32_0 = arith.constant 0 : i32
    %c0_i32_1 = arith.constant 0 : i32
    return %arg0, %c0_i32, %c0_i32_0 : i32, i32, i32
  }
  func.func @transform_2(%arg0: i32) -> (i32, i32) {
    %c0_i32 = arith.constant 0 : i32
    %c0_i32_0 = arith.constant 0 : i32
    %c0_i32_1 = arith.constant 0 : i32
    return %c0_i32, %c0_i32_0 : i32, i32
  }
  func.func @transform_3(%arg0: i32) -> (i32, i32) {
    %c0_i32 = arith.constant 0 : i32
    %c0_i32_0 = arith.constant 0 : i32
    %c0_i32_1 = arith.constant 0 : i32
    return %c0_i32, %c0_i32_0 : i32, i32
  }
  func.func @transform_4(%arg0: i32) -> (i32, i32, i32) {
    %c0_i32 = arith.constant 0 : i32
    %c0_i32_0 = arith.constant 0 : i32
    %c0_i32_1 = arith.constant 0 : i32
    return %arg0, %c0_i32, %c0_i32_0 : i32, i32, i32
  }
  func.func @transform_5(%arg0: i32) -> (i32, i32, i32) {
    %c0_i32 = arith.constant 0 : i32
    %c0_i32_0 = arith.constant 0 : i32
    %c0_i32_1 = arith.constant 0 : i32
    return %arg0, %c0_i32, %c0_i32_0 : i32, i32, i32
  }
}

module attributes {stable_mosaic.version = 11 : i64} {
  func.func @_attn_e_kernel(%arg0: i32, %arg1: i32, %arg2: memref<1x8x96xf32, #tpu.memory_space<vmem>>, %arg3: memref<1x8x8x16xf32, #tpu.memory_space<vmem>>, %arg4: memref<1x8x1xf32, #tpu.memory_space<vmem>>, %arg5: memref<1x1x16xf32, #tpu.memory_space<vmem>>, %arg6: memref<16x128xf32, #tpu.memory_space<vmem>>, %arg7: memref<1x128xf32, #tpu.memory_space<vmem>>, %arg8: memref<16x64xf32, #tpu.memory_space<vmem>>, %arg9: memref<1x64xf32, #tpu.memory_space<vmem>>, %arg10: memref<32x16xf32, #tpu.memory_space<vmem>>, %arg11: memref<1x16xf32, #tpu.memory_space<vmem>>, %arg12: memref<32x32xf32, #tpu.memory_space<vmem>>, %arg13: memref<1x32xf32, #tpu.memory_space<vmem>>, %arg14: memref<1x16xf32, #tpu.memory_space<vmem>>, %arg15: memref<1x16xf32, #tpu.memory_space<vmem>>, %arg16: memref<16x32xf32, #tpu.memory_space<vmem>>, %arg17: memref<1x32xf32, #tpu.memory_space<vmem>>, %arg18: memref<32x16xf32, #tpu.memory_space<vmem>>, %arg19: memref<1x16xf32, #tpu.memory_space<vmem>>, %arg20: memref<1x16xf32, #tpu.memory_space<vmem>>, %arg21: memref<1x16xf32, #tpu.memory_space<vmem>>, %arg22: memref<1x8x8x16xf32, #tpu.memory_space<vmem>>, %arg23: memref<1x8x32xf32, #tpu.memory_space<vmem>>, %arg24: memref<1x1x64xf32, #tpu.memory_space<vmem>>, %arg25: memref<1x16xf32, #tpu.memory_space<vmem>>, %arg26: memref<1x16xf32, #tpu.memory_space<vmem>>, %arg27: memref<1x16xf32, #tpu.memory_space<vmem>>, %arg28: memref<1x16xf32, #tpu.memory_space<vmem>>) attributes {dimension_semantics = [#tpu.dimension_semantics<parallel>, #tpu.dimension_semantics<arbitrary>], iteration_bounds = array<i64: 2, 1>, scalar_prefetch = 0 : i64, scratch_operands = 4 : i64, tpu.core_type = #tpu.core_type<tc>, window_params = [{transform_indices = @transform_0, window_bounds = array<i64: 1, 8, 96>}, {transform_indices = @transform_1, window_bounds = array<i64: 1, 8, 8, 16>}, {transform_indices = @transform_2, window_bounds = array<i64: 1, 8, 1>}, {transform_indices = @transform_3, window_bounds = array<i64: 1, 1, 16>}, {pipeline_mode = #tpu.pipeline_mode<synchronous>, transform_indices = @transform_4, window_bounds = array<i64: 16, 128>}, {pipeline_mode = #tpu.pipeline_mode<synchronous>, transform_indices = @transform_5, window_bounds = array<i64: 1, 128>}, {pipeline_mode = #tpu.pipeline_mode<synchronous>, transform_indices = @transform_6, window_bounds = array<i64: 16, 64>}, {pipeline_mode = #tpu.pipeline_mode<synchronous>, transform_indices = @transform_7, window_bounds = array<i64: 1, 64>}, {pipeline_mode = #tpu.pipeline_mode<synchronous>, transform_indices = @transform_8, window_bounds = array<i64: 32, 16>}, {pipeline_mode = #tpu.pipeline_mode<synchronous>, transform_indices = @transform_9, window_bounds = array<i64: 1, 16>}, {pipeline_mode = #tpu.pipeline_mode<synchronous>, transform_indices = @transform_10, window_bounds = array<i64: 32, 32>}, {pipeline_mode = #tpu.pipeline_mode<synchronous>, transform_indices = @transform_11, window_bounds = array<i64: 1, 32>}, {pipeline_mode = #tpu.pipeline_mode<synchronous>, transform_indices = @transform_12, window_bounds = array<i64: 1, 16>}, {pipeline_mode = #tpu.pipeline_mode<synchronous>, transform_indices = @transform_13, window_bounds = array<i64: 1, 16>}, {pipeline_mode = #tpu.pipeline_mode<synchronous>, transform_indices = @transform_14, window_bounds = array<i64: 16, 32>}, {pipeline_mode = #tpu.pipeline_mode<synchronous>, transform_indices = @transform_15, window_bounds = array<i64: 1, 32>}, {pipeline_mode = #tpu.pipeline_mode<synchronous>, transform_indices = @transform_16, window_bounds = array<i64: 32, 16>}, {pipeline_mode = #tpu.pipeline_mode<synchronous>, transform_indices = @transform_17, window_bounds = array<i64: 1, 16>}, {pipeline_mode = #tpu.pipeline_mode<synchronous>, transform_indices = @transform_18, window_bounds = array<i64: 1, 16>}, {pipeline_mode = #tpu.pipeline_mode<synchronous>, transform_indices = @transform_19, window_bounds = array<i64: 1, 16>}, {transform_indices = @transform_20, window_bounds = array<i64: 1, 8, 8, 16>}, {transform_indices = @transform_21, window_bounds = array<i64: 1, 8, 32>}, {transform_indices = @transform_22, window_bounds = array<i64: 1, 1, 64>}]} {
    %c0_i32 = arith.constant 0 : i32
    %0 = arith.cmpi eq, %arg1, %c0_i32 : i32
    %1 = arith.extui %0 : i1 to i32
    %c0_i32_0 = arith.constant 0 : i32
    %2 = arith.cmpi ne, %1, %c0_i32_0 : i32
    scf.if %2 {
      %cst_106 = arith.constant 0.000000e+00 : f32
      %218 = vector.broadcast %cst_106 : f32 to vector<1x16xf32>
      %c0_107 = arith.constant 0 : index
      %c0_108 = arith.constant 0 : index
      %219 = vector.load %arg25[%c0_107, %c0_108] : memref<1x16xf32, #tpu.memory_space<vmem>>, vector<1x16xf32>
      tpu.vector_store %arg25[%c0_107, %c0_108], %218 {strides = array<i32>} : memref<1x16xf32, #tpu.memory_space<vmem>>, vector<1x16xf32>,
      %cst_109 = arith.constant 0.000000e+00 : f32
      %220 = vector.broadcast %cst_109 : f32 to vector<1x16xf32>
      %c0_110 = arith.constant 0 : index
      %c0_111 = arith.constant 0 : index
      %221 = vector.load %arg26[%c0_110, %c0_111] : memref<1x16xf32, #tpu.memory_space<vmem>>, vector<1x16xf32>
      tpu.vector_store %arg26[%c0_110, %c0_111], %220 {strides = array<i32>} : memref<1x16xf32, #tpu.memory_space<vmem>>, vector<1x16xf32>,
      %cst_112 = arith.constant 0x7F800000 : f32
      %222 = vector.broadcast %cst_112 : f32 to vector<1x16xf32>
      %c0_113 = arith.constant 0 : index
      %c0_114 = arith.constant 0 : index
      %223 = vector.load %arg27[%c0_113, %c0_114] : memref<1x16xf32, #tpu.memory_space<vmem>>, vector<1x16xf32>
      tpu.vector_store %arg27[%c0_113, %c0_114], %222 {strides = array<i32>} : memref<1x16xf32, #tpu.memory_space<vmem>>, vector<1x16xf32>,
      %cst_115 = arith.constant 0xFF800000 : f32
      %224 = vector.broadcast %cst_115 : f32 to vector<1x16xf32>
      %c0_116 = arith.constant 0 : index
      %c0_117 = arith.constant 0 : index
      %225 = vector.load %arg28[%c0_116, %c0_117] : memref<1x16xf32, #tpu.memory_space<vmem>>, vector<1x16xf32>
      tpu.vector_store %arg28[%c0_116, %c0_117], %224 {strides = array<i32>} : memref<1x16xf32, #tpu.memory_space<vmem>>, vector<1x16xf32>,
    } else {
    }
    %c0 = arith.constant 0 : index
    %c0_1 = arith.constant 0 : index
    %c0_2 = arith.constant 0 : index
    %3 = vector.load %arg2[%c0, %c0_1, %c0_2] : memref<1x8x96xf32, #tpu.memory_space<vmem>>, vector<1x8x96xf32>
    %4 = vector.shape_cast %3 : vector<1x8x96xf32> to vector<8x96xf32>
    %5 = vector.extract_strided_slice %4 {offsets = [0, 32], sizes = [8, 32], strides = [1, 1]} : vector<8x96xf32> to vector<8x32xf32>
    %6 = vector.extract_strided_slice %4 {offsets = [0, 64], sizes = [8, 32], strides = [1, 1]} : vector<8x96xf32> to vector<8x32xf32>
    %c8_i32 = arith.constant 8 : i32
    %7 = arith.muli %arg1, %c8_i32 : i32
    %c0_3 = arith.constant 0 : index
    %8 = arith.index_cast %7 : i32 to index
    %c0_4 = arith.constant 0 : index
    %9 = vector.load %arg2[%c0_3, %8, %c0_4] : memref<1x8x96xf32, #tpu.memory_space<vmem>>, vector<1x8x96xf32>
    %10 = vector.shape_cast %9 : vector<1x8x96xf32> to vector<8x96xf32>
    %11 = vector.extract_strided_slice %10 {offsets = [0, 0], sizes = [8, 32], strides = [1, 1]} : vector<8x96xf32> to vector<8x32xf32>
    %c0_5 = arith.constant 0 : index
    %c0_6 = arith.constant 0 : index
    %c0_7 = arith.constant 0 : index
    %12 = vector.load %arg4[%c0_5, %c0_6, %c0_7] : memref<1x8x1xf32, #tpu.memory_space<vmem>>, vector<1x8x1xf32>
    %13 = vector.shape_cast %12 : vector<1x8x1xf32> to vector<8x1xf32>
    %c0_8 = arith.constant 0 : index
    %14 = arith.index_cast %7 : i32 to index
    %c0_9 = arith.constant 0 : index
    %15 = vector.load %arg4[%c0_8, %14, %c0_9] : memref<1x8x1xf32, #tpu.memory_space<vmem>>, vector<1x8x1xf32>
    %16 = vector.shape_cast %15 : vector<1x8x1xf32> to vector<8x1xf32>
    %c0_10 = arith.constant 0 : index
    %c0_11 = arith.constant 0 : index
    %c0_12 = arith.constant 0 : index
    %17 = vector.load %arg5[%c0_10, %c0_11, %c0_12] : memref<1x1x16xf32, #tpu.memory_space<vmem>>, vector<1x1x16xf32>
    %18 = vector.shape_cast %17 : vector<1x1x16xf32> to vector<1x16xf32>
    %c0_13 = arith.constant 0 : index
    %c0_14 = arith.constant 0 : index
    %19 = vector.load %arg6[%c0_13, %c0_14] : memref<16x128xf32, #tpu.memory_space<vmem>>, vector<16x128xf32>
    %20 = arith.truncf %18 : vector<1x16xf32> to vector<1x16xbf16>
    %21 = arith.truncf %19 : vector<16x128xf32> to vector<16x128xbf16>
    %cst = arith.constant dense<0.000000e+00> : vector<1x128xf32>
    %22 = tpu.matmul %20, %21, %cst {dimension_numbers = #tpu.dot_dimension_numbers<[1], [0], [0], [1], [0, 0, 1, 1], [], []>} : vector<1x16xbf16>, vector<16x128xbf16>, vector<1x128xf32> -> vector<1x128xf32>
    %c0_15 = arith.constant 0 : index
    %c0_16 = arith.constant 0 : index
    %23 = vector.load %arg7[%c0_15, %c0_16] : memref<1x128xf32, #tpu.memory_space<vmem>>, vector<1x128xf32>
    %24 = arith.addf %22, %23 : vector<1x128xf32>
    %25 = vector.extract_strided_slice %24 {offsets = [0, 0], sizes = [1, 32], strides = [1, 1]} : vector<1x128xf32> to vector<1x32xf32>
    %26 = vector.extract_strided_slice %24 {offsets = [0, 32], sizes = [1, 32], strides = [1, 1]} : vector<1x128xf32> to vector<1x32xf32>
    %27 = vector.extract_strided_slice %24 {offsets = [0, 64], sizes = [1, 32], strides = [1, 1]} : vector<1x128xf32> to vector<1x32xf32>
    %28 = vector.extract_strided_slice %24 {offsets = [0, 96], sizes = [1, 32], strides = [1, 1]} : vector<1x128xf32> to vector<1x32xf32>
    %29 = vector.shape_cast %16 : vector<8x1xf32> to vector<8x1x1xf32>
    %30 = vector.shape_cast %13 : vector<8x1xf32> to vector<1x8x1xf32>
    %31 = vector.broadcast %29 : vector<8x1x1xf32> to vector<8x8x1xf32>
    %32 = vector.broadcast %30 : vector<1x8x1xf32> to vector<8x8x1xf32>
    %33 = arith.mulf %31, %32 : vector<8x8x1xf32>
    %c0_17 = arith.constant 0 : index
    %c0_18 = arith.constant 0 : index
    %c0_19 = arith.constant 0 : index
    %c0_20 = arith.constant 0 : index
    %34 = vector.load %arg3[%c0_17, %c0_18, %c0_19, %c0_20] : memref<1x8x8x16xf32, #tpu.memory_space<vmem>>, vector<1x8x8x16xf32>
    %35 = vector.shape_cast %34 : vector<1x8x8x16xf32> to vector<8x8x16xf32>
    %36 = vector.shape_cast %35 : vector<8x8x16xf32> to vector<64x16xf32>
    %c0_21 = arith.constant 0 : index
    %c0_22 = arith.constant 0 : index
    %37 = vector.load %arg8[%c0_21, %c0_22] : memref<16x64xf32, #tpu.memory_space<vmem>>, vector<16x64xf32>
    %38 = arith.truncf %36 : vector<64x16xf32> to vector<64x16xbf16>
    %39 = arith.truncf %37 : vector<16x64xf32> to vector<16x64xbf16>
    %cst_23 = arith.constant dense<0.000000e+00> : vector<64x64xf32>
    %40 = tpu.matmul %38, %39, %cst_23 {dimension_numbers = #tpu.dot_dimension_numbers<[1], [0], [0], [1], [0, 0, 1, 1], [], []>} : vector<64x16xbf16>, vector<16x64xbf16>, vector<64x64xf32> -> vector<64x64xf32>
    %c0_24 = arith.constant 0 : index
    %c0_25 = arith.constant 0 : index
    %41 = vector.load %arg9[%c0_24, %c0_25] : memref<1x64xf32, #tpu.memory_space<vmem>>, vector<1x64xf32>
    %42 = vector.broadcast %41 : vector<1x64xf32> to vector<64x64xf32>
    %43 = arith.addf %40, %42 : vector<64x64xf32>
    %44 = vector.shape_cast %43 : vector<64x64xf32> to vector<8x8x64xf32>
    %45 = vector.extract_strided_slice %44 {offsets = [0, 0, 0], sizes = [8, 8, 32], strides = [1, 1, 1]} : vector<8x8x64xf32> to vector<8x8x32xf32>
    %46 = vector.broadcast %33 : vector<8x8x1xf32> to vector<8x8x32xf32>
    %47 = arith.mulf %45, %46 : vector<8x8x32xf32>
    %48 = vector.extract_strided_slice %44 {offsets = [0, 0, 32], sizes = [8, 8, 32], strides = [1, 1, 1]} : vector<8x8x64xf32> to vector<8x8x32xf32>
    %49 = vector.broadcast %33 : vector<8x8x1xf32> to vector<8x8x32xf32>
    %50 = arith.mulf %48, %49 : vector<8x8x32xf32>
    %51 = vector.shape_cast %11 : vector<8x32xf32> to vector<8x1x32xf32>
    %52 = vector.shape_cast %5 : vector<8x32xf32> to vector<1x8x32xf32>
    %53 = vector.broadcast %51 : vector<8x1x32xf32> to vector<8x8x32xf32>
    %54 = vector.broadcast %52 : vector<1x8x32xf32> to vector<8x8x32xf32>
    %55 = arith.mulf %53, %54 : vector<8x8x32xf32>
    %cst_26 = arith.constant 0.353553385 : f32
    %56 = vector.broadcast %cst_26 : f32 to vector<8x8x32xf32>
    %57 = arith.mulf %55, %56 : vector<8x8x32xf32>
    %cst_27 = arith.constant 1.000000e+00 : f32
    %58 = vector.broadcast %cst_27 : f32 to vector<8x8x32xf32>
    %59 = arith.addf %47, %58 : vector<8x8x32xf32>
    %60 = arith.mulf %57, %59 : vector<8x8x32xf32>
    %61 = arith.addf %60, %50 : vector<8x8x32xf32>
    %62 = vector.shape_cast %25 : vector<1x32xf32> to vector<1x1x32xf32>
    %63 = vector.shape_cast %26 : vector<1x32xf32> to vector<1x1x32xf32>
    %cst_28 = arith.constant 1.000000e+00 : f32
    %64 = vector.broadcast %cst_28 : f32 to vector<1x1x32xf32>
    %65 = arith.addf %63, %64 : vector<1x1x32xf32>
    %66 = vector.broadcast %65 : vector<1x1x32xf32> to vector<8x8x32xf32>
    %67 = arith.mulf %66, %61 : vector<8x8x32xf32>
    %68 = vector.broadcast %62 : vector<1x1x32xf32> to vector<8x8x32xf32>
    %69 = arith.addf %68, %67 : vector<8x8x32xf32>
    %70 = vector.shape_cast %69 : vector<8x8x32xf32> to vector<64x32xf32>
    %c0_29 = arith.constant 0 : index
    %c0_30 = arith.constant 0 : index
    %71 = vector.load %arg10[%c0_29, %c0_30] : memref<32x16xf32, #tpu.memory_space<vmem>>, vector<32x16xf32>
    %72 = arith.truncf %70 : vector<64x32xf32> to vector<64x32xbf16>
    %73 = arith.truncf %71 : vector<32x16xf32> to vector<32x16xbf16>
    %cst_31 = arith.constant dense<0.000000e+00> : vector<64x16xf32>
    %74 = tpu.matmul %72, %73, %cst_31 {dimension_numbers = #tpu.dot_dimension_numbers<[1], [0], [0], [1], [0, 0, 1, 1], [], []>} : vector<64x32xbf16>, vector<32x16xbf16>, vector<64x16xf32> -> vector<64x16xf32>
    %c0_32 = arith.constant 0 : index
    %c0_33 = arith.constant 0 : index
    %75 = vector.load %arg11[%c0_32, %c0_33] : memref<1x16xf32, #tpu.memory_space<vmem>>, vector<1x16xf32>
    %76 = vector.broadcast %75 : vector<1x16xf32> to vector<64x16xf32>
    %77 = arith.addf %74, %76 : vector<64x16xf32>
    %78 = vector.shape_cast %77 : vector<64x16xf32> to vector<8x8x16xf32>
    %79 = vector.broadcast %33 : vector<8x8x1xf32> to vector<8x8x16xf32>
    %80 = arith.mulf %78, %79 : vector<8x8x16xf32>
    %81 = arith.addf %35, %80 : vector<8x8x16xf32>
    %82 = vector.shape_cast %81 : vector<8x8x16xf32> to vector<64x16xf32>
    %c0_34 = arith.constant 0 : index
    %c0_35 = arith.constant 0 : index
    %83 = vector.load %arg14[%c0_34, %c0_35] : memref<1x16xf32, #tpu.memory_space<vmem>>, vector<1x16xf32>
    %c0_36 = arith.constant 0 : index
    %c0_37 = arith.constant 0 : index
    %84 = vector.load %arg15[%c0_36, %c0_37] : memref<1x16xf32, #tpu.memory_space<vmem>>, vector<1x16xf32>
    %cst_38 = arith.constant dense<0.000000e+00> : vector<64xf32>
    %85 = vector.multi_reduction <add>, %82, %cst_38 [1] : vector<64x16xf32> to vector<64xf32>
    %86 = vector.shape_cast %85 : vector<64xf32> to vector<64x1xf32>
    %cst_39 = arith.constant 1.600000e+01 : f32
    %87 = vector.broadcast %cst_39 : f32 to vector<64x1xf32>
    %88 = arith.divf %86, %87 : vector<64x1xf32>
    %89 = vector.broadcast %88 : vector<64x1xf32> to vector<64x16xf32>
    %90 = arith.subf %82, %89 : vector<64x16xf32>
    %91 = arith.mulf %90, %90 : vector<64x16xf32>
    %cst_40 = arith.constant dense<0.000000e+00> : vector<64xf32>
    %92 = vector.multi_reduction <add>, %91, %cst_40 [1] : vector<64x16xf32> to vector<64xf32>
    %93 = vector.shape_cast %92 : vector<64xf32> to vector<64x1xf32>
    %cst_41 = arith.constant 1.600000e+01 : f32
    %94 = vector.broadcast %cst_41 : f32 to vector<64x1xf32>
    %95 = arith.divf %93, %94 : vector<64x1xf32>
    %cst_42 = arith.constant 9.99999974E-6 : f32
    %96 = vector.broadcast %cst_42 : f32 to vector<64x1xf32>
    %97 = arith.addf %95, %96 : vector<64x1xf32>
    %98 = math.rsqrt %97 : vector<64x1xf32>
    %99 = vector.broadcast %98 : vector<64x1xf32> to vector<64x16xf32>
    %100 = arith.mulf %90, %99 : vector<64x16xf32>
    %101 = vector.broadcast %83 : vector<1x16xf32> to vector<64x16xf32>
    %102 = arith.mulf %100, %101 : vector<64x16xf32>
    %103 = vector.broadcast %84 : vector<1x16xf32> to vector<64x16xf32>
    %104 = arith.addf %102, %103 : vector<64x16xf32>
    %c0_43 = arith.constant 0 : index
    %c0_44 = arith.constant 0 : index
    %105 = vector.load %arg16[%c0_43, %c0_44] : memref<16x32xf32, #tpu.memory_space<vmem>>, vector<16x32xf32>
    %106 = arith.truncf %104 : vector<64x16xf32> to vector<64x16xbf16>
    %107 = arith.truncf %105 : vector<16x32xf32> to vector<16x32xbf16>
    %cst_45 = arith.constant dense<0.000000e+00> : vector<64x32xf32>
    %108 = tpu.matmul %106, %107, %cst_45 {dimension_numbers = #tpu.dot_dimension_numbers<[1], [0], [0], [1], [0, 0, 1, 1], [], []>} : vector<64x16xbf16>, vector<16x32xbf16>, vector<64x32xf32> -> vector<64x32xf32>
    %c0_46 = arith.constant 0 : index
    %c0_47 = arith.constant 0 : index
    %109 = vector.load %arg17[%c0_46, %c0_47] : memref<1x32xf32, #tpu.memory_space<vmem>>, vector<1x32xf32>
    %110 = vector.broadcast %109 : vector<1x32xf32> to vector<64x32xf32>
    %111 = arith.addf %108, %110 : vector<64x32xf32>
    %cst_48 = arith.constant 0.000000e+00 : f32
    %112 = vector.broadcast %cst_48 : f32 to vector<64x32xf32>
    %113 = arith.maximumf %111, %112 : vector<64x32xf32>
    %c0_49 = arith.constant 0 : index
    %c0_50 = arith.constant 0 : index
    %114 = vector.load %arg18[%c0_49, %c0_50] : memref<32x16xf32, #tpu.memory_space<vmem>>, vector<32x16xf32>
    %115 = arith.truncf %113 : vector<64x32xf32> to vector<64x32xbf16>
    %116 = arith.truncf %114 : vector<32x16xf32> to vector<32x16xbf16>
    %cst_51 = arith.constant dense<0.000000e+00> : vector<64x16xf32>
    %117 = tpu.matmul %115, %116, %cst_51 {dimension_numbers = #tpu.dot_dimension_numbers<[1], [0], [0], [1], [0, 0, 1, 1], [], []>} : vector<64x32xbf16>, vector<32x16xbf16>, vector<64x16xf32> -> vector<64x16xf32>
    %c0_52 = arith.constant 0 : index
    %c0_53 = arith.constant 0 : index
    %118 = vector.load %arg19[%c0_52, %c0_53] : memref<1x16xf32, #tpu.memory_space<vmem>>, vector<1x16xf32>
    %119 = vector.broadcast %118 : vector<1x16xf32> to vector<64x16xf32>
    %120 = arith.addf %117, %119 : vector<64x16xf32>
    %121 = arith.addf %104, %120 : vector<64x16xf32>
    %c0_54 = arith.constant 0 : index
    %c0_55 = arith.constant 0 : index
    %122 = vector.load %arg20[%c0_54, %c0_55] : memref<1x16xf32, #tpu.memory_space<vmem>>, vector<1x16xf32>
    %c0_56 = arith.constant 0 : index
    %c0_57 = arith.constant 0 : index
    %123 = vector.load %arg21[%c0_56, %c0_57] : memref<1x16xf32, #tpu.memory_space<vmem>>, vector<1x16xf32>
    %cst_58 = arith.constant dense<0.000000e+00> : vector<64xf32>
    %124 = vector.multi_reduction <add>, %121, %cst_58 [1] : vector<64x16xf32> to vector<64xf32>
    %125 = vector.shape_cast %124 : vector<64xf32> to vector<64x1xf32>
    %cst_59 = arith.constant 1.600000e+01 : f32
    %126 = vector.broadcast %cst_59 : f32 to vector<64x1xf32>
    %127 = arith.divf %125, %126 : vector<64x1xf32>
    %128 = vector.broadcast %127 : vector<64x1xf32> to vector<64x16xf32>
    %129 = arith.subf %121, %128 : vector<64x16xf32>
    %130 = arith.mulf %129, %129 : vector<64x16xf32>
    %cst_60 = arith.constant dense<0.000000e+00> : vector<64xf32>
    %131 = vector.multi_reduction <add>, %130, %cst_60 [1] : vector<64x16xf32> to vector<64xf32>
    %132 = vector.shape_cast %131 : vector<64xf32> to vector<64x1xf32>
    %cst_61 = arith.constant 1.600000e+01 : f32
    %133 = vector.broadcast %cst_61 : f32 to vector<64x1xf32>
    %134 = arith.divf %132, %133 : vector<64x1xf32>
    %cst_62 = arith.constant 9.99999974E-6 : f32
    %135 = vector.broadcast %cst_62 : f32 to vector<64x1xf32>
    %136 = arith.addf %134, %135 : vector<64x1xf32>
    %137 = math.rsqrt %136 : vector<64x1xf32>
    %138 = vector.broadcast %137 : vector<64x1xf32> to vector<64x16xf32>
    %139 = arith.mulf %129, %138 : vector<64x16xf32>
    %140 = vector.broadcast %122 : vector<1x16xf32> to vector<64x16xf32>
    %141 = arith.mulf %139, %140 : vector<64x16xf32>
    %142 = vector.broadcast %123 : vector<1x16xf32> to vector<64x16xf32>
    %143 = arith.addf %141, %142 : vector<64x16xf32>
    %144 = vector.shape_cast %143 : vector<64x16xf32> to vector<8x8x16xf32>
    %c0_63 = arith.constant 0 : index
    %c0_64 = arith.constant 0 : index
    %c0_65 = arith.constant 0 : index
    %c0_66 = arith.constant 0 : index
    %145 = vector.load %arg22[%c0_63, %c0_64, %c0_65, %c0_66] : memref<1x8x8x16xf32, #tpu.memory_space<vmem>>, vector<1x8x8x16xf32>
    %146 = vector.shape_cast %145 : vector<1x8x8x16xf32> to vector<8x8x16xf32>
    %147 = vector.shape_cast %144 : vector<8x8x16xf32> to vector<1x8x8x16xf32>
    tpu.vector_store %arg22[%c0_63, %c0_64, %c0_65, %c0_66], %147 {strides = array<i32>} : memref<1x8x8x16xf32, #tpu.memory_space<vmem>>, vector<1x8x8x16xf32>,
    %c0_67 = arith.constant 0 : index
    %c0_68 = arith.constant 0 : index
    %148 = vector.load %arg25[%c0_67, %c0_68] : memref<1x16xf32, #tpu.memory_space<vmem>>, vector<1x16xf32>
    %cst_69 = arith.constant dense<0.000000e+00> : vector<16xf32>
    %149 = vector.multi_reduction <add>, %36, %cst_69 [0] : vector<64x16xf32> to vector<16xf32>
    %150 = vector.shape_cast %149 : vector<16xf32> to vector<1x16xf32>
    %151 = arith.addf %148, %150 : vector<1x16xf32>
    %c0_70 = arith.constant 0 : index
    %c0_71 = arith.constant 0 : index
    %152 = vector.load %arg25[%c0_70, %c0_71] : memref<1x16xf32, #tpu.memory_space<vmem>>, vector<1x16xf32>
    tpu.vector_store %arg25[%c0_70, %c0_71], %151 {strides = array<i32>} : memref<1x16xf32, #tpu.memory_space<vmem>>, vector<1x16xf32>,
    %c0_72 = arith.constant 0 : index
    %c0_73 = arith.constant 0 : index
    %153 = vector.load %arg26[%c0_72, %c0_73] : memref<1x16xf32, #tpu.memory_space<vmem>>, vector<1x16xf32>
    %154 = arith.mulf %36, %36 : vector<64x16xf32>
    %cst_74 = arith.constant dense<0.000000e+00> : vector<16xf32>
    %155 = vector.multi_reduction <add>, %154, %cst_74 [0] : vector<64x16xf32> to vector<16xf32>
    %156 = vector.shape_cast %155 : vector<16xf32> to vector<1x16xf32>
    %157 = arith.addf %153, %156 : vector<1x16xf32>
    %c0_75 = arith.constant 0 : index
    %c0_76 = arith.constant 0 : index
    %158 = vector.load %arg26[%c0_75, %c0_76] : memref<1x16xf32, #tpu.memory_space<vmem>>, vector<1x16xf32>
    tpu.vector_store %arg26[%c0_75, %c0_76], %157 {strides = array<i32>} : memref<1x16xf32, #tpu.memory_space<vmem>>, vector<1x16xf32>,
    %c0_77 = arith.constant 0 : index
    %c0_78 = arith.constant 0 : index
    %159 = vector.load %arg27[%c0_77, %c0_78] : memref<1x16xf32, #tpu.memory_space<vmem>>, vector<1x16xf32>
    %cst_79 = arith.constant dense<0x7F800000> : vector<16xf32>
    %160 = vector.multi_reduction <minimumf>, %36, %cst_79 [0] : vector<64x16xf32> to vector<16xf32>
    %161 = vector.shape_cast %160 : vector<16xf32> to vector<1x16xf32>
    %162 = arith.minimumf %159, %161 : vector<1x16xf32>
    %c0_80 = arith.constant 0 : index
    %c0_81 = arith.constant 0 : index
    %163 = vector.load %arg27[%c0_80, %c0_81] : memref<1x16xf32, #tpu.memory_space<vmem>>, vector<1x16xf32>
    tpu.vector_store %arg27[%c0_80, %c0_81], %162 {strides = array<i32>} : memref<1x16xf32, #tpu.memory_space<vmem>>, vector<1x16xf32>,
    %c0_82 = arith.constant 0 : index
    %c0_83 = arith.constant 0 : index
    %164 = vector.load %arg28[%c0_82, %c0_83] : memref<1x16xf32, #tpu.memory_space<vmem>>, vector<1x16xf32>
    %cst_84 = arith.constant dense<0xFF800000> : vector<16xf32>
    %165 = vector.multi_reduction <maximumf>, %36, %cst_84 [0] : vector<64x16xf32> to vector<16xf32>
    %166 = vector.shape_cast %165 : vector<16xf32> to vector<1x16xf32>
    %167 = arith.maximumf %164, %166 : vector<1x16xf32>
    %c0_85 = arith.constant 0 : index
    %c0_86 = arith.constant 0 : index
    %168 = vector.load %arg28[%c0_85, %c0_86] : memref<1x16xf32, #tpu.memory_space<vmem>>, vector<1x16xf32>
    tpu.vector_store %arg28[%c0_85, %c0_86], %167 {strides = array<i32>} : memref<1x16xf32, #tpu.memory_space<vmem>>, vector<1x16xf32>,
    %c0_i32_87 = arith.constant 0 : i32
    %169 = arith.cmpi eq, %arg1, %c0_i32_87 : i32
    %170 = arith.extui %169 : i1 to i32
    %c0_i32_88 = arith.constant 0 : i32
    %171 = arith.cmpi ne, %170, %c0_i32_88 : i32
    scf.if %171 {
      %c0_106 = arith.constant 0 : index
      %c0_107 = arith.constant 0 : index
      %218 = vector.load %arg25[%c0_106, %c0_107] : memref<1x16xf32, #tpu.memory_space<vmem>>, vector<1x16xf32>
      %cst_108 = arith.constant 1.562500e-02 : f32
      %219 = vector.broadcast %cst_108 : f32 to vector<1x16xf32>
      %220 = arith.mulf %218, %219 : vector<1x16xf32>
      %c0_109 = arith.constant 0 : index
      %c0_110 = arith.constant 0 : index
      %221 = vector.load %arg26[%c0_109, %c0_110] : memref<1x16xf32, #tpu.memory_space<vmem>>, vector<1x16xf32>
      %cst_111 = arith.constant 6.400000e+01 : f32
      %222 = vector.broadcast %cst_111 : f32 to vector<1x16xf32>
      %223 = arith.mulf %222, %220 : vector<1x16xf32>
      %224 = arith.mulf %223, %220 : vector<1x16xf32>
      %225 = arith.subf %221, %224 : vector<1x16xf32>
      %cst_112 = arith.constant 0.0158730168 : f32
      %226 = vector.broadcast %cst_112 : f32 to vector<1x16xf32>
      %227 = arith.mulf %225, %226 : vector<1x16xf32>
      %cst_113 = arith.constant 0.000000e+00 : f32
      %228 = vector.broadcast %cst_113 : f32 to vector<1x16xf32>
      %229 = arith.maximumf %227, %228 : vector<1x16xf32>
      %230 = math.sqrt %229 : vector<1x16xf32>
      %c0_114 = arith.constant 0 : index
      %c0_115 = arith.constant 0 : index
      %c0_116 = arith.constant 0 : index
      %231 = vector.load %arg24[%c0_114, %c0_115, %c0_116] : memref<1x1x64xf32, #tpu.memory_space<vmem>>, vector<1x1x16xf32>
      %232 = vector.shape_cast %231 : vector<1x1x16xf32> to vector<1x16xf32>
      %233 = vector.shape_cast %220 : vector<1x16xf32> to vector<1x1x16xf32>
      tpu.vector_store %arg24[%c0_114, %c0_115, %c0_116], %233 {strides = array<i32>} : memref<1x1x64xf32, #tpu.memory_space<vmem>>, vector<1x1x16xf32>,
      %c0_117 = arith.constant 0 : index
      %c0_118 = arith.constant 0 : index
      %234 = vector.load %arg27[%c0_117, %c0_118] : memref<1x16xf32, #tpu.memory_space<vmem>>, vector<1x16xf32>
      %c0_119 = arith.constant 0 : index
      %c0_120 = arith.constant 0 : index
      %c16 = arith.constant 16 : index
      %235 = vector.load %arg24[%c0_119, %c0_120, %c16] : memref<1x1x64xf32, #tpu.memory_space<vmem>>, vector<1x1x16xf32>
      %236 = vector.shape_cast %235 : vector<1x1x16xf32> to vector<1x16xf32>
      %237 = vector.shape_cast %234 : vector<1x16xf32> to vector<1x1x16xf32>
      tpu.vector_store %arg24[%c0_119, %c0_120, %c16], %237 {strides = array<i32>} : memref<1x1x64xf32, #tpu.memory_space<vmem>>, vector<1x1x16xf32>,
      %c0_121 = arith.constant 0 : index
      %c0_122 = arith.constant 0 : index
      %238 = vector.load %arg28[%c0_121, %c0_122] : memref<1x16xf32, #tpu.memory_space<vmem>>, vector<1x16xf32>
      %c0_123 = arith.constant 0 : index
      %c0_124 = arith.constant 0 : index
      %c32 = arith.constant 32 : index
      %239 = vector.load %arg24[%c0_123, %c0_124, %c32] : memref<1x1x64xf32, #tpu.memory_space<vmem>>, vector<1x1x16xf32>
      %240 = vector.shape_cast %239 : vector<1x1x16xf32> to vector<1x16xf32>
      %241 = vector.shape_cast %238 : vector<1x16xf32> to vector<1x1x16xf32>
      tpu.vector_store %arg24[%c0_123, %c0_124, %c32], %241 {strides = array<i32>} : memref<1x1x64xf32, #tpu.memory_space<vmem>>, vector<1x1x16xf32>,
      %c0_125 = arith.constant 0 : index
      %c0_126 = arith.constant 0 : index
      %c48 = arith.constant 48 : index
      %242 = vector.load %arg24[%c0_125, %c0_126, %c48] : memref<1x1x64xf32, #tpu.memory_space<vmem>>, vector<1x1x16xf32>
      %243 = vector.shape_cast %242 : vector<1x1x16xf32> to vector<1x16xf32>
      %244 = vector.shape_cast %230 : vector<1x16xf32> to vector<1x1x16xf32>
      tpu.vector_store %arg24[%c0_125, %c0_126, %c48], %244 {strides = array<i32>} : memref<1x1x64xf32, #tpu.memory_space<vmem>>, vector<1x1x16xf32>,
    } else {
    }
    %172 = vector.shape_cast %13 : vector<8x1xf32> to vector<1x8x1xf32>
    %cst_89 = arith.constant 0.000000e+00 : f32
    %173 = vector.broadcast %cst_89 : f32 to vector<1x8x1xf32>
    %174 = arith.cmpf ogt, %172, %173 : vector<1x8x1xf32>
    %cst_90 = arith.constant -1.000000e+30 : f32
    %175 = vector.shape_cast %174 : vector<1x8x1xi1> to vector<1x8x1xi1>
    %176 = vector.broadcast %175 : vector<1x8x1xi1> to vector<8x8x32xi1>
    %177 = vector.broadcast %cst_90 : f32 to vector<8x8x32xf32>
    %178 = arith.select %176, %61, %177 : vector<8x8x32xi1>, vector<8x8x32xf32>
    %cst_91 = arith.constant dense<0xFF800000> : vector<8x32xf32>
    %179 = vector.multi_reduction <maximumf>, %178, %cst_91 [1] : vector<8x8x32xf32> to vector<8x32xf32>
    %180 = vector.shape_cast %179 : vector<8x32xf32> to vector<8x1x32xf32>
    %181 = vector.broadcast %180 : vector<8x1x32xf32> to vector<8x8x32xf32>
    %182 = arith.subf %178, %181 : vector<8x8x32xf32>
    %183 = math.exp %182 : vector<8x8x32xf32>
    %cst_92 = arith.constant 0.000000e+00 : f32
    %184 = vector.broadcast %cst_92 : f32 to vector<1x8x1xf32>
    %185 = arith.cmpf ogt, %172, %184 : vector<1x8x1xf32>
    %cst_93 = arith.constant 0.000000e+00 : f32
    %186 = vector.shape_cast %185 : vector<1x8x1xi1> to vector<1x8x1xi1>
    %187 = vector.broadcast %186 : vector<1x8x1xi1> to vector<8x8x32xi1>
    %188 = vector.broadcast %cst_93 : f32 to vector<8x8x32xf32>
    %189 = arith.select %187, %183, %188 : vector<8x8x32xi1>, vector<8x8x32xf32>
    %cst_94 = arith.constant dense<0.000000e+00> : vector<8x32xf32>
    %190 = vector.multi_reduction <add>, %189, %cst_94 [1] : vector<8x8x32xf32> to vector<8x32xf32>
    %191 = vector.shape_cast %190 : vector<8x32xf32> to vector<8x1x32xf32>
    %cst_95 = arith.constant 1.000000e-30 : f32
    %192 = vector.broadcast %cst_95 : f32 to vector<8x1x32xf32>
    %193 = arith.maximumf %191, %192 : vector<8x1x32xf32>
    %194 = vector.broadcast %193 : vector<8x1x32xf32> to vector<8x8x32xf32>
    %195 = arith.divf %189, %194 : vector<8x8x32xf32>
    %196 = vector.shape_cast %6 : vector<8x32xf32> to vector<1x8x32xf32>
    %197 = vector.broadcast %196 : vector<1x8x32xf32> to vector<8x8x32xf32>
    %198 = arith.mulf %195, %197 : vector<8x8x32xf32>
    %cst_96 = arith.constant dense<0.000000e+00> : vector<8x32xf32>
    %199 = vector.multi_reduction <add>, %198, %cst_96 [1] : vector<8x8x32xf32> to vector<8x32xf32>
    %cst_97 = arith.constant 1.000000e+00 : f32
    %200 = vector.broadcast %cst_97 : f32 to vector<1x32xf32>
    %201 = arith.addf %28, %200 : vector<1x32xf32>
    %202 = vector.broadcast %201 : vector<1x32xf32> to vector<8x32xf32>
    %203 = arith.mulf %202, %199 : vector<8x32xf32>
    %204 = vector.broadcast %27 : vector<1x32xf32> to vector<8x32xf32>
    %205 = arith.addf %204, %203 : vector<8x32xf32>
    %c0_98 = arith.constant 0 : index
    %c0_99 = arith.constant 0 : index
    %206 = vector.load %arg12[%c0_98, %c0_99] : memref<32x32xf32, #tpu.memory_space<vmem>>, vector<32x32xf32>
    %207 = arith.truncf %205 : vector<8x32xf32> to vector<8x32xbf16>
    %208 = arith.truncf %206 : vector<32x32xf32> to vector<32x32xbf16>
    %cst_100 = arith.constant dense<0.000000e+00> : vector<8x32xf32>
    %209 = tpu.matmul %207, %208, %cst_100 {dimension_numbers = #tpu.dot_dimension_numbers<[1], [0], [0], [1], [0, 0, 1, 1], [], []>} : vector<8x32xbf16>, vector<32x32xbf16>, vector<8x32xf32> -> vector<8x32xf32>
    %c0_101 = arith.constant 0 : index
    %c0_102 = arith.constant 0 : index
    %210 = vector.load %arg13[%c0_101, %c0_102] : memref<1x32xf32, #tpu.memory_space<vmem>>, vector<1x32xf32>
    %211 = vector.broadcast %210 : vector<1x32xf32> to vector<8x32xf32>
    %212 = arith.addf %209, %211 : vector<8x32xf32>
    %213 = vector.broadcast %16 : vector<8x1xf32> to vector<8x32xf32>
    %214 = arith.mulf %212, %213 : vector<8x32xf32>
    %c0_103 = arith.constant 0 : index
    %c0_104 = arith.constant 0 : index
    %c0_105 = arith.constant 0 : index
    %215 = vector.load %arg23[%c0_103, %c0_104, %c0_105] : memref<1x8x32xf32, #tpu.memory_space<vmem>>, vector<1x8x32xf32>
    %216 = vector.shape_cast %215 : vector<1x8x32xf32> to vector<8x32xf32>
    %217 = vector.shape_cast %214 : vector<8x32xf32> to vector<1x8x32xf32>
    tpu.vector_store %arg23[%c0_103, %c0_104, %c0_105], %217 {strides = array<i32>} : memref<1x8x32xf32, #tpu.memory_space<vmem>>, vector<1x8x32xf32>,
    return
  }
  func.func @transform_0(%arg0: i32, %arg1: i32) -> (i32, i32, i32) {
    %c0_i32 = arith.constant 0 : i32
    %c0_i32_0 = arith.constant 0 : i32
    %c0_i32_1 = arith.constant 0 : i32
    return %arg0, %c0_i32, %c0_i32_0 : i32, i32, i32
  }
  func.func @transform_1(%arg0: i32, %arg1: i32) -> (i32, i32, i32, i32) {
    %c0_i32 = arith.constant 0 : i32
    %c0_i32_0 = arith.constant 0 : i32
    %c0_i32_1 = arith.constant 0 : i32
    return %arg0, %arg1, %c0_i32, %c0_i32_0 : i32, i32, i32, i32
  }
  func.func @transform_2(%arg0: i32, %arg1: i32) -> (i32, i32, i32) {
    %c0_i32 = arith.constant 0 : i32
    %c0_i32_0 = arith.constant 0 : i32
    %c0_i32_1 = arith.constant 0 : i32
    return %arg0, %c0_i32, %c0_i32_0 : i32, i32, i32
  }
  func.func @transform_3(%arg0: i32, %arg1: i32) -> (i32, i32, i32) {
    %c0_i32 = arith.constant 0 : i32
    %c0_i32_0 = arith.constant 0 : i32
    %c0_i32_1 = arith.constant 0 : i32
    return %arg0, %c0_i32, %c0_i32_0 : i32, i32, i32
  }
  func.func @transform_4(%arg0: i32, %arg1: i32) -> (i32, i32) {
    %c0_i32 = arith.constant 0 : i32
    %c0_i32_0 = arith.constant 0 : i32
    %c0_i32_1 = arith.constant 0 : i32
    return %c0_i32, %c0_i32_0 : i32, i32
  }
  func.func @transform_5(%arg0: i32, %arg1: i32) -> (i32, i32) {
    %c0_i32 = arith.constant 0 : i32
    %c0_i32_0 = arith.constant 0 : i32
    %c0_i32_1 = arith.constant 0 : i32
    return %c0_i32, %c0_i32_0 : i32, i32
  }
  func.func @transform_6(%arg0: i32, %arg1: i32) -> (i32, i32) {
    %c0_i32 = arith.constant 0 : i32
    %c0_i32_0 = arith.constant 0 : i32
    %c0_i32_1 = arith.constant 0 : i32
    return %c0_i32, %c0_i32_0 : i32, i32
  }
  func.func @transform_7(%arg0: i32, %arg1: i32) -> (i32, i32) {
    %c0_i32 = arith.constant 0 : i32
    %c0_i32_0 = arith.constant 0 : i32
    %c0_i32_1 = arith.constant 0 : i32
    return %c0_i32, %c0_i32_0 : i32, i32
  }
  func.func @transform_8(%arg0: i32, %arg1: i32) -> (i32, i32) {
    %c0_i32 = arith.constant 0 : i32
    %c0_i32_0 = arith.constant 0 : i32
    %c0_i32_1 = arith.constant 0 : i32
    return %c0_i32, %c0_i32_0 : i32, i32
  }
  func.func @transform_9(%arg0: i32, %arg1: i32) -> (i32, i32) {
    %c0_i32 = arith.constant 0 : i32
    %c0_i32_0 = arith.constant 0 : i32
    %c0_i32_1 = arith.constant 0 : i32
    return %c0_i32, %c0_i32_0 : i32, i32
  }
  func.func @transform_10(%arg0: i32, %arg1: i32) -> (i32, i32) {
    %c0_i32 = arith.constant 0 : i32
    %c0_i32_0 = arith.constant 0 : i32
    %c0_i32_1 = arith.constant 0 : i32
    return %c0_i32, %c0_i32_0 : i32, i32
  }
  func.func @transform_11(%arg0: i32, %arg1: i32) -> (i32, i32) {
    %c0_i32 = arith.constant 0 : i32
    %c0_i32_0 = arith.constant 0 : i32
    %c0_i32_1 = arith.constant 0 : i32
    return %c0_i32, %c0_i32_0 : i32, i32
  }
  func.func @transform_12(%arg0: i32, %arg1: i32) -> (i32, i32) {
    %c0_i32 = arith.constant 0 : i32
    %c0_i32_0 = arith.constant 0 : i32
    %c0_i32_1 = arith.constant 0 : i32
    return %c0_i32, %c0_i32_0 : i32, i32
  }
  func.func @transform_13(%arg0: i32, %arg1: i32) -> (i32, i32) {
    %c0_i32 = arith.constant 0 : i32
    %c0_i32_0 = arith.constant 0 : i32
    %c0_i32_1 = arith.constant 0 : i32
    return %c0_i32, %c0_i32_0 : i32, i32
  }
  func.func @transform_14(%arg0: i32, %arg1: i32) -> (i32, i32) {
    %c0_i32 = arith.constant 0 : i32
    %c0_i32_0 = arith.constant 0 : i32
    %c0_i32_1 = arith.constant 0 : i32
    return %c0_i32, %c0_i32_0 : i32, i32
  }
  func.func @transform_15(%arg0: i32, %arg1: i32) -> (i32, i32) {
    %c0_i32 = arith.constant 0 : i32
    %c0_i32_0 = arith.constant 0 : i32
    %c0_i32_1 = arith.constant 0 : i32
    return %c0_i32, %c0_i32_0 : i32, i32
  }
  func.func @transform_16(%arg0: i32, %arg1: i32) -> (i32, i32) {
    %c0_i32 = arith.constant 0 : i32
    %c0_i32_0 = arith.constant 0 : i32
    %c0_i32_1 = arith.constant 0 : i32
    return %c0_i32, %c0_i32_0 : i32, i32
  }
  func.func @transform_17(%arg0: i32, %arg1: i32) -> (i32, i32) {
    %c0_i32 = arith.constant 0 : i32
    %c0_i32_0 = arith.constant 0 : i32
    %c0_i32_1 = arith.constant 0 : i32
    return %c0_i32, %c0_i32_0 : i32, i32
  }
  func.func @transform_18(%arg0: i32, %arg1: i32) -> (i32, i32) {
    %c0_i32 = arith.constant 0 : i32
    %c0_i32_0 = arith.constant 0 : i32
    %c0_i32_1 = arith.constant 0 : i32
    return %c0_i32, %c0_i32_0 : i32, i32
  }
  func.func @transform_19(%arg0: i32, %arg1: i32) -> (i32, i32) {
    %c0_i32 = arith.constant 0 : i32
    %c0_i32_0 = arith.constant 0 : i32
    %c0_i32_1 = arith.constant 0 : i32
    return %c0_i32, %c0_i32_0 : i32, i32
  }
  func.func @transform_20(%arg0: i32, %arg1: i32) -> (i32, i32, i32, i32) {
    %c0_i32 = arith.constant 0 : i32
    %c0_i32_0 = arith.constant 0 : i32
    %c0_i32_1 = arith.constant 0 : i32
    return %arg0, %arg1, %c0_i32, %c0_i32_0 : i32, i32, i32, i32
  }
  func.func @transform_21(%arg0: i32, %arg1: i32) -> (i32, i32, i32) {
    %c0_i32 = arith.constant 0 : i32
    %c0_i32_0 = arith.constant 0 : i32
    return %arg0, %arg1, %c0_i32 : i32, i32, i32
  }
  func.func @transform_22(%arg0: i32, %arg1: i32) -> (i32, i32, i32) {
    %c0_i32 = arith.constant 0 : i32
    %c0_i32_0 = arith.constant 0 : i32
    %c0_i32_1 = arith.constant 0 : i32
    return %arg0, %c0_i32, %c0_i32_0 : i32, i32, i32
  }
}

module attributes {stable_mosaic.version = 11 : i64} {
  func.func @_ffn_block_kernel(%arg0: i32, %arg1: memref<16x32xf32, #tpu.memory_space<vmem>>, %arg2: memref<16x32xf32, #tpu.memory_space<vmem>>, %arg3: memref<1x32xf32, #tpu.memory_space<vmem>>, %arg4: memref<1x32xf32, #tpu.memory_space<vmem>>, %arg5: memref<32x64xf32, #tpu.memory_space<vmem>>, %arg6: memref<1x64xf32, #tpu.memory_space<vmem>>, %arg7: memref<64x32xf32, #tpu.memory_space<vmem>>, %arg8: memref<1x32xf32, #tpu.memory_space<vmem>>, %arg9: memref<1x32xf32, #tpu.memory_space<vmem>>, %arg10: memref<1x32xf32, #tpu.memory_space<vmem>>, %arg11: memref<16x32xf32, #tpu.memory_space<vmem>>) attributes {dimension_semantics = [#tpu.dimension_semantics<parallel>], iteration_bounds = array<i64: 1>, scalar_prefetch = 0 : i64, scratch_operands = 0 : i64, tpu.core_type = #tpu.core_type<tc>, window_params = [{transform_indices = @transform_0, window_bounds = array<i64: 16, 32>}, {transform_indices = @transform_1, window_bounds = array<i64: 16, 32>}, {pipeline_mode = #tpu.pipeline_mode<synchronous>, transform_indices = @transform_2, window_bounds = array<i64: 1, 32>}, {pipeline_mode = #tpu.pipeline_mode<synchronous>, transform_indices = @transform_3, window_bounds = array<i64: 1, 32>}, {pipeline_mode = #tpu.pipeline_mode<synchronous>, transform_indices = @transform_4, window_bounds = array<i64: 32, 64>}, {pipeline_mode = #tpu.pipeline_mode<synchronous>, transform_indices = @transform_5, window_bounds = array<i64: 1, 64>}, {pipeline_mode = #tpu.pipeline_mode<synchronous>, transform_indices = @transform_6, window_bounds = array<i64: 64, 32>}, {pipeline_mode = #tpu.pipeline_mode<synchronous>, transform_indices = @transform_7, window_bounds = array<i64: 1, 32>}, {pipeline_mode = #tpu.pipeline_mode<synchronous>, transform_indices = @transform_8, window_bounds = array<i64: 1, 32>}, {pipeline_mode = #tpu.pipeline_mode<synchronous>, transform_indices = @transform_9, window_bounds = array<i64: 1, 32>}, {transform_indices = @transform_10, window_bounds = array<i64: 16, 32>}]} {
    %c0 = arith.constant 0 : index
    %c0_0 = arith.constant 0 : index
    %0 = vector.load %arg1[%c0, %c0_0] : memref<16x32xf32, #tpu.memory_space<vmem>>, vector<16x32xf32>
    %c0_1 = arith.constant 0 : index
    %c0_2 = arith.constant 0 : index
    %1 = vector.load %arg2[%c0_1, %c0_2] : memref<16x32xf32, #tpu.memory_space<vmem>>, vector<16x32xf32>
    %2 = arith.addf %0, %1 : vector<16x32xf32>
    %c0_3 = arith.constant 0 : index
    %c0_4 = arith.constant 0 : index
    %3 = vector.load %arg3[%c0_3, %c0_4] : memref<1x32xf32, #tpu.memory_space<vmem>>, vector<1x32xf32>
    %c0_5 = arith.constant 0 : index
    %c0_6 = arith.constant 0 : index
    %4 = vector.load %arg4[%c0_5, %c0_6] : memref<1x32xf32, #tpu.memory_space<vmem>>, vector<1x32xf32>
    %cst = arith.constant dense<0.000000e+00> : vector<16xf32>
    %5 = vector.multi_reduction <add>, %2, %cst [1] : vector<16x32xf32> to vector<16xf32>
    %6 = vector.shape_cast %5 : vector<16xf32> to vector<16x1xf32>
    %cst_7 = arith.constant 3.200000e+01 : f32
    %7 = vector.broadcast %cst_7 : f32 to vector<16x1xf32>
    %8 = arith.divf %6, %7 : vector<16x1xf32>
    %9 = vector.broadcast %8 : vector<16x1xf32> to vector<16x32xf32>
    %10 = arith.subf %2, %9 : vector<16x32xf32>
    %11 = arith.mulf %10, %10 : vector<16x32xf32>
    %cst_8 = arith.constant dense<0.000000e+00> : vector<16xf32>
    %12 = vector.multi_reduction <add>, %11, %cst_8 [1] : vector<16x32xf32> to vector<16xf32>
    %13 = vector.shape_cast %12 : vector<16xf32> to vector<16x1xf32>
    %cst_9 = arith.constant 3.200000e+01 : f32
    %14 = vector.broadcast %cst_9 : f32 to vector<16x1xf32>
    %15 = arith.divf %13, %14 : vector<16x1xf32>
    %cst_10 = arith.constant 9.99999974E-6 : f32
    %16 = vector.broadcast %cst_10 : f32 to vector<16x1xf32>
    %17 = arith.addf %15, %16 : vector<16x1xf32>
    %18 = math.rsqrt %17 : vector<16x1xf32>
    %19 = vector.broadcast %18 : vector<16x1xf32> to vector<16x32xf32>
    %20 = arith.mulf %10, %19 : vector<16x32xf32>
    %21 = vector.broadcast %3 : vector<1x32xf32> to vector<16x32xf32>
    %22 = arith.mulf %20, %21 : vector<16x32xf32>
    %23 = vector.broadcast %4 : vector<1x32xf32> to vector<16x32xf32>
    %24 = arith.addf %22, %23 : vector<16x32xf32>
    %c0_11 = arith.constant 0 : index
    %c0_12 = arith.constant 0 : index
    %25 = vector.load %arg5[%c0_11, %c0_12] : memref<32x64xf32, #tpu.memory_space<vmem>>, vector<32x64xf32>
    %26 = arith.truncf %24 : vector<16x32xf32> to vector<16x32xbf16>
    %27 = arith.truncf %25 : vector<32x64xf32> to vector<32x64xbf16>
    %cst_13 = arith.constant dense<0.000000e+00> : vector<16x64xf32>
    %28 = tpu.matmul %26, %27, %cst_13 {dimension_numbers = #tpu.dot_dimension_numbers<[1], [0], [0], [1], [0, 0, 1, 1], [], []>} : vector<16x32xbf16>, vector<32x64xbf16>, vector<16x64xf32> -> vector<16x64xf32>
    %c0_14 = arith.constant 0 : index
    %c0_15 = arith.constant 0 : index
    %29 = vector.load %arg6[%c0_14, %c0_15] : memref<1x64xf32, #tpu.memory_space<vmem>>, vector<1x64xf32>
    %30 = vector.broadcast %29 : vector<1x64xf32> to vector<16x64xf32>
    %31 = arith.addf %28, %30 : vector<16x64xf32>
    %cst_16 = arith.constant 0.000000e+00 : f32
    %32 = vector.broadcast %cst_16 : f32 to vector<16x64xf32>
    %33 = arith.maximumf %31, %32 : vector<16x64xf32>
    %c0_17 = arith.constant 0 : index
    %c0_18 = arith.constant 0 : index
    %34 = vector.load %arg7[%c0_17, %c0_18] : memref<64x32xf32, #tpu.memory_space<vmem>>, vector<64x32xf32>
    %35 = arith.truncf %33 : vector<16x64xf32> to vector<16x64xbf16>
    %36 = arith.truncf %34 : vector<64x32xf32> to vector<64x32xbf16>
    %cst_19 = arith.constant dense<0.000000e+00> : vector<16x32xf32>
    %37 = tpu.matmul %35, %36, %cst_19 {dimension_numbers = #tpu.dot_dimension_numbers<[1], [0], [0], [1], [0, 0, 1, 1], [], []>} : vector<16x64xbf16>, vector<64x32xbf16>, vector<16x32xf32> -> vector<16x32xf32>
    %c0_20 = arith.constant 0 : index
    %c0_21 = arith.constant 0 : index
    %38 = vector.load %arg8[%c0_20, %c0_21] : memref<1x32xf32, #tpu.memory_space<vmem>>, vector<1x32xf32>
    %39 = vector.broadcast %38 : vector<1x32xf32> to vector<16x32xf32>
    %40 = arith.addf %37, %39 : vector<16x32xf32>
    %41 = arith.addf %24, %40 : vector<16x32xf32>
    %c0_22 = arith.constant 0 : index
    %c0_23 = arith.constant 0 : index
    %42 = vector.load %arg9[%c0_22, %c0_23] : memref<1x32xf32, #tpu.memory_space<vmem>>, vector<1x32xf32>
    %c0_24 = arith.constant 0 : index
    %c0_25 = arith.constant 0 : index
    %43 = vector.load %arg10[%c0_24, %c0_25] : memref<1x32xf32, #tpu.memory_space<vmem>>, vector<1x32xf32>
    %cst_26 = arith.constant dense<0.000000e+00> : vector<16xf32>
    %44 = vector.multi_reduction <add>, %41, %cst_26 [1] : vector<16x32xf32> to vector<16xf32>
    %45 = vector.shape_cast %44 : vector<16xf32> to vector<16x1xf32>
    %cst_27 = arith.constant 3.200000e+01 : f32
    %46 = vector.broadcast %cst_27 : f32 to vector<16x1xf32>
    %47 = arith.divf %45, %46 : vector<16x1xf32>
    %48 = vector.broadcast %47 : vector<16x1xf32> to vector<16x32xf32>
    %49 = arith.subf %41, %48 : vector<16x32xf32>
    %50 = arith.mulf %49, %49 : vector<16x32xf32>
    %cst_28 = arith.constant dense<0.000000e+00> : vector<16xf32>
    %51 = vector.multi_reduction <add>, %50, %cst_28 [1] : vector<16x32xf32> to vector<16xf32>
    %52 = vector.shape_cast %51 : vector<16xf32> to vector<16x1xf32>
    %cst_29 = arith.constant 3.200000e+01 : f32
    %53 = vector.broadcast %cst_29 : f32 to vector<16x1xf32>
    %54 = arith.divf %52, %53 : vector<16x1xf32>
    %cst_30 = arith.constant 9.99999974E-6 : f32
    %55 = vector.broadcast %cst_30 : f32 to vector<16x1xf32>
    %56 = arith.addf %54, %55 : vector<16x1xf32>
    %57 = math.rsqrt %56 : vector<16x1xf32>
    %58 = vector.broadcast %57 : vector<16x1xf32> to vector<16x32xf32>
    %59 = arith.mulf %49, %58 : vector<16x32xf32>
    %60 = vector.broadcast %42 : vector<1x32xf32> to vector<16x32xf32>
    %61 = arith.mulf %59, %60 : vector<16x32xf32>
    %62 = vector.broadcast %43 : vector<1x32xf32> to vector<16x32xf32>
    %63 = arith.addf %61, %62 : vector<16x32xf32>
    %c0_31 = arith.constant 0 : index
    %c0_32 = arith.constant 0 : index
    %64 = vector.load %arg11[%c0_31, %c0_32] : memref<16x32xf32, #tpu.memory_space<vmem>>, vector<16x32xf32>
    tpu.vector_store %arg11[%c0_31, %c0_32], %63 {strides = array<i32>} : memref<16x32xf32, #tpu.memory_space<vmem>>, vector<16x32xf32>,
    return
  }
  func.func @transform_0(%arg0: i32) -> (i32, i32) {
    %c0_i32 = arith.constant 0 : i32
    %c0_i32_0 = arith.constant 0 : i32
    return %arg0, %c0_i32 : i32, i32
  }
  func.func @transform_1(%arg0: i32) -> (i32, i32) {
    %c0_i32 = arith.constant 0 : i32
    %c0_i32_0 = arith.constant 0 : i32
    return %arg0, %c0_i32 : i32, i32
  }
  func.func @transform_2(%arg0: i32) -> (i32, i32) {
    %c0_i32 = arith.constant 0 : i32
    %c0_i32_0 = arith.constant 0 : i32
    %c0_i32_1 = arith.constant 0 : i32
    return %c0_i32, %c0_i32_0 : i32, i32
  }
  func.func @transform_3(%arg0: i32) -> (i32, i32) {
    %c0_i32 = arith.constant 0 : i32
    %c0_i32_0 = arith.constant 0 : i32
    %c0_i32_1 = arith.constant 0 : i32
    return %c0_i32, %c0_i32_0 : i32, i32
  }
  func.func @transform_4(%arg0: i32) -> (i32, i32) {
    %c0_i32 = arith.constant 0 : i32
    %c0_i32_0 = arith.constant 0 : i32
    %c0_i32_1 = arith.constant 0 : i32
    return %c0_i32, %c0_i32_0 : i32, i32
  }
  func.func @transform_5(%arg0: i32) -> (i32, i32) {
    %c0_i32 = arith.constant 0 : i32
    %c0_i32_0 = arith.constant 0 : i32
    %c0_i32_1 = arith.constant 0 : i32
    return %c0_i32, %c0_i32_0 : i32, i32
  }
  func.func @transform_6(%arg0: i32) -> (i32, i32) {
    %c0_i32 = arith.constant 0 : i32
    %c0_i32_0 = arith.constant 0 : i32
    %c0_i32_1 = arith.constant 0 : i32
    return %c0_i32, %c0_i32_0 : i32, i32
  }
  func.func @transform_7(%arg0: i32) -> (i32, i32) {
    %c0_i32 = arith.constant 0 : i32
    %c0_i32_0 = arith.constant 0 : i32
    %c0_i32_1 = arith.constant 0 : i32
    return %c0_i32, %c0_i32_0 : i32, i32
  }
  func.func @transform_8(%arg0: i32) -> (i32, i32) {
    %c0_i32 = arith.constant 0 : i32
    %c0_i32_0 = arith.constant 0 : i32
    %c0_i32_1 = arith.constant 0 : i32
    return %c0_i32, %c0_i32_0 : i32, i32
  }
  func.func @transform_9(%arg0: i32) -> (i32, i32) {
    %c0_i32 = arith.constant 0 : i32
    %c0_i32_0 = arith.constant 0 : i32
    %c0_i32_1 = arith.constant 0 : i32
    return %c0_i32, %c0_i32_0 : i32, i32
  }
  func.func @transform_10(%arg0: i32) -> (i32, i32) {
    %c0_i32 = arith.constant 0 : i32
    %c0_i32_0 = arith.constant 0 : i32
    return %arg0, %c0_i32 : i32, i32
  }
}

module attributes {stable_mosaic.version = 11 : i64} {
  func.func @_y_block_kernel(%arg0: i32, %arg1: memref<2x16xf32, #tpu.memory_space<vmem>>, %arg2: memref<2x128xf32, #tpu.memory_space<vmem>>, %arg3: memref<2x64xf32, #tpu.memory_space<vmem>>, %arg4: memref<16x16xf32, #tpu.memory_space<vmem>>, %arg5: memref<1x16xf32, #tpu.memory_space<vmem>>, %arg6: memref<128x16xf32, #tpu.memory_space<vmem>>, %arg7: memref<1x16xf32, #tpu.memory_space<vmem>>, %arg8: memref<64x16xf32, #tpu.memory_space<vmem>>, %arg9: memref<1x16xf32, #tpu.memory_space<vmem>>, %arg10: memref<16x16xf32, #tpu.memory_space<vmem>>, %arg11: memref<1x16xf32, #tpu.memory_space<vmem>>, %arg12: memref<16x16xf32, #tpu.memory_space<vmem>>, %arg13: memref<1x16xf32, #tpu.memory_space<vmem>>, %arg14: memref<1x16xf32, #tpu.memory_space<vmem>>, %arg15: memref<1x16xf32, #tpu.memory_space<vmem>>, %arg16: memref<16x64xf32, #tpu.memory_space<vmem>>, %arg17: memref<1x64xf32, #tpu.memory_space<vmem>>, %arg18: memref<64x16xf32, #tpu.memory_space<vmem>>, %arg19: memref<1x16xf32, #tpu.memory_space<vmem>>, %arg20: memref<1x16xf32, #tpu.memory_space<vmem>>, %arg21: memref<1x16xf32, #tpu.memory_space<vmem>>, %arg22: memref<2x16xf32, #tpu.memory_space<vmem>>) attributes {dimension_semantics = [#tpu.dimension_semantics<arbitrary>], iteration_bounds = array<i64: 1>, scalar_prefetch = 0 : i64, scratch_operands = 0 : i64, tpu.core_type = #tpu.core_type<tc>, window_params = [{pipeline_mode = #tpu.pipeline_mode<synchronous>, transform_indices = @transform_0, window_bounds = array<i64: 2, 16>}, {pipeline_mode = #tpu.pipeline_mode<synchronous>, transform_indices = @transform_1, window_bounds = array<i64: 2, 128>}, {pipeline_mode = #tpu.pipeline_mode<synchronous>, transform_indices = @transform_2, window_bounds = array<i64: 2, 64>}, {pipeline_mode = #tpu.pipeline_mode<synchronous>, transform_indices = @transform_3, window_bounds = array<i64: 16, 16>}, {pipeline_mode = #tpu.pipeline_mode<synchronous>, transform_indices = @transform_4, window_bounds = array<i64: 1, 16>}, {pipeline_mode = #tpu.pipeline_mode<synchronous>, transform_indices = @transform_5, window_bounds = array<i64: 128, 16>}, {pipeline_mode = #tpu.pipeline_mode<synchronous>, transform_indices = @transform_6, window_bounds = array<i64: 1, 16>}, {pipeline_mode = #tpu.pipeline_mode<synchronous>, transform_indices = @transform_7, window_bounds = array<i64: 64, 16>}, {pipeline_mode = #tpu.pipeline_mode<synchronous>, transform_indices = @transform_8, window_bounds = array<i64: 1, 16>}, {pipeline_mode = #tpu.pipeline_mode<synchronous>, transform_indices = @transform_9, window_bounds = array<i64: 16, 16>}, {pipeline_mode = #tpu.pipeline_mode<synchronous>, transform_indices = @transform_10, window_bounds = array<i64: 1, 16>}, {pipeline_mode = #tpu.pipeline_mode<synchronous>, transform_indices = @transform_11, window_bounds = array<i64: 16, 16>}, {pipeline_mode = #tpu.pipeline_mode<synchronous>, transform_indices = @transform_12, window_bounds = array<i64: 1, 16>}, {pipeline_mode = #tpu.pipeline_mode<synchronous>, transform_indices = @transform_13, window_bounds = array<i64: 1, 16>}, {pipeline_mode = #tpu.pipeline_mode<synchronous>, transform_indices = @transform_14, window_bounds = array<i64: 1, 16>}, {pipeline_mode = #tpu.pipeline_mode<synchronous>, transform_indices = @transform_15, window_bounds = array<i64: 16, 64>}, {pipeline_mode = #tpu.pipeline_mode<synchronous>, transform_indices = @transform_16, window_bounds = array<i64: 1, 64>}, {pipeline_mode = #tpu.pipeline_mode<synchronous>, transform_indices = @transform_17, window_bounds = array<i64: 64, 16>}, {pipeline_mode = #tpu.pipeline_mode<synchronous>, transform_indices = @transform_18, window_bounds = array<i64: 1, 16>}, {pipeline_mode = #tpu.pipeline_mode<synchronous>, transform_indices = @transform_19, window_bounds = array<i64: 1, 16>}, {pipeline_mode = #tpu.pipeline_mode<synchronous>, transform_indices = @transform_20, window_bounds = array<i64: 1, 16>}, {pipeline_mode = #tpu.pipeline_mode<synchronous>, transform_indices = @transform_21, window_bounds = array<i64: 2, 16>}]} {
    %c0 = arith.constant 0 : index
    %c0_0 = arith.constant 0 : index
    %0 = vector.load %arg1[%c0, %c0_0] : memref<2x16xf32, #tpu.memory_space<vmem>>, vector<2x16xf32>
    %c0_1 = arith.constant 0 : index
    %c0_2 = arith.constant 0 : index
    %1 = vector.load %arg4[%c0_1, %c0_2] : memref<16x16xf32, #tpu.memory_space<vmem>>, vector<16x16xf32>
    %2 = arith.truncf %0 : vector<2x16xf32> to vector<2x16xbf16>
    %3 = arith.truncf %1 : vector<16x16xf32> to vector<16x16xbf16>
    %cst = arith.constant dense<0.000000e+00> : vector<2x16xf32>
    %4 = tpu.matmul %2, %3, %cst {dimension_numbers = #tpu.dot_dimension_numbers<[1], [0], [0], [1], [0, 0, 1, 1], [], []>} : vector<2x16xbf16>, vector<16x16xbf16>, vector<2x16xf32> -> vector<2x16xf32>
    %c0_3 = arith.constant 0 : index
    %c0_4 = arith.constant 0 : index
    %5 = vector.load %arg5[%c0_3, %c0_4] : memref<1x16xf32, #tpu.memory_space<vmem>>, vector<1x16xf32>
    %6 = vector.broadcast %5 : vector<1x16xf32> to vector<2x16xf32>
    %7 = arith.addf %4, %6 : vector<2x16xf32>
    %c0_5 = arith.constant 0 : index
    %c0_6 = arith.constant 0 : index
    %8 = vector.load %arg2[%c0_5, %c0_6] : memref<2x128xf32, #tpu.memory_space<vmem>>, vector<2x128xf32>
    %c0_7 = arith.constant 0 : index
    %c0_8 = arith.constant 0 : index
    %9 = vector.load %arg6[%c0_7, %c0_8] : memref<128x16xf32, #tpu.memory_space<vmem>>, vector<128x16xf32>
    %10 = arith.truncf %8 : vector<2x128xf32> to vector<2x128xbf16>
    %11 = arith.truncf %9 : vector<128x16xf32> to vector<128x16xbf16>
    %cst_9 = arith.constant dense<0.000000e+00> : vector<2x16xf32>
    %12 = tpu.matmul %10, %11, %cst_9 {dimension_numbers = #tpu.dot_dimension_numbers<[1], [0], [0], [1], [0, 0, 1, 1], [], []>} : vector<2x128xbf16>, vector<128x16xbf16>, vector<2x16xf32> -> vector<2x16xf32>
    %13 = arith.addf %7, %12 : vector<2x16xf32>
    %c0_10 = arith.constant 0 : index
    %c0_11 = arith.constant 0 : index
    %14 = vector.load %arg7[%c0_10, %c0_11] : memref<1x16xf32, #tpu.memory_space<vmem>>, vector<1x16xf32>
    %15 = vector.broadcast %14 : vector<1x16xf32> to vector<2x16xf32>
    %16 = arith.addf %13, %15 : vector<2x16xf32>
    %c0_12 = arith.constant 0 : index
    %c0_13 = arith.constant 0 : index
    %17 = vector.load %arg3[%c0_12, %c0_13] : memref<2x64xf32, #tpu.memory_space<vmem>>, vector<2x64xf32>
    %c0_14 = arith.constant 0 : index
    %c0_15 = arith.constant 0 : index
    %18 = vector.load %arg8[%c0_14, %c0_15] : memref<64x16xf32, #tpu.memory_space<vmem>>, vector<64x16xf32>
    %19 = arith.truncf %17 : vector<2x64xf32> to vector<2x64xbf16>
    %20 = arith.truncf %18 : vector<64x16xf32> to vector<64x16xbf16>
    %cst_16 = arith.constant dense<0.000000e+00> : vector<2x16xf32>
    %21 = tpu.matmul %19, %20, %cst_16 {dimension_numbers = #tpu.dot_dimension_numbers<[1], [0], [0], [1], [0, 0, 1, 1], [], []>} : vector<2x64xbf16>, vector<64x16xbf16>, vector<2x16xf32> -> vector<2x16xf32>
    %22 = arith.addf %16, %21 : vector<2x16xf32>
    %c0_17 = arith.constant 0 : index
    %c0_18 = arith.constant 0 : index
    %23 = vector.load %arg9[%c0_17, %c0_18] : memref<1x16xf32, #tpu.memory_space<vmem>>, vector<1x16xf32>
    %24 = vector.broadcast %23 : vector<1x16xf32> to vector<2x16xf32>
    %25 = arith.addf %22, %24 : vector<2x16xf32>
    %c0_19 = arith.constant 0 : index
    %c0_20 = arith.constant 0 : index
    %26 = vector.load %arg10[%c0_19, %c0_20] : memref<16x16xf32, #tpu.memory_space<vmem>>, vector<16x16xf32>
    %27 = arith.truncf %25 : vector<2x16xf32> to vector<2x16xbf16>
    %28 = arith.truncf %26 : vector<16x16xf32> to vector<16x16xbf16>
    %cst_21 = arith.constant dense<0.000000e+00> : vector<2x16xf32>
    %29 = tpu.matmul %27, %28, %cst_21 {dimension_numbers = #tpu.dot_dimension_numbers<[1], [0], [0], [1], [0, 0, 1, 1], [], []>} : vector<2x16xbf16>, vector<16x16xbf16>, vector<2x16xf32> -> vector<2x16xf32>
    %c0_22 = arith.constant 0 : index
    %c0_23 = arith.constant 0 : index
    %30 = vector.load %arg11[%c0_22, %c0_23] : memref<1x16xf32, #tpu.memory_space<vmem>>, vector<1x16xf32>
    %31 = vector.broadcast %30 : vector<1x16xf32> to vector<2x16xf32>
    %32 = arith.addf %29, %31 : vector<2x16xf32>
    %cst_24 = arith.constant 0.000000e+00 : f32
    %33 = vector.broadcast %cst_24 : f32 to vector<2x16xf32>
    %34 = arith.maximumf %32, %33 : vector<2x16xf32>
    %c0_25 = arith.constant 0 : index
    %c0_26 = arith.constant 0 : index
    %35 = vector.load %arg12[%c0_25, %c0_26] : memref<16x16xf32, #tpu.memory_space<vmem>>, vector<16x16xf32>
    %36 = arith.truncf %34 : vector<2x16xf32> to vector<2x16xbf16>
    %37 = arith.truncf %35 : vector<16x16xf32> to vector<16x16xbf16>
    %cst_27 = arith.constant dense<0.000000e+00> : vector<2x16xf32>
    %38 = tpu.matmul %36, %37, %cst_27 {dimension_numbers = #tpu.dot_dimension_numbers<[1], [0], [0], [1], [0, 0, 1, 1], [], []>} : vector<2x16xbf16>, vector<16x16xbf16>, vector<2x16xf32> -> vector<2x16xf32>
    %c0_28 = arith.constant 0 : index
    %c0_29 = arith.constant 0 : index
    %39 = vector.load %arg13[%c0_28, %c0_29] : memref<1x16xf32, #tpu.memory_space<vmem>>, vector<1x16xf32>
    %40 = vector.broadcast %39 : vector<1x16xf32> to vector<2x16xf32>
    %41 = arith.addf %38, %40 : vector<2x16xf32>
    %42 = arith.addf %0, %41 : vector<2x16xf32>
    %c0_30 = arith.constant 0 : index
    %c0_31 = arith.constant 0 : index
    %43 = vector.load %arg14[%c0_30, %c0_31] : memref<1x16xf32, #tpu.memory_space<vmem>>, vector<1x16xf32>
    %c0_32 = arith.constant 0 : index
    %c0_33 = arith.constant 0 : index
    %44 = vector.load %arg15[%c0_32, %c0_33] : memref<1x16xf32, #tpu.memory_space<vmem>>, vector<1x16xf32>
    %cst_34 = arith.constant dense<0.000000e+00> : vector<2xf32>
    %45 = vector.multi_reduction <add>, %42, %cst_34 [1] : vector<2x16xf32> to vector<2xf32>
    %46 = vector.shape_cast %45 : vector<2xf32> to vector<2x1xf32>
    %cst_35 = arith.constant 1.600000e+01 : f32
    %47 = vector.broadcast %cst_35 : f32 to vector<2x1xf32>
    %48 = arith.divf %46, %47 : vector<2x1xf32>
    %49 = vector.broadcast %48 : vector<2x1xf32> to vector<2x16xf32>
    %50 = arith.subf %42, %49 : vector<2x16xf32>
    %51 = arith.mulf %50, %50 : vector<2x16xf32>
    %cst_36 = arith.constant dense<0.000000e+00> : vector<2xf32>
    %52 = vector.multi_reduction <add>, %51, %cst_36 [1] : vector<2x16xf32> to vector<2xf32>
    %53 = vector.shape_cast %52 : vector<2xf32> to vector<2x1xf32>
    %cst_37 = arith.constant 1.600000e+01 : f32
    %54 = vector.broadcast %cst_37 : f32 to vector<2x1xf32>
    %55 = arith.divf %53, %54 : vector<2x1xf32>
    %cst_38 = arith.constant 9.99999974E-6 : f32
    %56 = vector.broadcast %cst_38 : f32 to vector<2x1xf32>
    %57 = arith.addf %55, %56 : vector<2x1xf32>
    %58 = math.rsqrt %57 : vector<2x1xf32>
    %59 = vector.broadcast %58 : vector<2x1xf32> to vector<2x16xf32>
    %60 = arith.mulf %50, %59 : vector<2x16xf32>
    %61 = vector.broadcast %43 : vector<1x16xf32> to vector<2x16xf32>
    %62 = arith.mulf %60, %61 : vector<2x16xf32>
    %63 = vector.broadcast %44 : vector<1x16xf32> to vector<2x16xf32>
    %64 = arith.addf %62, %63 : vector<2x16xf32>
    %c0_39 = arith.constant 0 : index
    %c0_40 = arith.constant 0 : index
    %65 = vector.load %arg16[%c0_39, %c0_40] : memref<16x64xf32, #tpu.memory_space<vmem>>, vector<16x64xf32>
    %66 = arith.truncf %64 : vector<2x16xf32> to vector<2x16xbf16>
    %67 = arith.truncf %65 : vector<16x64xf32> to vector<16x64xbf16>
    %cst_41 = arith.constant dense<0.000000e+00> : vector<2x64xf32>
    %68 = tpu.matmul %66, %67, %cst_41 {dimension_numbers = #tpu.dot_dimension_numbers<[1], [0], [0], [1], [0, 0, 1, 1], [], []>} : vector<2x16xbf16>, vector<16x64xbf16>, vector<2x64xf32> -> vector<2x64xf32>
    %c0_42 = arith.constant 0 : index
    %c0_43 = arith.constant 0 : index
    %69 = vector.load %arg17[%c0_42, %c0_43] : memref<1x64xf32, #tpu.memory_space<vmem>>, vector<1x64xf32>
    %70 = vector.broadcast %69 : vector<1x64xf32> to vector<2x64xf32>
    %71 = arith.addf %68, %70 : vector<2x64xf32>
    %cst_44 = arith.constant 0.000000e+00 : f32
    %72 = vector.broadcast %cst_44 : f32 to vector<2x64xf32>
    %73 = arith.maximumf %71, %72 : vector<2x64xf32>
    %c0_45 = arith.constant 0 : index
    %c0_46 = arith.constant 0 : index
    %74 = vector.load %arg18[%c0_45, %c0_46] : memref<64x16xf32, #tpu.memory_space<vmem>>, vector<64x16xf32>
    %75 = arith.truncf %73 : vector<2x64xf32> to vector<2x64xbf16>
    %76 = arith.truncf %74 : vector<64x16xf32> to vector<64x16xbf16>
    %cst_47 = arith.constant dense<0.000000e+00> : vector<2x16xf32>
    %77 = tpu.matmul %75, %76, %cst_47 {dimension_numbers = #tpu.dot_dimension_numbers<[1], [0], [0], [1], [0, 0, 1, 1], [], []>} : vector<2x64xbf16>, vector<64x16xbf16>, vector<2x16xf32> -> vector<2x16xf32>
    %c0_48 = arith.constant 0 : index
    %c0_49 = arith.constant 0 : index
    %78 = vector.load %arg19[%c0_48, %c0_49] : memref<1x16xf32, #tpu.memory_space<vmem>>, vector<1x16xf32>
    %79 = vector.broadcast %78 : vector<1x16xf32> to vector<2x16xf32>
    %80 = arith.addf %77, %79 : vector<2x16xf32>
    %81 = arith.addf %64, %80 : vector<2x16xf32>
    %c0_50 = arith.constant 0 : index
    %c0_51 = arith.constant 0 : index
    %82 = vector.load %arg20[%c0_50, %c0_51] : memref<1x16xf32, #tpu.memory_space<vmem>>, vector<1x16xf32>
    %c0_52 = arith.constant 0 : index
    %c0_53 = arith.constant 0 : index
    %83 = vector.load %arg21[%c0_52, %c0_53] : memref<1x16xf32, #tpu.memory_space<vmem>>, vector<1x16xf32>
    %cst_54 = arith.constant dense<0.000000e+00> : vector<2xf32>
    %84 = vector.multi_reduction <add>, %81, %cst_54 [1] : vector<2x16xf32> to vector<2xf32>
    %85 = vector.shape_cast %84 : vector<2xf32> to vector<2x1xf32>
    %cst_55 = arith.constant 1.600000e+01 : f32
    %86 = vector.broadcast %cst_55 : f32 to vector<2x1xf32>
    %87 = arith.divf %85, %86 : vector<2x1xf32>
    %88 = vector.broadcast %87 : vector<2x1xf32> to vector<2x16xf32>
    %89 = arith.subf %81, %88 : vector<2x16xf32>
    %90 = arith.mulf %89, %89 : vector<2x16xf32>
    %cst_56 = arith.constant dense<0.000000e+00> : vector<2xf32>
    %91 = vector.multi_reduction <add>, %90, %cst_56 [1] : vector<2x16xf32> to vector<2xf32>
    %92 = vector.shape_cast %91 : vector<2xf32> to vector<2x1xf32>
    %cst_57 = arith.constant 1.600000e+01 : f32
    %93 = vector.broadcast %cst_57 : f32 to vector<2x1xf32>
    %94 = arith.divf %92, %93 : vector<2x1xf32>
    %cst_58 = arith.constant 9.99999974E-6 : f32
    %95 = vector.broadcast %cst_58 : f32 to vector<2x1xf32>
    %96 = arith.addf %94, %95 : vector<2x1xf32>
    %97 = math.rsqrt %96 : vector<2x1xf32>
    %98 = vector.broadcast %97 : vector<2x1xf32> to vector<2x16xf32>
    %99 = arith.mulf %89, %98 : vector<2x16xf32>
    %100 = vector.broadcast %82 : vector<1x16xf32> to vector<2x16xf32>
    %101 = arith.mulf %99, %100 : vector<2x16xf32>
    %102 = vector.broadcast %83 : vector<1x16xf32> to vector<2x16xf32>
    %103 = arith.addf %101, %102 : vector<2x16xf32>
    %c0_59 = arith.constant 0 : index
    %c0_60 = arith.constant 0 : index
    %104 = vector.load %arg22[%c0_59, %c0_60] : memref<2x16xf32, #tpu.memory_space<vmem>>, vector<2x16xf32>
    tpu.vector_store %arg22[%c0_59, %c0_60], %103 {strides = array<i32>} : memref<2x16xf32, #tpu.memory_space<vmem>>, vector<2x16xf32>,
    return
  }
  func.func @transform_0(%arg0: i32) -> (i32, i32) {
    %c0_i32 = arith.constant 0 : i32
    %c0_i32_0 = arith.constant 0 : i32
    %c0_i32_1 = arith.constant 0 : i32
    return %c0_i32, %c0_i32_0 : i32, i32
  }
  func.func @transform_1(%arg0: i32) -> (i32, i32) {
    %c0_i32 = arith.constant 0 : i32
    %c0_i32_0 = arith.constant 0 : i32
    %c0_i32_1 = arith.constant 0 : i32
    return %c0_i32, %c0_i32_0 : i32, i32
  }
  func.func @transform_2(%arg0: i32) -> (i32, i32) {
    %c0_i32 = arith.constant 0 : i32
    %c0_i32_0 = arith.constant 0 : i32
    %c0_i32_1 = arith.constant 0 : i32
    return %c0_i32, %c0_i32_0 : i32, i32
  }
  func.func @transform_3(%arg0: i32) -> (i32, i32) {
    %c0_i32 = arith.constant 0 : i32
    %c0_i32_0 = arith.constant 0 : i32
    %c0_i32_1 = arith.constant 0 : i32
    return %c0_i32, %c0_i32_0 : i32, i32
  }
  func.func @transform_4(%arg0: i32) -> (i32, i32) {
    %c0_i32 = arith.constant 0 : i32
    %c0_i32_0 = arith.constant 0 : i32
    %c0_i32_1 = arith.constant 0 : i32
    return %c0_i32, %c0_i32_0 : i32, i32
  }
  func.func @transform_5(%arg0: i32) -> (i32, i32) {
    %c0_i32 = arith.constant 0 : i32
    %c0_i32_0 = arith.constant 0 : i32
    %c0_i32_1 = arith.constant 0 : i32
    return %c0_i32, %c0_i32_0 : i32, i32
  }
  func.func @transform_6(%arg0: i32) -> (i32, i32) {
    %c0_i32 = arith.constant 0 : i32
    %c0_i32_0 = arith.constant 0 : i32
    %c0_i32_1 = arith.constant 0 : i32
    return %c0_i32, %c0_i32_0 : i32, i32
  }
  func.func @transform_7(%arg0: i32) -> (i32, i32) {
    %c0_i32 = arith.constant 0 : i32
    %c0_i32_0 = arith.constant 0 : i32
    %c0_i32_1 = arith.constant 0 : i32
    return %c0_i32, %c0_i32_0 : i32, i32
  }
  func.func @transform_8(%arg0: i32) -> (i32, i32) {
    %c0_i32 = arith.constant 0 : i32
    %c0_i32_0 = arith.constant 0 : i32
    %c0_i32_1 = arith.constant 0 : i32
    return %c0_i32, %c0_i32_0 : i32, i32
  }
  func.func @transform_9(%arg0: i32) -> (i32, i32) {
    %c0_i32 = arith.constant 0 : i32
    %c0_i32_0 = arith.constant 0 : i32
    %c0_i32_1 = arith.constant 0 : i32
    return %c0_i32, %c0_i32_0 : i32, i32
  }
  func.func @transform_10(%arg0: i32) -> (i32, i32) {
    %c0_i32 = arith.constant 0 : i32
    %c0_i32_0 = arith.constant 0 : i32
    %c0_i32_1 = arith.constant 0 : i32
    return %c0_i32, %c0_i32_0 : i32, i32
  }
  func.func @transform_11(%arg0: i32) -> (i32, i32) {
    %c0_i32 = arith.constant 0 : i32
    %c0_i32_0 = arith.constant 0 : i32
    %c0_i32_1 = arith.constant 0 : i32
    return %c0_i32, %c0_i32_0 : i32, i32
  }
  func.func @transform_12(%arg0: i32) -> (i32, i32) {
    %c0_i32 = arith.constant 0 : i32
    %c0_i32_0 = arith.constant 0 : i32
    %c0_i32_1 = arith.constant 0 : i32
    return %c0_i32, %c0_i32_0 : i32, i32
  }
  func.func @transform_13(%arg0: i32) -> (i32, i32) {
    %c0_i32 = arith.constant 0 : i32
    %c0_i32_0 = arith.constant 0 : i32
    %c0_i32_1 = arith.constant 0 : i32
    return %c0_i32, %c0_i32_0 : i32, i32
  }
  func.func @transform_14(%arg0: i32) -> (i32, i32) {
    %c0_i32 = arith.constant 0 : i32
    %c0_i32_0 = arith.constant 0 : i32
    %c0_i32_1 = arith.constant 0 : i32
    return %c0_i32, %c0_i32_0 : i32, i32
  }
  func.func @transform_15(%arg0: i32) -> (i32, i32) {
    %c0_i32 = arith.constant 0 : i32
    %c0_i32_0 = arith.constant 0 : i32
    %c0_i32_1 = arith.constant 0 : i32
    return %c0_i32, %c0_i32_0 : i32, i32
  }
  func.func @transform_16(%arg0: i32) -> (i32, i32) {
    %c0_i32 = arith.constant 0 : i32
    %c0_i32_0 = arith.constant 0 : i32
    %c0_i32_1 = arith.constant 0 : i32
    return %c0_i32, %c0_i32_0 : i32, i32
  }
  func.func @transform_17(%arg0: i32) -> (i32, i32) {
    %c0_i32 = arith.constant 0 : i32
    %c0_i32_0 = arith.constant 0 : i32
    %c0_i32_1 = arith.constant 0 : i32
    return %c0_i32, %c0_i32_0 : i32, i32
  }
  func.func @transform_18(%arg0: i32) -> (i32, i32) {
    %c0_i32 = arith.constant 0 : i32
    %c0_i32_0 = arith.constant 0 : i32
    %c0_i32_1 = arith.constant 0 : i32
    return %c0_i32, %c0_i32_0 : i32, i32
  }
  func.func @transform_19(%arg0: i32) -> (i32, i32) {
    %c0_i32 = arith.constant 0 : i32
    %c0_i32_0 = arith.constant 0 : i32
    %c0_i32_1 = arith.constant 0 : i32
    return %c0_i32, %c0_i32_0 : i32, i32
  }
  func.func @transform_20(%arg0: i32) -> (i32, i32) {
    %c0_i32 = arith.constant 0 : i32
    %c0_i32_0 = arith.constant 0 : i32
    %c0_i32_1 = arith.constant 0 : i32
    return %c0_i32, %c0_i32_0 : i32, i32
  }
  func.func @transform_21(%arg0: i32) -> (i32, i32) {
    %c0_i32 = arith.constant 0 : i32
    %c0_i32_0 = arith.constant 0 : i32
    %c0_i32_1 = arith.constant 0 : i32
    return %c0_i32, %c0_i32_0 : i32, i32
  }
}

</mosaic_0001>

<llo_original>
// kernel: xey_transformer_layer.4
$region0: #{xey_transformer_layer.4}
  #allocation0 [shape = 'u32[]', space=smem, size = 0x4, offset = 0x4, fixed_abs, tag = 'smem constant byte address 0x4 - core index']
  #allocation1 [shape = 'u32[144,128]{1,0:T(1,128)}', space=vmem, size = 0x12000, scoped, tag = 'internal scratch']
  %s0 = inlined_call_operand.vmem [shape: f32[2,8,32], index: 0, kind: input, shape index: {}]
  %s1 = inlined_call_operand.vmem [shape: f32[2,8,1], index: 1, kind: input, shape index: {}]
  %s2 = inlined_call_operand.vmem [shape: f32[32,96], index: 2, kind: input, shape index: {}]
  %s3 = inlined_call_operand.vmem [shape: f32[1,96], index: 3, kind: input, shape index: {}]
  %s4 = inlined_call_operand.vmem [shape: f32[2,8,96], index: 4, kind: output, shape index: {0}]
  %s5 = inlined_call_operand.vmem [shape: f32[2,1,128], index: 5, kind: output, shape index: {1}]
  %6 = xla_tuple %s4, %s5
  %s7 = sld [smem:[#allocation0]]
  $region57: #{xey_transformer_layer.4} parent=0
    _
  %s9 = ssub.s32 1, %s7
  %s10 = scalar_select 0, %s9, %s7
  loop: start=0, step=1, limit=4
  $region2: #{xey_transformer_layer.4} parent=0 // loop_pre_header
    _
  $region3: #{xey_transformer_layer.4} parent=0 // loop_header
    %s12 = sphi 0, %s16
    %p13 = scmp.ge.s32.totalorder %s12, 4
    %s22 = sphi 0, %s24
    %s25 = sphi 0, %s22
    %s26 = sphi 0, %s25
    %s42 = sphi 0, %s26
    %s48 = sphi 0, %s50
    %s51 = sphi 0, %s48
    %s52 = sphi 0, %s51
    %s68 = sphi 0, %s52
    %s72 = sphi 0, %s72
    %s74 = sphi 0, %s72
    %s75 = sphi 0, %s74
    %s89 = sphi 0, %s75
    %s93 = sphi 0, %s93
    %s95 = sphi 0, %s93
    %s96 = sphi 0, %s95
    %s110 = sphi 0, %s96
    %s116 = sphi 0, %s118
    %s119 = sphi 0, %s116
    %s120 = sphi 0, %s119
    %s136 = sphi 0, %s120
    %s142 = sphi 0, %s144
    %s145 = sphi 0, %s142
    %s146 = sphi 0, %s145
    %s162 = sphi 0, %s146
  $region4: #{xey_transformer_layer.4} parent=0 // loop_header_branch
    %15 = sbr.rel (%p13) target = $region8
  $region5: #{xey_transformer_layer.4} parent=0 // loop_body
    %s17 = ssub.s32 %s12, 1
    %s18 = ssub.s32 %s12, 2
    %s19 = sadd.s32 %s12, 1
    %s20 = ssub.s32 %s12, %s19
    %p21 = scmp.eq.s32.totalorder %s20, 0
    %s23 = sadd.s32 %s22, 1
    %s24 = scalar_select %p21, %s22, %s23
    %p27 = pneg %p21
    %p28 = scmp.eq.s32.totalorder %s12, 1
    %p29 = por %p27, %p28
    %p30 = scmp.ne.s32.totalorder %s22, %s25
    %p31 = scmp.eq.s32.totalorder %s12, 0
    %p32 = por %p30, %p31
    %p33 = scmp.ne.s32.totalorder %s22, %s25
    %p34 = scmp.eq.s32.totalorder %s17, 1
    %p35 = por %p33, %p34
    %p36 = scmp.ne.s32.totalorder %s25, %s26
    %p37 = scmp.eq.s32.totalorder %s17, 0
    %p38 = por %p36, %p37
    %p39 = scmp.ne.s32.totalorder %s25, %s26
    %p40 = scmp.eq.s32.totalorder %s18, 1
    %p41 = por %p39, %p40
    %p43 = scmp.ne.s32.totalorder %s26, %s42
    %p44 = scmp.eq.s32.totalorder %s18, 0
    %p45 = por %p43, %p44
    %s46 = ssub.s32 %s12, %s19
    %p47 = scmp.eq.s32.totalorder %s46, 0
    %s49 = sadd.s32 %s48, 1
    %s50 = scalar_select %p47, %s48, %s49
    %p53 = pneg %p47
    %p54 = scmp.eq.s32.totalorder %s12, 1
    %p55 = por %p53, %p54
    %p56 = scmp.ne.s32.totalorder %s48, %s51
    %p57 = scmp.eq.s32.totalorder %s12, 0
    %p58 = por %p56, %p57
    %p59 = scmp.ne.s32.totalorder %s48, %s51
    %p60 = scmp.eq.s32.totalorder %s17, 1
    %p61 = por %p59, %p60
    %p62 = scmp.ne.s32.totalorder %s51, %s52
    %p63 = scmp.eq.s32.totalorder %s17, 0
    %p64 = por %p62, %p63
    %p65 = scmp.ne.s32.totalorder %s51, %s52
    %p66 = scmp.eq.s32.totalorder %s18, 1
    %p67 = por %p65, %p66
    %p69 = scmp.ne.s32.totalorder %s52, %s68
    %p70 = scmp.eq.s32.totalorder %s18, 0
    %p71 = por %p69, %p70
    %s73 = sadd.s32 %s72, 1
    %p76 = scmp.eq.s32.totalorder %s12, 1
    %p77 = scmp.ne.s32.totalorder %s72, %s74
    %p78 = scmp.eq.s32.totalorder %s12, 0
    %p79 = por %p77, %p78
    %p80 = scmp.ne.s32.totalorder %s72, %s74
    %p81 = scmp.eq.s32.totalorder %s17, 1
    %p82 = por %p80, %p81
    %p83 = scmp.ne.s32.totalorder %s74, %s75
    %p84 = scmp.eq.s32.totalorder %s17, 0
    %p85 = por %p83, %p84
    %p86 = scmp.ne.s32.totalorder %s74, %s75
    %p87 = scmp.eq.s32.totalorder %s18, 1
    %p88 = por %p86, %p87
    %p90 = scmp.ne.s32.totalorder %s75, %s89
    %p91 = scmp.eq.s32.totalorder %s18, 0
    %p92 = por %p90, %p91
    %s94 = sadd.s32 %s93, 1
    %p97 = scmp.eq.s32.totalorder %s12, 1
    %p98 = scmp.ne.s32.totalorder %s93, %s95
    %p99 = scmp.eq.s32.totalorder %s12, 0
    %p100 = por %p98, %p99
    %p101 = scmp.ne.s32.totalorder %s93, %s95
    %p102 = scmp.eq.s32.totalorder %s17, 1
    %p103 = por %p101, %p102
    %p104 = scmp.ne.s32.totalorder %s95, %s96
    %p105 = scmp.eq.s32.totalorder %s17, 0
    %p106 = por %p104, %p105
    %p107 = scmp.ne.s32.totalorder %s95, %s96
    %p108 = scmp.eq.s32.totalorder %s18, 1
    %p109 = por %p107, %p108
    %p111 = scmp.ne.s32.totalorder %s96, %s110
    %p112 = scmp.eq.s32.totalorder %s18, 0
    %p113 = por %p111, %p112
    %s114 = ssub.s32 %s12, %s19
    %p115 = scmp.eq.s32.totalorder %s114, 0
    %s117 = sadd.s32 %s116, 1
    %s118 = scalar_select %p115, %s116, %s117
    %p121 = pneg %p115
    %p122 = scmp.eq.s32.totalorder %s12, 1
    %p123 = por %p121, %p122
    %p124 = scmp.ne.s32.totalorder %s116, %s119
    %p125 = scmp.eq.s32.totalorder %s12, 0
    %p126 = por %p124, %p125
    %p127 = scmp.ne.s32.totalorder %s116, %s119
    %p128 = scmp.eq.s32.totalorder %s17, 1
    %p129 = por %p127, %p128
    %p130 = scmp.ne.s32.totalorder %s119, %s120
    %p131 = scmp.eq.s32.totalorder %s17, 0
    %p132 = por %p130, %p131
    %p133 = scmp.ne.s32.totalorder %s119, %s120
    %p134 = scmp.eq.s32.totalorder %s18, 1
    %p135 = por %p133, %p134
    %p137 = scmp.ne.s32.totalorder %s120, %s136
    %p138 = scmp.eq.s32.totalorder %s18, 0
    %p139 = por %p137, %p138
    %s140 = ssub.s32 %s12, %s19
    %p141 = scmp.eq.s32.totalorder %s140, 0
    %s143 = sadd.s32 %s142, 1
    %s144 = scalar_select %p141, %s142, %s143
    %p147 = pneg %p141
    %p148 = scmp.eq.s32.totalorder %s12, 1
    %p149 = por %p147, %p148
    %p150 = scmp.ne.s32.totalorder %s142, %s145
    %p151 = scmp.eq.s32.totalorder %s12, 0
    %p152 = por %p150, %p151
    %p153 = scmp.ne.s32.totalorder %s142, %s145
    %p154 = scmp.eq.s32.totalorder %s17, 1
    %p155 = por %p153, %p154
    %p156 = scmp.ne.s32.totalorder %s145, %s146
    %p157 = scmp.eq.s32.totalorder %s17, 0
    %p158 = por %p156, %p157
    %p159 = scmp.ne.s32.totalorder %s145, %s146
    %p160 = scmp.eq.s32.totalorder %s18, 1
    %p161 = por %p159, %p160
    %p163 = scmp.ne.s32.totalorder %s146, %s162
    %p164 = scmp.eq.s32.totalorder %s18, 0
    %p165 = por %p163, %p164
    %p166 = scmp.le.s32.totalorder 1, %s12
    %p167 = scmp.lt.s32.totalorder %s12, 3
    %p168 = pnand %p166, %p167
    %p169 = pneg %p168
    // Predicated region
    $region9: #{xey_transformer_layer.4} parent=5 // pred_check
      _
    $region10: #{xey_transformer_layer.4} parent=5 // pred_check_branch
      %171 = sbr.rel (%p168) target = $region12
    $region11: #{xey_transformer_layer.4} parent=5 // pred_region
      %s172 = ssub.s32 %s12, 1
      // Predicated region
      $region13: #{xey_transformer_layer.4} parent=11 // pred_check
        %p173 = pneg %p85
      $region14: #{xey_transformer_layer.4} parent=11 // pred_check_branch
        %175 = sbr.rel (%p173) target = $region16
      $region15: #{xey_transformer_layer.4} parent=11 // pred_region
        _
      $region16: #{xey_transformer_layer.4} parent=11 // pred_fallthru
        _
      // Predicated region
      $region17: #{xey_transformer_layer.4} parent=11 // pred_check
        %p176 = pneg %p106
      $region18: #{xey_transformer_layer.4} parent=11 // pred_check_branch
        %178 = sbr.rel (%p176) target = $region20
      $region19: #{xey_transformer_layer.4} parent=11 // pred_region
        _
      $region20: #{xey_transformer_layer.4} parent=11 // pred_fallthru
        _
    $region12: #{xey_transformer_layer.4} parent=5 // pred_fallthru
      _
    %p179 = scmp.lt.s32.totalorder %s12, 2
    // Predicated region
    $region21: #{xey_transformer_layer.4} parent=5 // pred_check
      %p180 = pneg %p179
    $region22: #{xey_transformer_layer.4} parent=5 // pred_check_branch
      %182 = sbr.rel (%p180) target = $region24
    $region23: #{xey_transformer_layer.4} parent=5 // pred_region
      // Predicated region
      $region25: #{xey_transformer_layer.4} parent=23 // pred_check
        %p183 = pneg %p32
      $region26: #{xey_transformer_layer.4} parent=23 // pred_check_branch
        %185 = sbr.rel (%p183) target = $region28
      $region27: #{xey_transformer_layer.4} parent=23 // pred_region
        %p186 = scmp.lt.s32.totalorder %s12, 1
        %s187 = scalar_select %p186, %s12, 1
        %s188 = smul.addr %s187, 8
        %s189 = scalar_lea.vmem %s0, %s188
      $region28: #{xey_transformer_layer.4} parent=23 // pred_fallthru
        _
      // Predicated region
      $region29: #{xey_transformer_layer.4} parent=23 // pred_check
        %p190 = pneg %p58
      $region30: #{xey_transformer_layer.4} parent=23 // pred_check_branch
        %192 = sbr.rel (%p190) target = $region32
      $region31: #{xey_transformer_layer.4} parent=23 // pred_region
        %p193 = scmp.lt.s32.totalorder %s12, 1
        %s194 = scalar_select %p193, %s12, 1
        %s195 = smul.addr %s194, 8
        %s196 = scalar_lea.vmem %s1, %s195
      $region32: #{xey_transformer_layer.4} parent=23 // pred_fallthru
        _
    $region24: #{xey_transformer_layer.4} parent=5 // pred_fallthru
      _
    %p197 = scmp.le.s32.totalorder 1, %s12
    %p198 = scmp.lt.s32.totalorder %s12, 3
    %p199 = pnand %p197, %p198
    %p200 = pneg %p199
    // Predicated region
    $region33: #{xey_transformer_layer.4} parent=5 // pred_check
      _
    $region34: #{xey_transformer_layer.4} parent=5 // pred_check_branch
      %202 = sbr.rel (%p199) target = $region36
    $region35: #{xey_transformer_layer.4} parent=5 // pred_region
      %s203 = ssub.s32 %s12, 1
      %p204 = scmp.lt.s32.totalorder %s17, 1
      %s205 = scalar_select %p204, %s17, 1
      %s206 = smul.addr %s205, 8
      %s207 = scalar_lea.vmem %s0, %s206
      %p208 = pneg %p38
      %p209 = pneg %p35
      %p210 = scmp.lt.s32.totalorder %s17, 1
      %s211 = scalar_select %p210, %s17, 1
      %s212 = smul.addr %s211, 8
      %s213 = scalar_lea.vmem %s1, %s212
      %p214 = pneg %p64
      %p215 = pneg %p61
      %p216 = pneg %p85
      %p217 = pneg %p82
      %p218 = pneg %p106
      %p219 = pneg %p103
      %p220 = pneg %p132
      %p221 = pneg %p129
      %p222 = scmp.lt.s32.totalorder %s17, 1
      %s223 = scalar_select %p222, %s17, 1
      %s224 = smul.addr %s223, 8
      %s225 = scalar_lea.vmem %s4, %s224
      %p226 = pneg %p158
      %p227 = pneg %p155
      %p228 = scmp.lt.s32.totalorder %s17, 1
      %s229 = scalar_select %p228, %s17, 1
      %s230 = scalar_lea.vmem %s5, %s229
      %p231 = scmp.lt.s32.totalorder %s17, 1
      %s232 = scalar_select %p231, %s17, 1
      %s233 = smul.addr %s232, 8
      %s234 = scalar_lea.vmem %s0, %s233
      %p235 = scmp.lt.s32.totalorder %s17, 1
      %s236 = scalar_select %p235, %s17, 1
      %s237 = smul.addr %s236, 8
      %s238 = scalar_lea.vmem %s1, %s237
      %p239 = scmp.lt.s32.totalorder %s17, 1
      %s240 = scalar_select %p239, %s17, 1
      %s241 = smul.addr %s240, 8
      %s242 = scalar_lea.vmem %s4, %s241
      %p243 = scmp.lt.s32.totalorder %s17, 1
      %s244 = scalar_select %p243, %s17, 1
      %s245 = scalar_lea.vmem %s5, %s244
      %v247 = vld [vmem:[%s234] sm:$0xff]
      %v248 = vld [vmem:[%s2] sm:$0xff]
      %v249 = vld [vmem:[%s2 + $0x8] sm:$0xff]
      %v250 = vld [vmem:[%s2 + $0x10] sm:$0xff]
      %v251 = vld [vmem:[%s2 + $0x18] sm:$0xff]
      %v252 = vpack.c.bf16 %v247, %v247
      %v253 = vpack.c.bf16 %v249, %v248
      %v254 = vpack.c.bf16 %v251, %v250
      %v255 = vld [vmem:[%s3] sm:$0x1]
      %v257 = vlaneseq
      %v258 = vshrl.u32 %v257, 7
      %v259 = vsub.s32 0, %v258
      %v260 = vrot.slane %v255, %v259
      %vm262 = vcmask 261120
      %v264 = vsel %vm262, %v252, 0
      %266 = vmatprep.subr.bf16.mxu0 0
      %267 = vmatpush1.bf16.msra.mxu0 %v253
      %268 = vmatprep.subr.bf16.mxu0 0
      %269 = vmatpush1.bf16.msra.mxu0 %v254
      %270 = vmatprep.subr.bf16.mxu0 0
      %271 = vmatpush1.bf16.msra.mxu0 0
      %272 = vmatprep.subr.bf16.mxu0 0
      %273 = vmatpush1.bf16.msra.mxu0 0
      %274 = vmatprep.subr.bf16.mxu0 0
      %275 = vmatpush1.bf16.msra.mxu0 0
      %276 = vmatprep.subr.bf16.mxu0 0
      %277 = vmatpush1.bf16.msra.mxu0 0
      %278 = vmatprep.subr.bf16.mxu0 0
      %279 = vmatpush1.bf16.msra.mxu0 0
      %280 = vmatprep.subr.bf16.mxu0 0
      %281 = vmatpush1.bf16.msra.mxu0 0
      %282 = vmatprep.subr.bf16.mxu0 0
      %283 = vmatpush1.bf16.msra.mxu0 0
      %284 = vmatprep.subr.bf16.mxu0 0
      %285 = vmatpush1.bf16.msra.mxu0 0
      %286 = vmatprep.subr.bf16.mxu0 0
      %287 = vmatpush1.bf16.msra.mxu0 0
      %288 = vmatprep.subr.bf16.mxu0 0
      %289 = vmatpush1.bf16.msra.mxu0 0
      %290 = vmatprep.subr.bf16.mxu0 0
      %291 = vmatpush1.bf16.msra.mxu0 0
      %292 = vmatprep.subr.bf16.mxu0 0
      %293 = vmatpush1.bf16.msra.mxu0 0
      %294 = vmatprep.subr.bf16.mxu0 0
      %295 = vmatpush1.bf16.msra.mxu0 0
      %296 = vmatprep.subr.bf16.mxu0 0
      %297 = vmatpush1.bf16.msra.mxu0 0
      %298 = vmatprep.mubr.bf16.mxu0 0
      %299 = vmatmul.mubr.bf16.gmra.mrb[0].mxu0 %v264
      %v300 = vpop.f32.mrb[0].mxu0
      %v301 = vadd.f32 %v260, %v300
      %v302 = vpop.f32.mrb[0].mxu0
      %v303 = vpop.f32.mrb[0].mxu0
      %v304 = vpop.f32.mrb[0].mxu0
      %305 = vdwg.mxu0
      %v306 = vld [vmem:[%s238] sm:$0xff]
      %308 = vset.pattern.permute.xlu0 0
      %309 = vperm.xlu0 %308, %v306
      %v310 = vpop.permute.xlu0 %309
      %v312 = vmul.f32 %v301, %v310
      %vm313 = vcmask 785408
      %314 = vst.msk [vmem:[%s242] sm:$0xff] %vm313, %v312
      %v315 = vsel %vm262, %v247, 0.0
      %v316 = vrot.slane %v315, 4
      %v317 = vadd.f32 %v315, %v316
      %v318 = vrot.slane %v317, 2
      %v319 = vadd.f32 %v317, %v318
      %v320 = vrot.slane %v319, 1
      %v321 = vadd.f32 %v319, %v320
      %v322 = vrcp.pop 8.0
      %v323 = vmul.f32 %v321, %v322
      %v324 = vsel %vm262, %v247, inf
      %v325 = vrot.slane %v324, 4
      %v326 = vmin.f32 %v324, %v325
      %v327 = vrot.slane %v326, 2
      %v328 = vmin.f32 %v326, %v327
      %v329 = vrot.slane %v328, 1
      %v330 = vmin.f32 %v328, %v329
      %v331 = vsel %vm262, %v247, -inf
      %v332 = vrot.slane %v331, 4
      %v333 = vmax.f32 %v331, %v332
      %v334 = vrot.slane %v333, 2
      %v335 = vmax.f32 %v333, %v334
      %v336 = vrot.slane %v335, 1
      %v337 = vmax.f32 %v335, %v336
      %v338 = vsub.f32 %v247, %v323
      %v339 = vmul.f32 %v338, %v338
      %v340 = vsel %vm262, %v339, 0.0
      %v341 = vrot.slane %v340, 4
      %v342 = vadd.f32 %v340, %v341
      %v343 = vrot.slane %v342, 2
      %v344 = vadd.f32 %v342, %v343
      %v345 = vrot.slane %v344, 1
      %v346 = vadd.f32 %v344, %v345
      %v347 = vmul.f32 %v346, 0.14285715
      %v348 = vrsqrt.pop %v347
      %v349 = vmul.f32 %v347, %v348
      %vm350 = vcmp.eq.f32.partialorder %v347, inf
      %v351 = vsel %vm350, %v347, %v349
      %vm352 = vcmp.eq.f32.partialorder %v347, 0.0
      %v353 = vand.u32 %v347, 2147483648
      %v354 = vsel %vm352, %v353, %v351
      %vm355 = vcmask 253952
      %356 = vst.msk [vmem:[%s245] sm:$0x1] %vm355, %v323
      %358 = vrot.lane.b32.xlu0 %v330, 32
      %v359 = vpop.permute.xlu0 %358
      %vm361 = vcmask 516352
      %362 = vst.msk [vmem:[%s245] sm:$0x1] %vm361, %v359
      %364 = vrot.lane.b32.xlu0 %v337, 64
      %v365 = vpop.permute.xlu0 %364
      %vm367 = vcmask 778752
      %368 = vst.msk [vmem:[%s245] sm:$0x1] %vm367, %v365
      %370 = vrot.lane.b32.xlu0 %v354, 96
      %v371 = vpop.permute.xlu0 %370
      %vm373 = vcmask 1041152
      %374 = vst.msk [vmem:[%s245] sm:$0x1] %vm373, %v371
      %p375 = scmp.lt.s32.totalorder %s17, 1
      %s376 = scalar_select %p375, %s17, 1
      %s377 = smul.addr %s376, 8
      %s378 = scalar_lea.vmem %s4, %s377
      %p379 = scmp.lt.s32.totalorder %s17, 1
      %s380 = scalar_select %p379, %s17, 1
      %s381 = scalar_lea.vmem %s5, %s380
      // Predicated region
      $region37: #{xey_transformer_layer.4} parent=35 // pred_check
        %p382 = pneg %p129
      $region38: #{xey_transformer_layer.4} parent=35 // pred_check_branch
        %384 = sbr.rel (%p382) target = $region40
      $region39: #{xey_transformer_layer.4} parent=35 // pred_region
        _
      $region40: #{xey_transformer_layer.4} parent=35 // pred_fallthru
        _
      // Predicated region
      $region41: #{xey_transformer_layer.4} parent=35 // pred_check
        %p385 = pneg %p155
      $region42: #{xey_transformer_layer.4} parent=35 // pred_check_branch
        %387 = sbr.rel (%p385) target = $region44
      $region43: #{xey_transformer_layer.4} parent=35 // pred_region
        _
      $region44: #{xey_transformer_layer.4} parent=35 // pred_fallthru
        _
    $region36: #{xey_transformer_layer.4} parent=5 // pred_fallthru
      _
    %p388 = scmp.le.s32.totalorder 2, %s12
    // Predicated region
    $region45: #{xey_transformer_layer.4} parent=5 // pred_check
      %p389 = pneg %p388
    $region46: #{xey_transformer_layer.4} parent=5 // pred_check_branch
      %391 = sbr.rel (%p389) target = $region48
    $region47: #{xey_transformer_layer.4} parent=5 // pred_region
      %s392 = ssub.s32 %s12, 2
      // Predicated region
      $region49: #{xey_transformer_layer.4} parent=47 // pred_check
        %p393 = pneg %p135
      $region50: #{xey_transformer_layer.4} parent=47 // pred_check_branch
        %395 = sbr.rel (%p393) target = $region52
      $region51: #{xey_transformer_layer.4} parent=47 // pred_region
        %p396 = scmp.lt.s32.totalorder %s18, 1
        %s397 = scalar_select %p396, %s18, 1
        %s398 = smul.addr %s397, 8
        %s399 = scalar_lea.vmem %s4, %s398
      $region52: #{xey_transformer_layer.4} parent=47 // pred_fallthru
        _
      // Predicated region
      $region53: #{xey_transformer_layer.4} parent=47 // pred_check
        %p400 = pneg %p161
      $region54: #{xey_transformer_layer.4} parent=47 // pred_check_branch
        %402 = sbr.rel (%p400) target = $region56
      $region55: #{xey_transformer_layer.4} parent=47 // pred_region
        %p403 = scmp.lt.s32.totalorder %s18, 1
        %s404 = scalar_select %p403, %s18, 1
        %s405 = scalar_lea.vmem %s5, %s404
      $region56: #{xey_transformer_layer.4} parent=47 // pred_fallthru
        _
    $region48: #{xey_transformer_layer.4} parent=5 // pred_fallthru
      _
  $region6: #{xey_transformer_layer.4} parent=0 // loop_footer
    %s16 = sadd.s32 1, %s12
  $region7: #{xey_transformer_layer.4} parent=0 // loop_footer_branch
    %11 = sbr.rel target = $region3
  $region8: #{xey_transformer_layer.4} parent=0 // loop_exit
    _

// kernel: xey_transformer_layer.7
$region0: #{xey_transformer_layer.7}
  #allocation0 [shape = 'u32[]', space=smem, size = 0x4, offset = 0x4, fixed_abs, tag = 'smem constant byte address 0x4 - core index']
  #allocation1 [shape = 'u32[144,128]{1,0:T(1,128)}', space=vmem, size = 0x12000, scoped, tag = 'internal scratch']
  %s0 = inlined_call_operand.vmem [shape: f32[16,32], index: 0, kind: input, shape index: {}]
  %s1 = inlined_call_operand.vmem [shape: f32[16,32], index: 1, kind: input, shape index: {}]
  %s2 = inlined_call_operand.vmem [shape: f32[1,32], index: 2, kind: input, shape index: {}]
  %s3 = inlined_call_operand.vmem [shape: f32[1,32], index: 3, kind: input, shape index: {}]
  %s4 = inlined_call_operand.vmem [shape: f32[32,64], index: 4, kind: input, shape index: {}]
  %s5 = inlined_call_operand.vmem [shape: f32[1,64], index: 5, kind: input, shape index: {}]
  %s6 = inlined_call_operand.vmem [shape: f32[64,32], index: 6, kind: input, shape index: {}]
  %s7 = inlined_call_operand.vmem [shape: f32[1,32], index: 7, kind: input, shape index: {}]
  %s8 = inlined_call_operand.vmem [shape: f32[1,32], index: 8, kind: input, shape index: {}]
  %s9 = inlined_call_operand.vmem [shape: f32[1,32], index: 9, kind: input, shape index: {}]
  %s10 = inlined_call_operand.hbm [shape: f32[16,32], index: 10, kind: output, shape index: {}]
  %s11 = sld [smem:[#allocation0]]
  $region50: #{xey_transformer_layer.7} parent=0
    _
  %s13 = ssub.s32 1, %s11
  %s14 = scalar_select 0, %s13, %s11
  $region1: #{xey_transformer_layer.7} parent=0
    #allocation2 [shape = 'u8[8192]{0}', space=vmem, size = 0x2000, scoped, tag = 'output window, operand 0, single buffered']
    #allocation3 [shape = 's32[1]{0}', space=sflag, size = 0x4, scoped, tag = 'scoped memory for xey_transformer_layer.7']
    %15 = vsyncpa [#allocation3], 0
    // Predicated region
    $region2: #{xey_transformer_layer.7} parent=1 // pred_check
      _
    $region3: #{xey_transformer_layer.7} parent=1 // pred_check_branch
      %17 = sbr.rel (0) target = $region5
    $region4: #{xey_transformer_layer.7} parent=1 // pred_region
      _
    $region5: #{xey_transformer_layer.7} parent=1 // pred_fallthru
      _
    // Predicated region
    $region6: #{xey_transformer_layer.7} parent=1 // pred_check
      _
    $region7: #{xey_transformer_layer.7} parent=1 // pred_check_branch
      %19 = sbr.rel (0) target = $region9
    $region8: #{xey_transformer_layer.7} parent=1 // pred_region
      _
    $region9: #{xey_transformer_layer.7} parent=1 // pred_fallthru
      _
    // Predicated region
    $region10: #{xey_transformer_layer.7} parent=1 // pred_check
      _
    $region11: #{xey_transformer_layer.7} parent=1 // pred_check_branch
      %21 = sbr.rel (0) target = $region13
    $region12: #{xey_transformer_layer.7} parent=1 // pred_region
      _
    $region13: #{xey_transformer_layer.7} parent=1 // pred_fallthru
      _
    // Predicated region
    $region14: #{xey_transformer_layer.7} parent=1 // pred_check
      _
    $region15: #{xey_transformer_layer.7} parent=1 // pred_check_branch
      %23 = sbr.rel (0) target = $region17
    $region16: #{xey_transformer_layer.7} parent=1 // pred_region
      _
    $region17: #{xey_transformer_layer.7} parent=1 // pred_fallthru
      _
    // Predicated region
    $region18: #{xey_transformer_layer.7} parent=1 // pred_check
      _
    $region19: #{xey_transformer_layer.7} parent=1 // pred_check_branch
      %25 = sbr.rel (0) target = $region21
    $region20: #{xey_transformer_layer.7} parent=1 // pred_region
      _
    $region21: #{xey_transformer_layer.7} parent=1 // pred_fallthru
      _
    // Predicated region
    $region22: #{xey_transformer_layer.7} parent=1 // pred_check
      _
    $region23: #{xey_transformer_layer.7} parent=1 // pred_check_branch
      %27 = sbr.rel (0) target = $region25
    $region24: #{xey_transformer_layer.7} parent=1 // pred_region
      _
    $region25: #{xey_transformer_layer.7} parent=1 // pred_fallthru
      _
    // Predicated region
    $region26: #{xey_transformer_layer.7} parent=1 // pred_check
      _
    $region27: #{xey_transformer_layer.7} parent=1 // pred_check_branch
      %29 = sbr.rel (0) target = $region29
    $region28: #{xey_transformer_layer.7} parent=1 // pred_region
      _
    $region29: #{xey_transformer_layer.7} parent=1 // pred_fallthru
      _
    // Predicated region
    $region30: #{xey_transformer_layer.7} parent=1 // pred_check
      _
    $region31: #{xey_transformer_layer.7} parent=1 // pred_check_branch
      %31 = sbr.rel (0) target = $region33
    $region32: #{xey_transformer_layer.7} parent=1 // pred_region
      _
    $region33: #{xey_transformer_layer.7} parent=1 // pred_fallthru
      _
    // Predicated region
    $region34: #{xey_transformer_layer.7} parent=1 // pred_check
      _
    $region35: #{xey_transformer_layer.7} parent=1 // pred_check_branch
      %33 = sbr.rel (0) target = $region37
    $region36: #{xey_transformer_layer.7} parent=1 // pred_region
      _
    $region37: #{xey_transformer_layer.7} parent=1 // pred_fallthru
      _
    // Predicated region
    $region38: #{xey_transformer_layer.7} parent=1 // pred_check
      _
    $region39: #{xey_transformer_layer.7} parent=1 // pred_check_branch
      %35 = sbr.rel (0) target = $region41
    $region40: #{xey_transformer_layer.7} parent=1 // pred_region
      _
    $region41: #{xey_transformer_layer.7} parent=1 // pred_fallthru
      _
    %v37 = vld [vmem:[%s0] sm:$0xff]
    %v38 = vld [vmem:[%s0 + $0x8] sm:$0xff]
    %v39 = vld [vmem:[%s1] sm:$0xff]
    %v40 = vld [vmem:[%s1 + $0x8] sm:$0xff]
    %v41 = vadd.f32 %v37, %v39
    %v42 = vadd.f32 %v38, %v40
    %v43 = vld [vmem:[%s2] sm:$0x1]
    %v44 = vld [vmem:[%s3] sm:$0x1]
    %vm45 = vcmask 261120
    %v46 = vsel %vm45, %v41, 0.0
    %47 = vadd.xlane.f32.xlu0 %v46
    %v48 = vpop.xlane.xlu0 %47
    %v49 = vsel %vm45, %v42, 0.0
    %50 = vadd.xlane.f32.xlu0 %v49
    %v51 = vpop.xlane.xlu0 %50
    %v52 = vrcp.pop 32.0
    %v53 = vmul.f32 %v48, %v52
    %v54 = vmul.f32 %v51, %v52
    %v55 = vsub.f32 %v41, %v53
    %v56 = vsub.f32 %v42, %v54
    %v57 = vmul.f32 %v55, %v55
    %v58 = vmul.f32 %v56, %v56
    %v59 = vsel %vm45, %v57, 0.0
    %60 = vadd.xlane.f32.xlu0 %v59
    %v61 = vpop.xlane.xlu0 %60
    %v62 = vsel %vm45, %v58, 0.0
    %63 = vadd.xlane.f32.xlu0 %v62
    %v64 = vpop.xlane.xlu0 %63
    %v65 = vmul.f32 %v61, %v52
    %v66 = vmul.f32 %v64, %v52
    %v67 = vadd.f32 %v65, 1e-05
    %v68 = vadd.f32 %v66, 1e-05
    %v69 = vrsqrt.pop %v67
    %v70 = vrsqrt.pop %v68
    %v71 = vmul.f32 %v55, %v69
    %v72 = vmul.f32 %v56, %v70
    %v74 = vlaneseq
    %v75 = vshrl.u32 %v74, 7
    %v76 = vsub.s32 0, %v75
    %v77 = vrot.slane %v43, %v76
    %v79 = vmul.f32 %v71, %v77
    %v80 = vmul.f32 %v72, %v77
    %v82 = vlaneseq
    %v83 = vshrl.u32 %v82, 7
    %v84 = vsub.s32 0, %v83
    %v85 = vrot.slane %v44, %v84
    %v87 = vadd.f32 %v79, %v85
    %v88 = vadd.f32 %v80, %v85
    %v89 = vld [vmem:[%s4] sm:$0xff]
    %v90 = vld [vmem:[%s4 + $0x8] sm:$0xff]
    %v91 = vld [vmem:[%s4 + $0x10] sm:$0xff]
    %v92 = vld [vmem:[%s4 + $0x18] sm:$0xff]
    %v93 = vpack.c.bf16 %v88, %v87
    %v94 = vpack.c.bf16 %v90, %v89
    %v95 = vpack.c.bf16 %v92, %v91
    %v96 = vld [vmem:[%s5] sm:$0x1]
    %v98 = vlaneseq
    %v99 = vshrl.u32 %v98, 7
    %v100 = vsub.s32 0, %v99
    %v101 = vrot.slane %v96, %v100
    %v104 = vsel %vm45, %v93, 0
    %106 = vmatprep.subr.bf16.mxu0 0
    %107 = vmatpush1.bf16.msra.mxu0 %v94
    %108 = vmatprep.subr.bf16.mxu0 0
    %109 = vmatpush1.bf16.msra.mxu0 %v95
    %110 = vmatprep.subr.bf16.mxu0 0
    %111 = vmatpush1.bf16.msra.mxu0 0
    %112 = vmatprep.subr.bf16.mxu0 0
    %113 = vmatpush1.bf16.msra.mxu0 0
    %114 = vmatprep.subr.bf16.mxu0 0
    %115 = vmatpush1.bf16.msra.mxu0 0
    %116 = vmatprep.subr.bf16.mxu0 0
    %117 = vmatpush1.bf16.msra.mxu0 0
    %118 = vmatprep.subr.bf16.mxu0 0
    %119 = vmatpush1.bf16.msra.mxu0 0
    %120 = vmatprep.subr.bf16.mxu0 0
    %121 = vmatpush1.bf16.msra.mxu0 0
    %122 = vmatprep.subr.bf16.mxu0 0
    %123 = vmatpush1.bf16.msra.mxu0 0
    %124 = vmatprep.subr.bf16.mxu0 0
    %125 = vmatpush1.bf16.msra.mxu0 0
    %126 = vmatprep.subr.bf16.mxu0 0
    %127 = vmatpush1.bf16.msra.mxu0 0
    %128 = vmatprep.subr.bf16.mxu0 0
    %129 = vmatpush1.bf16.msra.mxu0 0
    %130 = vmatprep.subr.bf16.mxu0 0
    %131 = vmatpush1.bf16.msra.mxu0 0
    %132 = vmatprep.subr.bf16.mxu0 0
    %133 = vmatpush1.bf16.msra.mxu0 0
    %134 = vmatprep.subr.bf16.mxu0 0
    %135 = vmatpush1.bf16.msra.mxu0 0
    %136 = vmatprep.subr.bf16.mxu0 0
    %137 = vmatpush1.bf16.msra.mxu0 0
    %138 = vmatprep.mubr.bf16.mxu0 0
    %139 = vmatmul.mubr.bf16.gmra.mrb[0].mxu0 %v104
    %v140 = vpop.f32.mrb[0].mxu0
    %v141 = vadd.f32 %v101, %v140
    %v142 = vpop.f32.mrb[0].mxu0
    %v143 = vpop.f32.mrb[0].mxu0
    %v144 = vadd.f32 %v101, %v143
    %v145 = vpop.f32.mrb[0].mxu0
    %146 = vdwg.mxu0
    %v147 = vmax.f32 %v141, 0.0
    %v148 = vmax.f32 %v144, 0.0
    %v149 = vld [vmem:[%s6] sm:$0xff]
    %v150 = vld [vmem:[%s6 + $0x8] sm:$0xff]
    %v151 = vld [vmem:[%s6 + $0x10] sm:$0xff]
    %v152 = vld [vmem:[%s6 + $0x18] sm:$0xff]
    %v153 = vld [vmem:[%s6 + $0x20] sm:$0xff]
    %v154 = vld [vmem:[%s6 + $0x28] sm:$0xff]
    %v155 = vld [vmem:[%s6 + $0x30] sm:$0xff]
    %v156 = vld [vmem:[%s6 + $0x38] sm:$0xff]
    %v157 = vpack.c.bf16 %v148, %v147
    %v158 = vpack.c.bf16 %v150, %v149
    %v159 = vpack.c.bf16 %v152, %v151
    %v160 = vpack.c.bf16 %v154, %v153
    %v161 = vpack.c.bf16 %v156, %v155
    %v162 = vld [vmem:[%s7] sm:$0x1]
    %v164 = vlaneseq
    %v165 = vshrl.u32 %v164, 7
    %v166 = vsub.s32 0, %v165
    %v167 = vrot.slane %v162, %v166
    %vm169 = vcmask 523264
    %v171 = vsel %vm169, %v157, 0
    %173 = vmatprep.subr.bf16.mxu0 0
    %174 = vmatpush1.bf16.msra.mxu0 %v158
    %175 = vmatprep.subr.bf16.mxu0 0
    %176 = vmatpush1.bf16.msra.mxu0 %v159
    %177 = vmatprep.subr.bf16.mxu0 0
    %178 = vmatpush1.bf16.msra.mxu0 %v160
    %179 = vmatprep.subr.bf16.mxu0 0
    %180 = vmatpush1.bf16.msra.mxu0 %v161
    %181 = vmatprep.subr.bf16.mxu0 0
    %182 = vmatpush1.bf16.msra.mxu0 0
    %183 = vmatprep.subr.bf16.mxu0 0
    %184 = vmatpush1.bf16.msra.mxu0 0
    %185 = vmatprep.subr.bf16.mxu0 0
    %186 = vmatpush1.bf16.msra.mxu0 0
    %187 = vmatprep.subr.bf16.mxu0 0
    %188 = vmatpush1.bf16.msra.mxu0 0
    %189 = vmatprep.subr.bf16.mxu0 0
    %190 = vmatpush1.bf16.msra.mxu0 0
    %191 = vmatprep.subr.bf16.mxu0 0
    %192 = vmatpush1.bf16.msra.mxu0 0
    %193 = vmatprep.subr.bf16.mxu0 0
    %194 = vmatpush1.bf16.msra.mxu0 0
    %195 = vmatprep.subr.bf16.mxu0 0
    %196 = vmatpush1.bf16.msra.mxu0 0
    %197 = vmatprep.subr.bf16.mxu0 0
    %198 = vmatpush1.bf16.msra.mxu0 0
    %199 = vmatprep.subr.bf16.mxu0 0
    %200 = vmatpush1.bf16.msra.mxu0 0
    %201 = vmatprep.subr.bf16.mxu0 0
    %202 = vmatpush1.bf16.msra.mxu0 0
    %203 = vmatprep.subr.bf16.mxu0 0
    %204 = vmatpush1.bf16.msra.mxu0 0
    %205 = vmatprep.mubr.bf16.mxu0 0
    %206 = vmatmul.mubr.bf16.gmra.mrb[0].mxu0 %v171
    %v207 = vpop.f32.mrb[0].mxu0
    %v208 = vadd.f32 %v167, %v207
    %v209 = vpop.f32.mrb[0].mxu0
    %v210 = vpop.f32.mrb[0].mxu0
    %v211 = vadd.f32 %v167, %v210
    %v212 = vpop.f32.mrb[0].mxu0
    %213 = vdwg.mxu0
    %v214 = vadd.f32 %v87, %v208
    %v215 = vadd.f32 %v88, %v211
    %v216 = vld [vmem:[%s8] sm:$0x1]
    %v217 = vld [vmem:[%s9] sm:$0x1]
    %v218 = vsel %vm45, %v214, 0.0
    %219 = vadd.xlane.f32.xlu0 %v218
    %v220 = vpop.xlane.xlu0 %219
    %v221 = vsel %vm45, %v215, 0.0
    %222 = vadd.xlane.f32.xlu0 %v221
    %v223 = vpop.xlane.xlu0 %222
    %v224 = vmul.f32 %v220, %v52
    %v225 = vmul.f32 %v223, %v52
    %v226 = vsub.f32 %v214, %v224
    %v227 = vsub.f32 %v215, %v225
    %v228 = vmul.f32 %v226, %v226
    %v229 = vmul.f32 %v227, %v227
    %v230 = vsel %vm45, %v228, 0.0
    %231 = vadd.xlane.f32.xlu0 %v230
    %v232 = vpop.xlane.xlu0 %231
    %v233 = vsel %vm45, %v229, 0.0
    %234 = vadd.xlane.f32.xlu0 %v233
    %v235 = vpop.xlane.xlu0 %234
    %v236 = vmul.f32 %v232, %v52
    %v237 = vmul.f32 %v235, %v52
    %v238 = vadd.f32 %v236, 1e-05
    %v239 = vadd.f32 %v237, 1e-05
    %v240 = vrsqrt.pop %v238
    %v241 = vrsqrt.pop %v239
    %v242 = vmul.f32 %v226, %v240
    %v243 = vmul.f32 %v227, %v241
    %v245 = vlaneseq
    %v246 = vshrl.u32 %v245, 7
    %v247 = vsub.s32 0, %v246
    %v248 = vrot.slane %v216, %v247
    %v250 = vmul.f32 %v242, %v248
    %v251 = vmul.f32 %v243, %v248
    %v253 = vlaneseq
    %v254 = vshrl.u32 %v253, 7
    %v255 = vsub.s32 0, %v254
    %v256 = vrot.slane %v217, %v255
    %v258 = vadd.f32 %v250, %v256
    %v259 = vadd.f32 %v251, %v256
    %260 = vst.msk [vmem:[#allocation2] sm:$0xff] %vm45, %v258
    %261 = vst.msk [vmem:[#allocation2 + $0x8] sm:$0xff] %vm45, %v259
    // Predicated region
    $region42: #{xey_transformer_layer.7} parent=1 // pred_check
      _
    $region43: #{xey_transformer_layer.7} parent=1 // pred_check_branch
      %263 = sbr.rel (0) target = $region45
    $region44: #{xey_transformer_layer.7} parent=1 // pred_region
      %s265 = ssub.s32 256, 256
      %266 = vsyncadd [#allocation3], %s265
      %s267 = sshll.u32 [#allocation2], 4
      %s268 = int_to_ptr.vmem [resolvable:$true] %s267
      %273 = dma.vmem_to_hbm [thread:$0]  %s268, 256, %s10, [#allocation3], 128, 128, 8
    $region45: #{xey_transformer_layer.7} parent=1 // pred_fallthru
      _
    // Predicated region
    $region46: #{xey_transformer_layer.7} parent=1 // pred_check
      _
    $region47: #{xey_transformer_layer.7} parent=1 // pred_check_branch
      %275 = sbr.rel (0) target = $region49
    $region48: #{xey_transformer_layer.7} parent=1 // pred_region
      %276 = dma.done [#allocation3], 256
    $region49: #{xey_transformer_layer.7} parent=1 // pred_fallthru
      _
    %277 = vsyncpa [#allocation3], 1

// kernel: xey_transformer_layer.6
$region0: #{xey_transformer_layer.6}
  #allocation0 [shape = 'u32[]', space=smem, size = 0x4, offset = 0x4, fixed_abs, tag = 'smem constant byte address 0x4 - core index']
  #allocation1 [shape = 'u32[144,128]{1,0:T(1,128)}', space=vmem, size = 0x12000, scoped, tag = 'internal scratch']
  %s0 = inlined_call_operand.vmem [shape: f32[2,16], index: 0, kind: input, shape index: {}]
  %s1 = inlined_call_operand.vmem [shape: f32[2,128], index: 1, kind: input, shape index: {}]
  %s2 = inlined_call_operand.vmem [shape: f32[2,64], index: 2, kind: input, shape index: {}]
  %s3 = inlined_call_operand.vmem [shape: f32[16,16], index: 3, kind: input, shape index: {}]
  %s4 = inlined_call_operand.vmem [shape: f32[1,16], index: 4, kind: input, shape index: {}]
  %s5 = inlined_call_operand.vmem [shape: f32[128,16], index: 5, kind: input, shape index: {}]
  %s6 = inlined_call_operand.vmem [shape: f32[1,16], index: 6, kind: input, shape index: {}]
  %s7 = inlined_call_operand.vmem [shape: f32[64,16], index: 7, kind: input, shape index: {}]
  %s8 = inlined_call_operand.vmem [shape: f32[1,16], index: 8, kind: input, shape index: {}]
  %s9 = inlined_call_operand.vmem [shape: f32[16,16], index: 9, kind: input, shape index: {}]
  %s10 = inlined_call_operand.vmem [shape: f32[1,16], index: 10, kind: input, shape index: {}]
  %s11 = inlined_call_operand.vmem [shape: f32[16,16], index: 11, kind: input, shape index: {}]
  %s12 = inlined_call_operand.vmem [shape: f32[1,16], index: 12, kind: input, shape index: {}]
  %s13 = inlined_call_operand.vmem [shape: f32[1,16], index: 13, kind: input, shape index: {}]
  %s14 = inlined_call_operand.vmem [shape: f32[1,16], index: 14, kind: input, shape index: {}]
  %s15 = inlined_call_operand.vmem [shape: f32[16,64], index: 15, kind: input, shape index: {}]
  %s16 = inlined_call_operand.vmem [shape: f32[1,64], index: 16, kind: input, shape index: {}]
  %s17 = inlined_call_operand.vmem [shape: f32[64,16], index: 17, kind: input, shape index: {}]
  %s18 = inlined_call_operand.vmem [shape: f32[1,16], index: 18, kind: input, shape index: {}]
  %s19 = inlined_call_operand.vmem [shape: f32[1,16], index: 19, kind: input, shape index: {}]
  %s20 = inlined_call_operand.vmem [shape: f32[1,16], index: 20, kind: input, shape index: {}]
  %s21 = inlined_call_operand.hbm [shape: f32[2,16], index: 21, kind: output, shape index: {}]
  %s22 = sld [smem:[#allocation0]]
  $region94: #{xey_transformer_layer.6} parent=0
    _
  %s24 = ssub.s32 1, %s22
  %s25 = scalar_select 0, %s24, %s22
  $region1: #{xey_transformer_layer.6} parent=0
    #allocation2 [shape = 'u8[1024]{0}', space=vmem, size = 0x400, scoped, tag = 'output window, operand 0, single buffered']
    #allocation3 [shape = 's32[1]{0}', space=sflag, size = 0x4, scoped, tag = 'scoped memory for xey_transformer_layer.6']
    %26 = vsyncpa [#allocation3], 0
    // Predicated region
    $region2: #{xey_transformer_layer.6} parent=1 // pred_check
      _
    $region3: #{xey_transformer_layer.6} parent=1 // pred_check_branch
      %28 = sbr.rel (0) target = $region5
    $region4: #{xey_transformer_layer.6} parent=1 // pred_region
      _
    $region5: #{xey_transformer_layer.6} parent=1 // pred_fallthru
      _
    // Predicated region
    $region6: #{xey_transformer_layer.6} parent=1 // pred_check
      _
    $region7: #{xey_transformer_layer.6} parent=1 // pred_check_branch
      %30 = sbr.rel (0) target = $region9
    $region8: #{xey_transformer_layer.6} parent=1 // pred_region
      _
    $region9: #{xey_transformer_layer.6} parent=1 // pred_fallthru
      _
    // Predicated region
    $region10: #{xey_transformer_layer.6} parent=1 // pred_check
      _
    $region11: #{xey_transformer_layer.6} parent=1 // pred_check_branch
      %32 = sbr.rel (0) target = $region13
    $region12: #{xey_transformer_layer.6} parent=1 // pred_region
      _
    $region13: #{xey_transformer_layer.6} parent=1 // pred_fallthru
      _
    // Predicated region
    $region14: #{xey_transformer_layer.6} parent=1 // pred_check
      _
    $region15: #{xey_transformer_layer.6} parent=1 // pred_check_branch
      %34 = sbr.rel (0) target = $region17
    $region16: #{xey_transformer_layer.6} parent=1 // pred_region
      _
    $region17: #{xey_transformer_layer.6} parent=1 // pred_fallthru
      _
    // Predicated region
    $region18: #{xey_transformer_layer.6} parent=1 // pred_check
      _
    $region19: #{xey_transformer_layer.6} parent=1 // pred_check_branch
      %36 = sbr.rel (0) target = $region21
    $region20: #{xey_transformer_layer.6} parent=1 // pred_region
      _
    $region21: #{xey_transformer_layer.6} parent=1 // pred_fallthru
      _
    // Predicated region
    $region22: #{xey_transformer_layer.6} parent=1 // pred_check
      _
    $region23: #{xey_transformer_layer.6} parent=1 // pred_check_branch
      %38 = sbr.rel (0) target = $region25
    $region24: #{xey_transformer_layer.6} parent=1 // pred_region
      _
    $region25: #{xey_transformer_layer.6} parent=1 // pred_fallthru
      _
    // Predicated region
    $region26: #{xey_transformer_layer.6} parent=1 // pred_check
      _
    $region27: #{xey_transformer_layer.6} parent=1 // pred_check_branch
      %40 = sbr.rel (0) target = $region29
    $region28: #{xey_transformer_layer.6} parent=1 // pred_region
      _
    $region29: #{xey_transformer_layer.6} parent=1 // pred_fallthru
      _
    // Predicated region
    $region30: #{xey_transformer_layer.6} parent=1 // pred_check
      _
    $region31: #{xey_transformer_layer.6} parent=1 // pred_check_branch
      %42 = sbr.rel (0) target = $region33
    $region32: #{xey_transformer_layer.6} parent=1 // pred_region
      _
    $region33: #{xey_transformer_layer.6} parent=1 // pred_fallthru
      _
    // Predicated region
    $region34: #{xey_transformer_layer.6} parent=1 // pred_check
      _
    $region35: #{xey_transformer_layer.6} parent=1 // pred_check_branch
      %44 = sbr.rel (0) target = $region37
    $region36: #{xey_transformer_layer.6} parent=1 // pred_region
      _
    $region37: #{xey_transformer_layer.6} parent=1 // pred_fallthru
      _
    // Predicated region
    $region38: #{xey_transformer_layer.6} parent=1 // pred_check
      _
    $region39: #{xey_transformer_layer.6} parent=1 // pred_check_branch
      %46 = sbr.rel (0) target = $region41
    $region40: #{xey_transformer_layer.6} parent=1 // pred_region
      _
    $region41: #{xey_transformer_layer.6} parent=1 // pred_fallthru
      _
    // Predicated region
    $region42: #{xey_transformer_layer.6} parent=1 // pred_check
      _
    $region43: #{xey_transformer_layer.6} parent=1 // pred_check_branch
      %48 = sbr.rel (0) target = $region45
    $region44: #{xey_transformer_layer.6} parent=1 // pred_region
      _
    $region45: #{xey_transformer_layer.6} parent=1 // pred_fallthru
      _
    // Predicated region
    $region46: #{xey_transformer_layer.6} parent=1 // pred_check
      _
    $region47: #{xey_transformer_layer.6} parent=1 // pred_check_branch
      %50 = sbr.rel (0) target = $region49
    $region48: #{xey_transformer_layer.6} parent=1 // pred_region
      _
    $region49: #{xey_transformer_layer.6} parent=1 // pred_fallthru
      _
    // Predicated region
    $region50: #{xey_transformer_layer.6} parent=1 // pred_check
      _
    $region51: #{xey_transformer_layer.6} parent=1 // pred_check_branch
      %52 = sbr.rel (0) target = $region53
    $region52: #{xey_transformer_layer.6} parent=1 // pred_region
      _
    $region53: #{xey_transformer_layer.6} parent=1 // pred_fallthru
      _
    // Predicated region
    $region54: #{xey_transformer_layer.6} parent=1 // pred_check
      _
    $region55: #{xey_transformer_layer.6} parent=1 // pred_check_branch
      %54 = sbr.rel (0) target = $region57
    $region56: #{xey_transformer_layer.6} parent=1 // pred_region
      _
    $region57: #{xey_transformer_layer.6} parent=1 // pred_fallthru
      _
    // Predicated region
    $region58: #{xey_transformer_layer.6} parent=1 // pred_check
      _
    $region59: #{xey_transformer_layer.6} parent=1 // pred_check_branch
      %56 = sbr.rel (0) target = $region61
    $region60: #{xey_transformer_layer.6} parent=1 // pred_region
      _
    $region61: #{xey_transformer_layer.6} parent=1 // pred_fallthru
      _
    // Predicated region
    $region62: #{xey_transformer_layer.6} parent=1 // pred_check
      _
    $region63: #{xey_transformer_layer.6} parent=1 // pred_check_branch
      %58 = sbr.rel (0) target = $region65
    $region64: #{xey_transformer_layer.6} parent=1 // pred_region
      _
    $region65: #{xey_transformer_layer.6} parent=1 // pred_fallthru
      _
    // Predicated region
    $region66: #{xey_transformer_layer.6} parent=1 // pred_check
      _
    $region67: #{xey_transformer_layer.6} parent=1 // pred_check_branch
      %60 = sbr.rel (0) target = $region69
    $region68: #{xey_transformer_layer.6} parent=1 // pred_region
      _
    $region69: #{xey_transformer_layer.6} parent=1 // pred_fallthru
      _
    // Predicated region
    $region70: #{xey_transformer_layer.6} parent=1 // pred_check
      _
    $region71: #{xey_transformer_layer.6} parent=1 // pred_check_branch
      %62 = sbr.rel (0) target = $region73
    $region72: #{xey_transformer_layer.6} parent=1 // pred_region
      _
    $region73: #{xey_transformer_layer.6} parent=1 // pred_fallthru
      _
    // Predicated region
    $region74: #{xey_transformer_layer.6} parent=1 // pred_check
      _
    $region75: #{xey_transformer_layer.6} parent=1 // pred_check_branch
      %64 = sbr.rel (0) target = $region77
    $region76: #{xey_transformer_layer.6} parent=1 // pred_region
      _
    $region77: #{xey_transformer_layer.6} parent=1 // pred_fallthru
      _
    // Predicated region
    $region78: #{xey_transformer_layer.6} parent=1 // pred_check
      _
    $region79: #{xey_transformer_layer.6} parent=1 // pred_check_branch
      %66 = sbr.rel (0) target = $region81
    $region80: #{xey_transformer_layer.6} parent=1 // pred_region
      _
    $region81: #{xey_transformer_layer.6} parent=1 // pred_fallthru
      _
    // Predicated region
    $region82: #{xey_transformer_layer.6} parent=1 // pred_check
      _
    $region83: #{xey_transformer_layer.6} parent=1 // pred_check_branch
      %68 = sbr.rel (0) target = $region85
    $region84: #{xey_transformer_layer.6} parent=1 // pred_region
      _
    $region85: #{xey_transformer_layer.6} parent=1 // pred_fallthru
      _
    %v70 = vld [vmem:[%s0] sm:$0x3]
    %v71 = vld [vmem:[%s3] sm:$0xff]
    %v72 = vld [vmem:[%s3 + $0x8] sm:$0xff]
    %v73 = vpack.c.bf16 %v70, %v70
    %v74 = vpack.c.bf16 %v72, %v71
    %v75 = vld [vmem:[%s4] sm:$0x1]
    %v77 = vlaneseq
    %v78 = vshrl.u32 %v77, 7
    %v79 = vsub.s32 0, %v78
    %v80 = vrot.slane %v75, %v79
    %vm82 = vcmask 130048
    %v84 = vsel %vm82, %v73, 0
    %86 = vmatprep.subr.bf16.mxu0 0
    %87 = vmatpush1.bf16.msra.mxu0 %v74
    %88 = vmatprep.subr.bf16.mxu0 0
    %89 = vmatpush1.bf16.msra.mxu0 0
    %90 = vmatprep.subr.bf16.mxu0 0
    %91 = vmatpush1.bf16.msra.mxu0 0
    %92 = vmatprep.subr.bf16.mxu0 0
    %93 = vmatpush1.bf16.msra.mxu0 0
    %94 = vmatprep.subr.bf16.mxu0 0
    %95 = vmatpush1.bf16.msra.mxu0 0
    %96 = vmatprep.subr.bf16.mxu0 0
    %97 = vmatpush1.bf16.msra.mxu0 0
    %98 = vmatprep.subr.bf16.mxu0 0
    %99 = vmatpush1.bf16.msra.mxu0 0
    %100 = vmatprep.subr.bf16.mxu0 0
    %101 = vmatpush1.bf16.msra.mxu0 0
    %102 = vmatprep.subr.bf16.mxu0 0
    %103 = vmatpush1.bf16.msra.mxu0 0
    %104 = vmatprep.subr.bf16.mxu0 0
    %105 = vmatpush1.bf16.msra.mxu0 0
    %106 = vmatprep.subr.bf16.mxu0 0
    %107 = vmatpush1.bf16.msra.mxu0 0
    %108 = vmatprep.subr.bf16.mxu0 0
    %109 = vmatpush1.bf16.msra.mxu0 0
    %110 = vmatprep.subr.bf16.mxu0 0
    %111 = vmatpush1.bf16.msra.mxu0 0
    %112 = vmatprep.subr.bf16.mxu0 0
    %113 = vmatpush1.bf16.msra.mxu0 0
    %114 = vmatprep.subr.bf16.mxu0 0
    %115 = vmatpush1.bf16.msra.mxu0 0
    %116 = vmatprep.subr.bf16.mxu0 0
    %117 = vmatpush1.bf16.msra.mxu0 0
    %118 = vmatprep.mubr.bf16.mxu0 0
    %119 = vmatmul.mubr.bf16.gmra.mrb[0].mxu0 %v84
    %v120 = vpop.f32.mrb[0].mxu0
    %v121 = vadd.f32 %v80, %v120
    %v122 = vpop.f32.mrb[0].mxu0
    %v123 = vpop.f32.mrb[0].mxu0
    %v124 = vpop.f32.mrb[0].mxu0
    %125 = vdwg.mxu0
    %v126 = vld [vmem:[%s1] sm:$0x3]
    %v127 = vld [vmem:[%s5] sm:$0xff]
    %v128 = vld [vmem:[%s5 + $0x8] sm:$0xff]
    %v129 = vld [vmem:[%s5 + $0x10] sm:$0xff]
    %v130 = vld [vmem:[%s5 + $0x18] sm:$0xff]
    %v131 = vld [vmem:[%s5 + $0x20] sm:$0xff]
    %v132 = vld [vmem:[%s5 + $0x28] sm:$0xff]
    %v133 = vld [vmem:[%s5 + $0x30] sm:$0xff]
    %v134 = vld [vmem:[%s5 + $0x38] sm:$0xff]
    %v135 = vld [vmem:[%s5 + $0x40] sm:$0xff]
    %v136 = vld [vmem:[%s5 + $0x48] sm:$0xff]
    %v137 = vld [vmem:[%s5 + $0x50] sm:$0xff]
    %v138 = vld [vmem:[%s5 + $0x58] sm:$0xff]
    %v139 = vld [vmem:[%s5 + $0x60] sm:$0xff]
    %v140 = vld [vmem:[%s5 + $0x68] sm:$0xff]
    %v141 = vld [vmem:[%s5 + $0x70] sm:$0xff]
    %v142 = vld [vmem:[%s5 + $0x78] sm:$0xff]
    %v143 = vpack.c.bf16 %v126, %v126
    %v144 = vpack.c.bf16 %v128, %v127
    %v145 = vpack.c.bf16 %v130, %v129
    %v146 = vpack.c.bf16 %v132, %v131
    %v147 = vpack.c.bf16 %v134, %v133
    %v148 = vpack.c.bf16 %v136, %v135
    %v149 = vpack.c.bf16 %v138, %v137
    %v150 = vpack.c.bf16 %v140, %v139
    %v151 = vpack.c.bf16 %v142, %v141
    %152 = vmatprep.subr.bf16.mxu0 0
    %153 = vmatpush1.bf16.msra.mxu0 %v144
    %154 = vmatprep.subr.bf16.mxu0 0
    %155 = vmatpush1.bf16.msra.mxu0 %v145
    %156 = vmatprep.subr.bf16.mxu0 0
    %157 = vmatpush1.bf16.msra.mxu0 %v146
    %158 = vmatprep.subr.bf16.mxu0 0
    %159 = vmatpush1.bf16.msra.mxu0 %v147
    %160 = vmatprep.subr.bf16.mxu0 0
    %161 = vmatpush1.bf16.msra.mxu0 %v148
    %162 = vmatprep.subr.bf16.mxu0 0
    %163 = vmatpush1.bf16.msra.mxu0 %v149
    %164 = vmatprep.subr.bf16.mxu0 0
    %165 = vmatpush1.bf16.msra.mxu0 %v150
    %166 = vmatprep.subr.bf16.mxu0 0
    %167 = vmatpush1.bf16.msra.mxu0 %v151
    %168 = vmatprep.subr.bf16.mxu0 0
    %169 = vmatpush1.bf16.msra.mxu0 0
    %170 = vmatprep.subr.bf16.mxu0 0
    %171 = vmatpush1.bf16.msra.mxu0 0
    %172 = vmatprep.subr.bf16.mxu0 0
    %173 = vmatpush1.bf16.msra.mxu0 0
    %174 = vmatprep.subr.bf16.mxu0 0
    %175 = vmatpush1.bf16.msra.mxu0 0
    %176 = vmatprep.subr.bf16.mxu0 0
    %177 = vmatpush1.bf16.msra.mxu0 0
    %178 = vmatprep.subr.bf16.mxu0 0
    %179 = vmatpush1.bf16.msra.mxu0 0
    %180 = vmatprep.subr.bf16.mxu0 0
    %181 = vmatpush1.bf16.msra.mxu0 0
    %182 = vmatprep.subr.bf16.mxu0 0
    %183 = vmatpush1.bf16.msra.mxu0 0
    %184 = vmatprep.mubr.bf16.mxu0 0
    %185 = vmatmul.mubr.bf16.gmra.mrb[0].mxu0 %v143
    %v186 = vpop.f32.mrb[0].mxu0
    %v187 = vadd.f32 0.0, %v186
    %v188 = vpop.f32.mrb[0].mxu0
    %v189 = vpop.f32.mrb[0].mxu0
    %v190 = vpop.f32.mrb[0].mxu0
    %191 = vdwg.mxu0
    %v192 = vadd.f32 %v121, %v187
    %v193 = vld [vmem:[%s6] sm:$0x1]
    %v195 = vlaneseq
    %v196 = vshrl.u32 %v195, 7
    %v197 = vsub.s32 0, %v196
    %v198 = vrot.slane %v193, %v197
    %v200 = vadd.f32 %v192, %v198
    %v201 = vld [vmem:[%s2] sm:$0x3]
    %v202 = vld [vmem:[%s7] sm:$0xff]
    %v203 = vld [vmem:[%s7 + $0x8] sm:$0xff]
    %v204 = vld [vmem:[%s7 + $0x10] sm:$0xff]
    %v205 = vld [vmem:[%s7 + $0x18] sm:$0xff]
    %v206 = vld [vmem:[%s7 + $0x20] sm:$0xff]
    %v207 = vld [vmem:[%s7 + $0x28] sm:$0xff]
    %v208 = vld [vmem:[%s7 + $0x30] sm:$0xff]
    %v209 = vld [vmem:[%s7 + $0x38] sm:$0xff]
    %v210 = vpack.c.bf16 %v201, %v201
    %v211 = vpack.c.bf16 %v203, %v202
    %v212 = vpack.c.bf16 %v205, %v204
    %v213 = vpack.c.bf16 %v207, %v206
    %v214 = vpack.c.bf16 %v209, %v208
    %vm215 = vcmask 523264
    %v217 = vsel %vm215, %v210, 0
    %219 = vmatprep.subr.bf16.mxu0 0
    %220 = vmatpush1.bf16.msra.mxu0 %v211
    %221 = vmatprep.subr.bf16.mxu0 0
    %222 = vmatpush1.bf16.msra.mxu0 %v212
    %223 = vmatprep.subr.bf16.mxu0 0
    %224 = vmatpush1.bf16.msra.mxu0 %v213
    %225 = vmatprep.subr.bf16.mxu0 0
    %226 = vmatpush1.bf16.msra.mxu0 %v214
    %227 = vmatprep.subr.bf16.mxu0 0
    %228 = vmatpush1.bf16.msra.mxu0 0
    %229 = vmatprep.subr.bf16.mxu0 0
    %230 = vmatpush1.bf16.msra.mxu0 0
    %231 = vmatprep.subr.bf16.mxu0 0
    %232 = vmatpush1.bf16.msra.mxu0 0
    %233 = vmatprep.subr.bf16.mxu0 0
    %234 = vmatpush1.bf16.msra.mxu0 0
    %235 = vmatprep.subr.bf16.mxu0 0
    %236 = vmatpush1.bf16.msra.mxu0 0
    %237 = vmatprep.subr.bf16.mxu0 0
    %238 = vmatpush1.bf16.msra.mxu0 0
    %239 = vmatprep.subr.bf16.mxu0 0
    %240 = vmatpush1.bf16.msra.mxu0 0
    %241 = vmatprep.subr.bf16.mxu0 0
    %242 = vmatpush1.bf16.msra.mxu0 0
    %243 = vmatprep.subr.bf16.mxu0 0
    %244 = vmatpush1.bf16.msra.mxu0 0
    %245 = vmatprep.subr.bf16.mxu0 0
    %246 = vmatpush1.bf16.msra.mxu0 0
    %247 = vmatprep.subr.bf16.mxu0 0
    %248 = vmatpush1.bf16.msra.mxu0 0
    %249 = vmatprep.subr.bf16.mxu0 0
    %250 = vmatpush1.bf16.msra.mxu0 0
    %251 = vmatprep.mubr.bf16.mxu0 0
    %252 = vmatmul.mubr.bf16.gmra.mrb[0].mxu0 %v217
    %v253 = vpop.f32.mrb[0].mxu0
    %v254 = vadd.f32 0.0, %v253
    %v255 = vpop.f32.mrb[0].mxu0
    %v256 = vpop.f32.mrb[0].mxu0
    %v257 = vpop.f32.mrb[0].mxu0
    %258 = vdwg.mxu0
    %v259 = vadd.f32 %v200, %v254
    %v260 = vld [vmem:[%s8] sm:$0x1]
    %v262 = vlaneseq
    %v263 = vshrl.u32 %v262, 7
    %v264 = vsub.s32 0, %v263
    %v265 = vrot.slane %v260, %v264
    %v267 = vadd.f32 %v259, %v265
    %v268 = vld [vmem:[%s9] sm:$0xff]
    %v269 = vld [vmem:[%s9 + $0x8] sm:$0xff]
    %v270 = vpack.c.bf16 %v267, %v267
    %v271 = vpack.c.bf16 %v269, %v268
    %v272 = vld [vmem:[%s10] sm:$0x1]
    %v274 = vlaneseq
    %v275 = vshrl.u32 %v274, 7
    %v276 = vsub.s32 0, %v275
    %v277 = vrot.slane %v272, %v276
    %v280 = vsel %vm82, %v270, 0
    %282 = vmatprep.subr.bf16.mxu0 0
    %283 = vmatpush1.bf16.msra.mxu0 %v271
    %284 = vmatprep.subr.bf16.mxu0 0
    %285 = vmatpush1.bf16.msra.mxu0 0
    %286 = vmatprep.subr.bf16.mxu0 0
    %287 = vmatpush1.bf16.msra.mxu0 0
    %288 = vmatprep.subr.bf16.mxu0 0
    %289 = vmatpush1.bf16.msra.mxu0 0
    %290 = vmatprep.subr.bf16.mxu0 0
    %291 = vmatpush1.bf16.msra.mxu0 0
    %292 = vmatprep.subr.bf16.mxu0 0
    %293 = vmatpush1.bf16.msra.mxu0 0
    %294 = vmatprep.subr.bf16.mxu0 0
    %295 = vmatpush1.bf16.msra.mxu0 0
    %296 = vmatprep.subr.bf16.mxu0 0
    %297 = vmatpush1.bf16.msra.mxu0 0
    %298 = vmatprep.subr.bf16.mxu0 0
    %299 = vmatpush1.bf16.msra.mxu0 0
    %300 = vmatprep.subr.bf16.mxu0 0
    %301 = vmatpush1.bf16.msra.mxu0 0
    %302 = vmatprep.subr.bf16.mxu0 0
    %303 = vmatpush1.bf16.msra.mxu0 0
    %304 = vmatprep.subr.bf16.mxu0 0
    %305 = vmatpush1.bf16.msra.mxu0 0
    %306 = vmatprep.subr.bf16.mxu0 0
    %307 = vmatpush1.bf16.msra.mxu0 0
    %308 = vmatprep.subr.bf16.mxu0 0
    %309 = vmatpush1.bf16.msra.mxu0 0
    %310 = vmatprep.subr.bf16.mxu0 0
    %311 = vmatpush1.bf16.msra.mxu0 0
    %312 = vmatprep.subr.bf16.mxu0 0
    %313 = vmatpush1.bf16.msra.mxu0 0
    %314 = vmatprep.mubr.bf16.mxu0 0
    %315 = vmatmul.mubr.bf16.gmra.mrb[0].mxu0 %v280
    %v316 = vpop.f32.mrb[0].mxu0
    %v317 = vadd.f32 %v277, %v316
    %v318 = vpop.f32.mrb[0].mxu0
    %v319 = vpop.f32.mrb[0].mxu0
    %v320 = vpop.f32.mrb[0].mxu0
    %321 = vdwg.mxu0
    %v322 = vmax.f32 %v317, 0.0
    %v323 = vld [vmem:[%s11] sm:$0xff]
    %v324 = vld [vmem:[%s11 + $0x8] sm:$0xff]
    %v325 = vpack.c.bf16 %v322, %v322
    %v326 = vpack.c.bf16 %v324, %v323
    %v327 = vld [vmem:[%s12] sm:$0x1]
    %v329 = vlaneseq
    %v330 = vshrl.u32 %v329, 7
    %v331 = vsub.s32 0, %v330
    %v332 = vrot.slane %v327, %v331
    %v335 = vsel %vm82, %v325, 0
    %337 = vmatprep.subr.bf16.mxu0 0
    %338 = vmatpush1.bf16.msra.mxu0 %v326
    %339 = vmatprep.subr.bf16.mxu0 0
    %340 = vmatpush1.bf16.msra.mxu0 0
    %341 = vmatprep.subr.bf16.mxu0 0
    %342 = vmatpush1.bf16.msra.mxu0 0
    %343 = vmatprep.subr.bf16.mxu0 0
    %344 = vmatpush1.bf16.msra.mxu0 0
    %345 = vmatprep.subr.bf16.mxu0 0
    %346 = vmatpush1.bf16.msra.mxu0 0
    %347 = vmatprep.subr.bf16.mxu0 0
    %348 = vmatpush1.bf16.msra.mxu0 0
    %349 = vmatprep.subr.bf16.mxu0 0
    %350 = vmatpush1.bf16.msra.mxu0 0
    %351 = vmatprep.subr.bf16.mxu0 0
    %352 = vmatpush1.bf16.msra.mxu0 0
    %353 = vmatprep.subr.bf16.mxu0 0
    %354 = vmatpush1.bf16.msra.mxu0 0
    %355 = vmatprep.subr.bf16.mxu0 0
    %356 = vmatpush1.bf16.msra.mxu0 0
    %357 = vmatprep.subr.bf16.mxu0 0
    %358 = vmatpush1.bf16.msra.mxu0 0
    %359 = vmatprep.subr.bf16.mxu0 0
    %360 = vmatpush1.bf16.msra.mxu0 0
    %361 = vmatprep.subr.bf16.mxu0 0
    %362 = vmatpush1.bf16.msra.mxu0 0
    %363 = vmatprep.subr.bf16.mxu0 0
    %364 = vmatpush1.bf16.msra.mxu0 0
    %365 = vmatprep.subr.bf16.mxu0 0
    %366 = vmatpush1.bf16.msra.mxu0 0
    %367 = vmatprep.subr.bf16.mxu0 0
    %368 = vmatpush1.bf16.msra.mxu0 0
    %369 = vmatprep.mubr.bf16.mxu0 0
    %370 = vmatmul.mubr.bf16.gmra.mrb[0].mxu0 %v335
    %v371 = vpop.f32.mrb[0].mxu0
    %v372 = vadd.f32 %v332, %v371
    %v373 = vpop.f32.mrb[0].mxu0
    %v374 = vpop.f32.mrb[0].mxu0
    %v375 = vpop.f32.mrb[0].mxu0
    %376 = vdwg.mxu0
    %v377 = vadd.f32 %v70, %v372
    %v378 = vld [vmem:[%s13] sm:$0x1]
    %v379 = vld [vmem:[%s14] sm:$0x1]
    %vm380 = vcmask 123904
    %v381 = vsel %vm380, %v377, 0.0
    %382 = vadd.xlane.f32.xlu0 %v381
    %v383 = vpop.xlane.xlu0 %382
    %v384 = vrcp.pop 16.0
    %v385 = vmul.f32 %v383, %v384
    %v386 = vsub.f32 %v377, %v385
    %v387 = vmul.f32 %v386, %v386
    %v388 = vsel %vm380, %v387, 0.0
    %389 = vadd.xlane.f32.xlu0 %v388
    %v390 = vpop.xlane.xlu0 %389
    %v391 = vmul.f32 %v390, %v384
    %v392 = vadd.f32 %v391, 1e-05
    %v393 = vrsqrt.pop %v392
    %v394 = vmul.f32 %v386, %v393
    %v396 = vlaneseq
    %v397 = vshrl.u32 %v396, 7
    %v398 = vsub.s32 0, %v397
    %v399 = vrot.slane %v378, %v398
    %v401 = vmul.f32 %v394, %v399
    %v403 = vlaneseq
    %v404 = vshrl.u32 %v403, 7
    %v405 = vsub.s32 0, %v404
    %v406 = vrot.slane %v379, %v405
    %v408 = vadd.f32 %v401, %v406
    %v409 = vld [vmem:[%s15] sm:$0xff]
    %v410 = vld [vmem:[%s15 + $0x8] sm:$0xff]
    %v411 = vpack.c.bf16 %v408, %v408
    %v412 = vpack.c.bf16 %v410, %v409
    %v413 = vld [vmem:[%s16] sm:$0x1]
    %v415 = vlaneseq
    %v416 = vshrl.u32 %v415, 7
    %v417 = vsub.s32 0, %v416
    %v418 = vrot.slane %v413, %v417
    %v421 = vsel %vm82, %v411, 0
    %423 = vmatprep.subr.bf16.mxu0 0
    %424 = vmatpush1.bf16.msra.mxu0 %v412
    %425 = vmatprep.subr.bf16.mxu0 0
    %426 = vmatpush1.bf16.msra.mxu0 0
    %427 = vmatprep.subr.bf16.mxu0 0
    %428 = vmatpush1.bf16.msra.mxu0 0
    %429 = vmatprep.subr.bf16.mxu0 0
    %430 = vmatpush1.bf16.msra.mxu0 0
    %431 = vmatprep.subr.bf16.mxu0 0
    %432 = vmatpush1.bf16.msra.mxu0 0
    %433 = vmatprep.subr.bf16.mxu0 0
    %434 = vmatpush1.bf16.msra.mxu0 0
    %435 = vmatprep.subr.bf16.mxu0 0
    %436 = vmatpush1.bf16.msra.mxu0 0
    %437 = vmatprep.subr.bf16.mxu0 0
    %438 = vmatpush1.bf16.msra.mxu0 0
    %439 = vmatprep.subr.bf16.mxu0 0
    %440 = vmatpush1.bf16.msra.mxu0 0
    %441 = vmatprep.subr.bf16.mxu0 0
    %442 = vmatpush1.bf16.msra.mxu0 0
    %443 = vmatprep.subr.bf16.mxu0 0
    %444 = vmatpush1.bf16.msra.mxu0 0
    %445 = vmatprep.subr.bf16.mxu0 0
    %446 = vmatpush1.bf16.msra.mxu0 0
    %447 = vmatprep.subr.bf16.mxu0 0
    %448 = vmatpush1.bf16.msra.mxu0 0
    %449 = vmatprep.subr.bf16.mxu0 0
    %450 = vmatpush1.bf16.msra.mxu0 0
    %451 = vmatprep.subr.bf16.mxu0 0
    %452 = vmatpush1.bf16.msra.mxu0 0
    %453 = vmatprep.subr.bf16.mxu0 0
    %454 = vmatpush1.bf16.msra.mxu0 0
    %455 = vmatprep.mubr.bf16.mxu0 0
    %456 = vmatmul.mubr.bf16.gmra.mrb[0].mxu0 %v421
    %v457 = vpop.f32.mrb[0].mxu0
    %v458 = vadd.f32 %v418, %v457
    %v459 = vpop.f32.mrb[0].mxu0
    %v460 = vpop.f32.mrb[0].mxu0
    %v461 = vpop.f32.mrb[0].mxu0
    %462 = vdwg.mxu0
    %v463 = vmax.f32 %v458, 0.0
    %v464 = vld [vmem:[%s17] sm:$0xff]
    %v465 = vld [vmem:[%s17 + $0x8] sm:$0xff]
    %v466 = vld [vmem:[%s17 + $0x10] sm:$0xff]
    %v467 = vld [vmem:[%s17 + $0x18] sm:$0xff]
    %v468 = vld [vmem:[%s17 + $0x20] sm:$0xff]
    %v469 = vld [vmem:[%s17 + $0x28] sm:$0xff]
    %v470 = vld [vmem:[%s17 + $0x30] sm:$0xff]
    %v471 = vld [vmem:[%s17 + $0x38] sm:$0xff]
    %v472 = vpack.c.bf16 %v463, %v463
    %v473 = vpack.c.bf16 %v465, %v464
    %v474 = vpack.c.bf16 %v467, %v466
    %v475 = vpack.c.bf16 %v469, %v468
    %v476 = vpack.c.bf16 %v471, %v470
    %v477 = vld [vmem:[%s18] sm:$0x1]
    %v479 = vlaneseq
    %v480 = vshrl.u32 %v479, 7
    %v481 = vsub.s32 0, %v480
    %v482 = vrot.slane %v477, %v481
    %v485 = vsel %vm215, %v472, 0
    %487 = vmatprep.subr.bf16.mxu0 0
    %488 = vmatpush1.bf16.msra.mxu0 %v473
    %489 = vmatprep.subr.bf16.mxu0 0
    %490 = vmatpush1.bf16.msra.mxu0 %v474
    %491 = vmatprep.subr.bf16.mxu0 0
    %492 = vmatpush1.bf16.msra.mxu0 %v475
    %493 = vmatprep.subr.bf16.mxu0 0
    %494 = vmatpush1.bf16.msra.mxu0 %v476
    %495 = vmatprep.subr.bf16.mxu0 0
    %496 = vmatpush1.bf16.msra.mxu0 0
    %497 = vmatprep.subr.bf16.mxu0 0
    %498 = vmatpush1.bf16.msra.mxu0 0
    %499 = vmatprep.subr.bf16.mxu0 0
    %500 = vmatpush1.bf16.msra.mxu0 0
    %501 = vmatprep.subr.bf16.mxu0 0
    %502 = vmatpush1.bf16.msra.mxu0 0
    %503 = vmatprep.subr.bf16.mxu0 0
    %504 = vmatpush1.bf16.msra.mxu0 0
    %505 = vmatprep.subr.bf16.mxu0 0
    %506 = vmatpush1.bf16.msra.mxu0 0
    %507 = vmatprep.subr.bf16.mxu0 0
    %508 = vmatpush1.bf16.msra.mxu0 0
    %509 = vmatprep.subr.bf16.mxu0 0
    %510 = vmatpush1.bf16.msra.mxu0 0
    %511 = vmatprep.subr.bf16.mxu0 0
    %512 = vmatpush1.bf16.msra.mxu0 0
    %513 = vmatprep.subr.bf16.mxu0 0
    %514 = vmatpush1.bf16.msra.mxu0 0
    %515 = vmatprep.subr.bf16.mxu0 0
    %516 = vmatpush1.bf16.msra.mxu0 0
    %517 = vmatprep.subr.bf16.mxu0 0
    %518 = vmatpush1.bf16.msra.mxu0 0
    %519 = vmatprep.mubr.bf16.mxu0 0
    %520 = vmatmul.mubr.bf16.gmra.mrb[0].mxu0 %v485
    %v521 = vpop.f32.mrb[0].mxu0
    %v522 = vadd.f32 %v482, %v521
    %v523 = vpop.f32.mrb[0].mxu0
    %v524 = vpop.f32.mrb[0].mxu0
    %v525 = vpop.f32.mrb[0].mxu0
    %526 = vdwg.mxu0
    %v527 = vadd.f32 %v408, %v522
    %v528 = vld [vmem:[%s19] sm:$0x1]
    %v529 = vld [vmem:[%s20] sm:$0x1]
    %v530 = vsel %vm380, %v527, 0.0
    %531 = vadd.xlane.f32.xlu0 %v530
    %v532 = vpop.xlane.xlu0 %531
    %v533 = vmul.f32 %v532, %v384
    %v534 = vsub.f32 %v527, %v533
    %v535 = vmul.f32 %v534, %v534
    %v536 = vsel %vm380, %v535, 0.0
    %537 = vadd.xlane.f32.xlu0 %v536
    %v538 = vpop.xlane.xlu0 %537
    %v539 = vmul.f32 %v538, %v384
    %v540 = vadd.f32 %v539, 1e-05
    %v541 = vrsqrt.pop %v540
    %v542 = vmul.f32 %v534, %v541
    %v544 = vlaneseq
    %v545 = vshrl.u32 %v544, 7
    %v546 = vsub.s32 0, %v545
    %v547 = vrot.slane %v528, %v546
    %v549 = vmul.f32 %v542, %v547
    %v551 = vlaneseq
    %v552 = vshrl.u32 %v551, 7
    %v553 = vsub.s32 0, %v552
    %v554 = vrot.slane %v529, %v553
    %v556 = vadd.f32 %v549, %v554
    %557 = vst.msk [vmem:[#allocation2] sm:$0x3] %vm380, %v556
    // Predicated region
    $region86: #{xey_transformer_layer.6} parent=1 // pred_check
      _
    $region87: #{xey_transformer_layer.6} parent=1 // pred_check_branch
      %559 = sbr.rel (0) target = $region89
    $region88: #{xey_transformer_layer.6} parent=1 // pred_region
      %s561 = ssub.s32 32, 32
      %562 = vsyncadd [#allocation3], %s561
      %s564 = sshll.u32 [#allocation2], 4
      %s565 = int_to_ptr.vmem [resolvable:$true] %s564
      %567 = dma.vmem_to_hbm [thread:$0]  %s565, 32, %s21, [#allocation3]
    $region89: #{xey_transformer_layer.6} parent=1 // pred_fallthru
      _
    // Predicated region
    $region90: #{xey_transformer_layer.6} parent=1 // pred_check
      _
    $region91: #{xey_transformer_layer.6} parent=1 // pred_check_branch
      %569 = sbr.rel (0) target = $region93
    $region92: #{xey_transformer_layer.6} parent=1 // pred_region
      %570 = dma.done [#allocation3], 32
    $region93: #{xey_transformer_layer.6} parent=1 // pred_fallthru
      _
    %571 = vsyncpa [#allocation3], 1

// kernel: xey_transformer_layer.5
$region0: #{xey_transformer_layer.5}
  #allocation0 [shape = 'u32[]', space=smem, size = 0x4, offset = 0x4, fixed_abs, tag = 'smem constant byte address 0x4 - core index']
  #allocation1 [shape = 'u32[144,128]{1,0:T(1,128)}', space=vmem, size = 0x12000, scoped, tag = 'internal scratch']
  #allocation2 [shape = 'f32[1,16]{1,0:T(1,128)}', space=vmem, size = 0x200, scoped, tag = 'scratch operand']
  #allocation3 [shape = 'f32[1,16]{1,0:T(1,128)}', space=vmem, size = 0x200, scoped, tag = 'scratch operand']
  #allocation4 [shape = 'f32[1,16]{1,0:T(1,128)}', space=vmem, size = 0x200, scoped, tag = 'scratch operand']
  #allocation5 [shape = 'f32[1,16]{1,0:T(1,128)}', space=vmem, size = 0x200, scoped, tag = 'scratch operand']
  %s0 = inlined_call_operand.vmem [shape: f32[2,8,96], index: 0, kind: input, shape index: {}]
  %s1 = inlined_call_operand.vmem [shape: f32[2,8,8,16], index: 1, kind: input, shape index: {}]
  %s2 = inlined_call_operand.vmem [shape: f32[2,8,1], index: 2, kind: input, shape index: {}]
  %s3 = inlined_call_operand.vmem [shape: f32[2,1,16], index: 3, kind: input, shape index: {}]
  %s4 = inlined_call_operand.vmem [shape: f32[16,128], index: 4, kind: input, shape index: {}]
  %s5 = inlined_call_operand.vmem [shape: f32[1,128], index: 5, kind: input, shape index: {}]
  %s6 = inlined_call_operand.vmem [shape: f32[16,64], index: 6, kind: input, shape index: {}]
  %s7 = inlined_call_operand.hbm [shape: f32[1,64], index: 7, kind: input, shape index: {}]
  %s8 = inlined_call_operand.vmem [shape: f32[32,16], index: 8, kind: input, shape index: {}]
  %s9 = inlined_call_operand.hbm [shape: f32[1,16], index: 9, kind: input, shape index: {}]
  %s10 = inlined_call_operand.vmem [shape: f32[32,32], index: 10, kind: input, shape index: {}]
  %s11 = inlined_call_operand.vmem [shape: f32[1,32], index: 11, kind: input, shape index: {}]
  %s12 = inlined_call_operand.vmem [shape: f32[1,16], index: 12, kind: input, shape index: {}]
  %s13 = inlined_call_operand.vmem [shape: f32[1,16], index: 13, kind: input, shape index: {}]
  %s14 = inlined_call_operand.hbm [shape: f32[16,32], index: 14, kind: input, shape index: {}]
  %s15 = inlined_call_operand.hbm [shape: f32[1,32], index: 15, kind: input, shape index: {}]
  %s16 = inlined_call_operand.vmem [shape: f32[32,16], index: 16, kind: input, shape index: {}]
  %s17 = inlined_call_operand.hbm [shape: f32[1,16], index: 17, kind: input, shape index: {}]
  %s18 = inlined_call_operand.vmem [shape: f32[1,16], index: 18, kind: input, shape index: {}]
  %s19 = inlined_call_operand.vmem [shape: f32[1,16], index: 19, kind: input, shape index: {}]
  %s20 = inlined_call_operand.hbm [shape: f32[2,8,8,16], index: 20, kind: output, shape index: {0}]
  %s21 = inlined_call_operand.vmem [shape: f32[2,8,32], index: 21, kind: output, shape index: {1}]
  %s22 = inlined_call_operand.vmem [shape: f32[2,1,64], index: 22, kind: output, shape index: {2}]
  %23 = xla_tuple %s20, %s21, %s22
  %s24 = sld [smem:[#allocation0]]
  $region157: #{xey_transformer_layer.5} parent=0
    _
  %s26 = ssub.s32 1, %s24
  %s27 = scalar_select 0, %s26, %s24
  $region1: #{xey_transformer_layer.5} parent=0
    #allocation6 [shape = 'u8[512]{0}', space=vmem, size = 0x400, scoped, tag = 'input window, operand 7, single buffered']
    #allocation7 [shape = 's32[2]{0}', space=sflag, size = 0x8, scoped, tag = 'scoped memory for xey_transformer_layer.5']
    #allocation8 [shape = 's32[2]{0}', space=sflag, size = 0x8, scoped, tag = 'scoped memory for xey_transformer_layer.5']
    #allocation9 [shape = 'u8[512]{0}', space=vmem, size = 0x400, scoped, tag = 'input window, operand 9, single buffered']
    #allocation10 [shape = 's32[1]{0}', space=sflag, size = 0x4, scoped, tag = 'scoped memory for xey_transformer_layer.5']
    #allocation11 [shape = 'u8[8192]{0}', space=vmem, size = 0x2000, scoped, tag = 'input window, operand 14, single buffered']
    #allocation12 [shape = 'u8[512]{0}', space=vmem, size = 0x400, scoped, tag = 'input window, operand 15, single buffered']
    #allocation13 [shape = 's32[1]{0}', space=sflag, size = 0x4, scoped, tag = 'scoped memory for xey_transformer_layer.5']
    #allocation14 [shape = 'u8[512]{0}', space=vmem, size = 0x400, scoped, tag = 'input window, operand 17, single buffered']
    #allocation15 [shape = 'u8[65536]{0}', space=vmem, size = 0x10000, scoped, tag = 'output window, operand 0']
    %28 = vsyncpa [#allocation7], 0
    %29 = vsyncpa [#allocation10], 0
    %30 = vsyncpa [#allocation13], 0
    %31 = vsyncpa [#allocation8], 0
    %s32 = scalar_lea.sflag [#allocation8], 1
    %33 = vsyncpa %s32, 0
    loop: start=0, step=1, limit=4
    $region2: #{xey_transformer_layer.5} parent=1 // loop_pre_header
      _
    $region3: #{xey_transformer_layer.5} parent=1 // loop_header
      %s35 = sphi 0, %s39
      %p36 = scmp.ge.s32.totalorder %s35, 4
      %s42 = sphi 0, %s54
      %s43 = sphi 0, %s50
      %s44 = sphi 0, %s42
      %s45 = sphi 0, %s43
      %s46 = sphi 0, %s44
      %s47 = sphi 0, %s45
      %s57 = sphi 0, %s59
      %s60 = sphi 0, %s57
      %s61 = sphi 0, %s60
      %s77 = sphi 0, %s61
      %s85 = sphi 0, %s87
      %s88 = sphi 0, %s85
      %s89 = sphi 0, %s88
      %s105 = sphi 0, %s89
      %s111 = sphi 0, %s113
      %s114 = sphi 0, %s111
      %s115 = sphi 0, %s114
      %s131 = sphi 0, %s115
      %s137 = sphi 0, %s139
      %s140 = sphi 0, %s137
      %s141 = sphi 0, %s140
      %s157 = sphi 0, %s141
      %s161 = sphi 0, %s161
      %s163 = sphi 0, %s161
      %s164 = sphi 0, %s163
      %s178 = sphi 0, %s164
      %s182 = sphi 0, %s182
      %s184 = sphi 0, %s182
      %s185 = sphi 0, %s184
      %s199 = sphi 0, %s185
      %s203 = sphi 0, %s203
      %s205 = sphi 0, %s203
      %s206 = sphi 0, %s205
      %s220 = sphi 0, %s206
      %s224 = sphi 0, %s224
      %s226 = sphi 0, %s224
      %s227 = sphi 0, %s226
      %s241 = sphi 0, %s227
      %s245 = sphi 0, %s245
      %s247 = sphi 0, %s245
      %s248 = sphi 0, %s247
      %s262 = sphi 0, %s248
      %s266 = sphi 0, %s266
      %s268 = sphi 0, %s266
      %s269 = sphi 0, %s268
      %s283 = sphi 0, %s269
      %s287 = sphi 0, %s287
      %s289 = sphi 0, %s287
      %s290 = sphi 0, %s289
      %s304 = sphi 0, %s290
      %s308 = sphi 0, %s308
      %s310 = sphi 0, %s308
      %s311 = sphi 0, %s310
      %s325 = sphi 0, %s311
      %s329 = sphi 0, %s329
      %s331 = sphi 0, %s329
      %s332 = sphi 0, %s331
      %s346 = sphi 0, %s332
      %s350 = sphi 0, %s350
      %s352 = sphi 0, %s350
      %s353 = sphi 0, %s352
      %s367 = sphi 0, %s353
      %s371 = sphi 0, %s371
      %s373 = sphi 0, %s371
      %s374 = sphi 0, %s373
      %s388 = sphi 0, %s374
      %s392 = sphi 0, %s392
      %s394 = sphi 0, %s392
      %s395 = sphi 0, %s394
      %s409 = sphi 0, %s395
      %s413 = sphi 0, %s413
      %s415 = sphi 0, %s413
      %s416 = sphi 0, %s415
      %s430 = sphi 0, %s416
      %s434 = sphi 0, %s434
      %s436 = sphi 0, %s434
      %s437 = sphi 0, %s436
      %s451 = sphi 0, %s437
      %s455 = sphi 0, %s455
      %s457 = sphi 0, %s455
      %s458 = sphi 0, %s457
      %s472 = sphi 0, %s458
      %s476 = sphi 0, %s476
      %s478 = sphi 0, %s476
      %s479 = sphi 0, %s478
      %s493 = sphi 0, %s479
      %s501 = sphi 0, %s503
      %s504 = sphi 0, %s501
      %s505 = sphi 0, %s504
      %s521 = sphi 0, %s505
      %s529 = sphi 0, %s531
      %s532 = sphi 0, %s529
      %s533 = sphi 0, %s532
      %s549 = sphi 0, %s533
      %s555 = sphi 0, %s557
      %s558 = sphi 0, %s555
      %s559 = sphi 0, %s558
      %s575 = sphi 0, %s559
    $region4: #{xey_transformer_layer.5} parent=1 // loop_header_branch
      %38 = sbr.rel (%p36) target = $region8
    $region5: #{xey_transformer_layer.5} parent=1 // loop_body
      %s40 = ssub.s32 %s35, 1
      %s41 = ssub.s32 %s35, 2
      %s48 = sadd.s32 1, %s43
      %p49 = scmp.ge.s32.totalorder %s48, 1
      %s50 = scalar_select %p49, 0, %s48
      %s51 = sadd.s32 1, %s42
      %s52 = scalar_select %p49, %s51, %s42
      %p53 = scmp.ge.s32.totalorder %s52, 2
      %s54 = scalar_select %p53, 0, %s52
      %s55 = ssub.s32 %s42, %s54
      %p56 = scmp.eq.s32.totalorder %s55, 0
      %s58 = sadd.s32 %s57, 1
      %s59 = scalar_select %p56, %s57, %s58
      %p62 = pneg %p56
      %p63 = scmp.eq.s32.totalorder %s35, 1
      %p64 = por %p62, %p63
      %p65 = scmp.ne.s32.totalorder %s57, %s60
      %p66 = scmp.eq.s32.totalorder %s35, 0
      %p67 = por %p65, %p66
      %p68 = scmp.ne.s32.totalorder %s57, %s60
      %p69 = scmp.eq.s32.totalorder %s40, 1
      %p70 = por %p68, %p69
      %p71 = scmp.ne.s32.totalorder %s60, %s61
      %p72 = scmp.eq.s32.totalorder %s40, 0
      %p73 = por %p71, %p72
      %p74 = scmp.ne.s32.totalorder %s60, %s61
      %p75 = scmp.eq.s32.totalorder %s41, 1
      %p76 = por %p74, %p75
      %p78 = scmp.ne.s32.totalorder %s61, %s77
      %p79 = scmp.eq.s32.totalorder %s41, 0
      %p80 = por %p78, %p79
      %s81 = ssub.s32 %s42, %s54
      %s82 = ssub.s32 %s43, %s50
      %s83 = sor.u32 %s81, %s82
      %p84 = scmp.eq.s32.totalorder %s83, 0
      %s86 = sadd.s32 %s85, 1
      %s87 = scalar_select %p84, %s85, %s86
      %p90 = pneg %p84
      %p91 = scmp.eq.s32.totalorder %s35, 1
      %p92 = por %p90, %p91
      %p93 = scmp.ne.s32.totalorder %s85, %s88
      %p94 = scmp.eq.s32.totalorder %s35, 0
      %p95 = por %p93, %p94
      %p96 = scmp.ne.s32.totalorder %s85, %s88
      %p97 = scmp.eq.s32.totalorder %s40, 1
      %p98 = por %p96, %p97
      %p99 = scmp.ne.s32.totalorder %s88, %s89
      %p100 = scmp.eq.s32.totalorder %s40, 0
      %p101 = por %p99, %p100
      %p102 = scmp.ne.s32.totalorder %s88, %s89
      %p103 = scmp.eq.s32.totalorder %s41, 1
      %p104 = por %p102, %p103
      %p106 = scmp.ne.s32.totalorder %s89, %s105
      %p107 = scmp.eq.s32.totalorder %s41, 0
      %p108 = por %p106, %p107
      %s109 = ssub.s32 %s42, %s54
      %p110 = scmp.eq.s32.totalorder %s109, 0
      %s112 = sadd.s32 %s111, 1
      %s113 = scalar_select %p110, %s111, %s112
      %p116 = pneg %p110
      %p117 = scmp.eq.s32.totalorder %s35, 1
      %p118 = por %p116, %p117
      %p119 = scmp.ne.s32.totalorder %s111, %s114
      %p120 = scmp.eq.s32.totalorder %s35, 0
      %p121 = por %p119, %p120
      %p122 = scmp.ne.s32.totalorder %s111, %s114
      %p123 = scmp.eq.s32.totalorder %s40, 1
      %p124 = por %p122, %p123
      %p125 = scmp.ne.s32.totalorder %s114, %s115
      %p126 = scmp.eq.s32.totalorder %s40, 0
      %p127 = por %p125, %p126
      %p128 = scmp.ne.s32.totalorder %s114, %s115
      %p129 = scmp.eq.s32.totalorder %s41, 1
      %p130 = por %p128, %p129
      %p132 = scmp.ne.s32.totalorder %s115, %s131
      %p133 = scmp.eq.s32.totalorder %s41, 0
      %p134 = por %p132, %p133
      %s135 = ssub.s32 %s42, %s54
      %p136 = scmp.eq.s32.totalorder %s135, 0
      %s138 = sadd.s32 %s137, 1
      %s139 = scalar_select %p136, %s137, %s138
      %p142 = pneg %p136
      %p143 = scmp.eq.s32.totalorder %s35, 1
      %p144 = por %p142, %p143
      %p145 = scmp.ne.s32.totalorder %s137, %s140
      %p146 = scmp.eq.s32.totalorder %s35, 0
      %p147 = por %p145, %p146
      %p148 = scmp.ne.s32.totalorder %s137, %s140
      %p149 = scmp.eq.s32.totalorder %s40, 1
      %p150 = por %p148, %p149
      %p151 = scmp.ne.s32.totalorder %s140, %s141
      %p152 = scmp.eq.s32.totalorder %s40, 0
      %p153 = por %p151, %p152
      %p154 = scmp.ne.s32.totalorder %s140, %s141
      %p155 = scmp.eq.s32.totalorder %s41, 1
      %p156 = por %p154, %p155
      %p158 = scmp.ne.s32.totalorder %s141, %s157
      %p159 = scmp.eq.s32.totalorder %s41, 0
      %p160 = por %p158, %p159
      %s162 = sadd.s32 %s161, 1
      %p165 = scmp.eq.s32.totalorder %s35, 1
      %p166 = scmp.ne.s32.totalorder %s161, %s163
      %p167 = scmp.eq.s32.totalorder %s35, 0
      %p168 = por %p166, %p167
      %p169 = scmp.ne.s32.totalorder %s161, %s163
      %p170 = scmp.eq.s32.totalorder %s40, 1
      %p171 = por %p169, %p170
      %p172 = scmp.ne.s32.totalorder %s163, %s164
      %p173 = scmp.eq.s32.totalorder %s40, 0
      %p174 = por %p172, %p173
      %p175 = scmp.ne.s32.totalorder %s163, %s164
      %p176 = scmp.eq.s32.totalorder %s41, 1
      %p177 = por %p175, %p176
      %p179 = scmp.ne.s32.totalorder %s164, %s178
      %p180 = scmp.eq.s32.totalorder %s41, 0
      %p181 = por %p179, %p180
      %s183 = sadd.s32 %s182, 1
      %p186 = scmp.eq.s32.totalorder %s35, 1
      %p187 = scmp.ne.s32.totalorder %s182, %s184
      %p188 = scmp.eq.s32.totalorder %s35, 0
      %p189 = por %p187, %p188
      %p190 = scmp.ne.s32.totalorder %s182, %s184
      %p191 = scmp.eq.s32.totalorder %s40, 1
      %p192 = por %p190, %p191
      %p193 = scmp.ne.s32.totalorder %s184, %s185
      %p194 = scmp.eq.s32.totalorder %s40, 0
      %p195 = por %p193, %p194
      %p196 = scmp.ne.s32.totalorder %s184, %s185
      %p197 = scmp.eq.s32.totalorder %s41, 1
      %p198 = por %p196, %p197
      %p200 = scmp.ne.s32.totalorder %s185, %s199
      %p201 = scmp.eq.s32.totalorder %s41, 0
      %p202 = por %p200, %p201
      %s204 = sadd.s32 %s203, 1
      %p207 = scmp.eq.s32.totalorder %s35, 1
      %p208 = scmp.ne.s32.totalorder %s203, %s205
      %p209 = scmp.eq.s32.totalorder %s35, 0
      %p210 = por %p208, %p209
      %p211 = scmp.ne.s32.totalorder %s203, %s205
      %p212 = scmp.eq.s32.totalorder %s40, 1
      %p213 = por %p211, %p212
      %p214 = scmp.ne.s32.totalorder %s205, %s206
      %p215 = scmp.eq.s32.totalorder %s40, 0
      %p216 = por %p214, %p215
      %p217 = scmp.ne.s32.totalorder %s205, %s206
      %p218 = scmp.eq.s32.totalorder %s41, 1
      %p219 = por %p217, %p218
      %p221 = scmp.ne.s32.totalorder %s206, %s220
      %p222 = scmp.eq.s32.totalorder %s41, 0
      %p223 = por %p221, %p222
      %s225 = sadd.s32 %s224, 1
      %p228 = scmp.eq.s32.totalorder %s35, 1
      %p229 = scmp.ne.s32.totalorder %s224, %s226
      %p230 = scmp.eq.s32.totalorder %s35, 0
      %p231 = por %p229, %p230
      %p232 = scmp.ne.s32.totalorder %s224, %s226
      %p233 = scmp.eq.s32.totalorder %s40, 1
      %p234 = por %p232, %p233
      %p235 = scmp.ne.s32.totalorder %s226, %s227
      %p236 = scmp.eq.s32.totalorder %s40, 0
      %p237 = por %p235, %p236
      %p238 = scmp.ne.s32.totalorder %s226, %s227
      %p239 = scmp.eq.s32.totalorder %s41, 1
      %p240 = por %p238, %p239
      %p242 = scmp.ne.s32.totalorder %s227, %s241
      %p243 = scmp.eq.s32.totalorder %s41, 0
      %p244 = por %p242, %p243
      %s246 = sadd.s32 %s245, 1
      %p249 = scmp.eq.s32.totalorder %s35, 1
      %p250 = scmp.ne.s32.totalorder %s245, %s247
      %p251 = scmp.eq.s32.totalorder %s35, 0
      %p252 = por %p250, %p251
      %p253 = scmp.ne.s32.totalorder %s245, %s247
      %p254 = scmp.eq.s32.totalorder %s40, 1
      %p255 = por %p253, %p254
      %p256 = scmp.ne.s32.totalorder %s247, %s248
      %p257 = scmp.eq.s32.totalorder %s40, 0
      %p258 = por %p256, %p257
      %p259 = scmp.ne.s32.totalorder %s247, %s248
      %p260 = scmp.eq.s32.totalorder %s41, 1
      %p261 = por %p259, %p260
      %p263 = scmp.ne.s32.totalorder %s248, %s262
      %p264 = scmp.eq.s32.totalorder %s41, 0
      %p265 = por %p263, %p264
      %s267 = sadd.s32 %s266, 1
      %p270 = scmp.eq.s32.totalorder %s35, 1
      %p271 = scmp.ne.s32.totalorder %s266, %s268
      %p272 = scmp.eq.s32.totalorder %s35, 0
      %p273 = por %p271, %p272
      %p274 = scmp.ne.s32.totalorder %s266, %s268
      %p275 = scmp.eq.s32.totalorder %s40, 1
      %p276 = por %p274, %p275
      %p277 = scmp.ne.s32.totalorder %s268, %s269
      %p278 = scmp.eq.s32.totalorder %s40, 0
      %p279 = por %p277, %p278
      %p280 = scmp.ne.s32.totalorder %s268, %s269
      %p281 = scmp.eq.s32.totalorder %s41, 1
      %p282 = por %p280, %p281
      %p284 = scmp.ne.s32.totalorder %s269, %s283
      %p285 = scmp.eq.s32.totalorder %s41, 0
      %p286 = por %p284, %p285
      %s288 = sadd.s32 %s287, 1
      %p291 = scmp.eq.s32.totalorder %s35, 1
      %p292 = scmp.ne.s32.totalorder %s287, %s289
      %p293 = scmp.eq.s32.totalorder %s35, 0
      %p294 = por %p292, %p293
      %p295 = scmp.ne.s32.totalorder %s287, %s289
      %p296 = scmp.eq.s32.totalorder %s40, 1
      %p297 = por %p295, %p296
      %p298 = scmp.ne.s32.totalorder %s289, %s290
      %p299 = scmp.eq.s32.totalorder %s40, 0
      %p300 = por %p298, %p299
      %p301 = scmp.ne.s32.totalorder %s289, %s290
      %p302 = scmp.eq.s32.totalorder %s41, 1
      %p303 = por %p301, %p302
      %p305 = scmp.ne.s32.totalorder %s290, %s304
      %p306 = scmp.eq.s32.totalorder %s41, 0
      %p307 = por %p305, %p306
      %s309 = sadd.s32 %s308, 1
      %p312 = scmp.eq.s32.totalorder %s35, 1
      %p313 = scmp.ne.s32.totalorder %s308, %s310
      %p314 = scmp.eq.s32.totalorder %s35, 0
      %p315 = por %p313, %p314
      %p316 = scmp.ne.s32.totalorder %s308, %s310
      %p317 = scmp.eq.s32.totalorder %s40, 1
      %p318 = por %p316, %p317
      %p319 = scmp.ne.s32.totalorder %s310, %s311
      %p320 = scmp.eq.s32.totalorder %s40, 0
      %p321 = por %p319, %p320
      %p322 = scmp.ne.s32.totalorder %s310, %s311
      %p323 = scmp.eq.s32.totalorder %s41, 1
      %p324 = por %p322, %p323
      %p326 = scmp.ne.s32.totalorder %s311, %s325
      %p327 = scmp.eq.s32.totalorder %s41, 0
      %p328 = por %p326, %p327
      %s330 = sadd.s32 %s329, 1
      %p333 = scmp.eq.s32.totalorder %s35, 1
      %p334 = scmp.ne.s32.totalorder %s329, %s331
      %p335 = scmp.eq.s32.totalorder %s35, 0
      %p336 = por %p334, %p335
      %p337 = scmp.ne.s32.totalorder %s329, %s331
      %p338 = scmp.eq.s32.totalorder %s40, 1
      %p339 = por %p337, %p338
      %p340 = scmp.ne.s32.totalorder %s331, %s332
      %p341 = scmp.eq.s32.totalorder %s40, 0
      %p342 = por %p340, %p341
      %p343 = scmp.ne.s32.totalorder %s331, %s332
      %p344 = scmp.eq.s32.totalorder %s41, 1
      %p345 = por %p343, %p344
      %p347 = scmp.ne.s32.totalorder %s332, %s346
      %p348 = scmp.eq.s32.totalorder %s41, 0
      %p349 = por %p347, %p348
      %s351 = sadd.s32 %s350, 1
      %p354 = scmp.eq.s32.totalorder %s35, 1
      %p355 = scmp.ne.s32.totalorder %s350, %s352
      %p356 = scmp.eq.s32.totalorder %s35, 0
      %p357 = por %p355, %p356
      %p358 = scmp.ne.s32.totalorder %s350, %s352
      %p359 = scmp.eq.s32.totalorder %s40, 1
      %p360 = por %p358, %p359
      %p361 = scmp.ne.s32.totalorder %s352, %s353
      %p362 = scmp.eq.s32.totalorder %s40, 0
      %p363 = por %p361, %p362
      %p364 = scmp.ne.s32.totalorder %s352, %s353
      %p365 = scmp.eq.s32.totalorder %s41, 1
      %p366 = por %p364, %p365
      %p368 = scmp.ne.s32.totalorder %s353, %s367
      %p369 = scmp.eq.s32.totalorder %s41, 0
      %p370 = por %p368, %p369
      %s372 = sadd.s32 %s371, 1
      %p375 = scmp.eq.s32.totalorder %s35, 1
      %p376 = scmp.ne.s32.totalorder %s371, %s373
      %p377 = scmp.eq.s32.totalorder %s35, 0
      %p378 = por %p376, %p377
      %p379 = scmp.ne.s32.totalorder %s371, %s373
      %p380 = scmp.eq.s32.totalorder %s40, 1
      %p381 = por %p379, %p380
      %p382 = scmp.ne.s32.totalorder %s373, %s374
      %p383 = scmp.eq.s32.totalorder %s40, 0
      %p384 = por %p382, %p383
      %p385 = scmp.ne.s32.totalorder %s373, %s374
      %p386 = scmp.eq.s32.totalorder %s41, 1
      %p387 = por %p385, %p386
      %p389 = scmp.ne.s32.totalorder %s374, %s388
      %p390 = scmp.eq.s32.totalorder %s41, 0
      %p391 = por %p389, %p390
      %s393 = sadd.s32 %s392, 1
      %p396 = scmp.eq.s32.totalorder %s35, 1
      %p397 = scmp.ne.s32.totalorder %s392, %s394
      %p398 = scmp.eq.s32.totalorder %s35, 0
      %p399 = por %p397, %p398
      %p400 = scmp.ne.s32.totalorder %s392, %s394
      %p401 = scmp.eq.s32.totalorder %s40, 1
      %p402 = por %p400, %p401
      %p403 = scmp.ne.s32.totalorder %s394, %s395
      %p404 = scmp.eq.s32.totalorder %s40, 0
      %p405 = por %p403, %p404
      %p406 = scmp.ne.s32.totalorder %s394, %s395
      %p407 = scmp.eq.s32.totalorder %s41, 1
      %p408 = por %p406, %p407
      %p410 = scmp.ne.s32.totalorder %s395, %s409
      %p411 = scmp.eq.s32.totalorder %s41, 0
      %p412 = por %p410, %p411
      %s414 = sadd.s32 %s413, 1
      %p417 = scmp.eq.s32.totalorder %s35, 1
      %p418 = scmp.ne.s32.totalorder %s413, %s415
      %p419 = scmp.eq.s32.totalorder %s35, 0
      %p420 = por %p418, %p419
      %p421 = scmp.ne.s32.totalorder %s413, %s415
      %p422 = scmp.eq.s32.totalorder %s40, 1
      %p423 = por %p421, %p422
      %p424 = scmp.ne.s32.totalorder %s415, %s416
      %p425 = scmp.eq.s32.totalorder %s40, 0
      %p426 = por %p424, %p425
      %p427 = scmp.ne.s32.totalorder %s415, %s416
      %p428 = scmp.eq.s32.totalorder %s41, 1
      %p429 = por %p427, %p428
      %p431 = scmp.ne.s32.totalorder %s416, %s430
      %p432 = scmp.eq.s32.totalorder %s41, 0
      %p433 = por %p431, %p432
      %s435 = sadd.s32 %s434, 1
      %p438 = scmp.eq.s32.totalorder %s35, 1
      %p439 = scmp.ne.s32.totalorder %s434, %s436
      %p440 = scmp.eq.s32.totalorder %s35, 0
      %p441 = por %p439, %p440
      %p442 = scmp.ne.s32.totalorder %s434, %s436
      %p443 = scmp.eq.s32.totalorder %s40, 1
      %p444 = por %p442, %p443
      %p445 = scmp.ne.s32.totalorder %s436, %s437
      %p446 = scmp.eq.s32.totalorder %s40, 0
      %p447 = por %p445, %p446
      %p448 = scmp.ne.s32.totalorder %s436, %s437
      %p449 = scmp.eq.s32.totalorder %s41, 1
      %p450 = por %p448, %p449
      %p452 = scmp.ne.s32.totalorder %s437, %s451
      %p453 = scmp.eq.s32.totalorder %s41, 0
      %p454 = por %p452, %p453
      %s456 = sadd.s32 %s455, 1
      %p459 = scmp.eq.s32.totalorder %s35, 1
      %p460 = scmp.ne.s32.totalorder %s455, %s457
      %p461 = scmp.eq.s32.totalorder %s35, 0
      %p462 = por %p460, %p461
      %p463 = scmp.ne.s32.totalorder %s455, %s457
      %p464 = scmp.eq.s32.totalorder %s40, 1
      %p465 = por %p463, %p464
      %p466 = scmp.ne.s32.totalorder %s457, %s458
      %p467 = scmp.eq.s32.totalorder %s40, 0
      %p468 = por %p466, %p467
      %p469 = scmp.ne.s32.totalorder %s457, %s458
      %p470 = scmp.eq.s32.totalorder %s41, 1
      %p471 = por %p469, %p470
      %p473 = scmp.ne.s32.totalorder %s458, %s472
      %p474 = scmp.eq.s32.totalorder %s41, 0
      %p475 = por %p473, %p474
      %s477 = sadd.s32 %s476, 1
      %p480 = scmp.eq.s32.totalorder %s35, 1
      %p481 = scmp.ne.s32.totalorder %s476, %s478
      %p482 = scmp.eq.s32.totalorder %s35, 0
      %p483 = por %p481, %p482
      %p484 = scmp.ne.s32.totalorder %s476, %s478
      %p485 = scmp.eq.s32.totalorder %s40, 1
      %p486 = por %p484, %p485
      %p487 = scmp.ne.s32.totalorder %s478, %s479
      %p488 = scmp.eq.s32.totalorder %s40, 0
      %p489 = por %p487, %p488
      %p490 = scmp.ne.s32.totalorder %s478, %s479
      %p491 = scmp.eq.s32.totalorder %s41, 1
      %p492 = por %p490, %p491
      %p494 = scmp.ne.s32.totalorder %s479, %s493
      %p495 = scmp.eq.s32.totalorder %s41, 0
      %p496 = por %p494, %p495
      %s497 = ssub.s32 %s42, %s54
      %s498 = ssub.s32 %s43, %s50
      %s499 = sor.u32 %s497, %s498
      %p500 = scmp.eq.s32.totalorder %s499, 0
      %s502 = sadd.s32 %s501, 1
      %s503 = scalar_select %p500, %s501, %s502
      %p506 = pneg %p500
      %p507 = scmp.eq.s32.totalorder %s35, 1
      %p508 = por %p506, %p507
      %p509 = scmp.ne.s32.totalorder %s501, %s504
      %p510 = scmp.eq.s32.totalorder %s35, 0
      %p511 = por %p509, %p510
      %p512 = scmp.ne.s32.totalorder %s501, %s504
      %p513 = scmp.eq.s32.totalorder %s40, 1
      %p514 = por %p512, %p513
      %p515 = scmp.ne.s32.totalorder %s504, %s505
      %p516 = scmp.eq.s32.totalorder %s40, 0
      %p517 = por %p515, %p516
      %p518 = scmp.ne.s32.totalorder %s504, %s505
      %p519 = scmp.eq.s32.totalorder %s41, 1
      %p520 = por %p518, %p519
      %p522 = scmp.ne.s32.totalorder %s505, %s521
      %p523 = scmp.eq.s32.totalorder %s41, 0
      %p524 = por %p522, %p523
      %s525 = ssub.s32 %s42, %s54
      %s526 = ssub.s32 %s43, %s50
      %s527 = sor.u32 %s525, %s526
      %p528 = scmp.eq.s32.totalorder %s527, 0
      %s530 = sadd.s32 %s529, 1
      %s531 = scalar_select %p528, %s529, %s530
      %p534 = pneg %p528
      %p535 = scmp.eq.s32.totalorder %s35, 1
      %p536 = por %p534, %p535
      %p537 = scmp.ne.s32.totalorder %s529, %s532
      %p538 = scmp.eq.s32.totalorder %s35, 0
      %p539 = por %p537, %p538
      %p540 = scmp.ne.s32.totalorder %s529, %s532
      %p541 = scmp.eq.s32.totalorder %s40, 1
      %p542 = por %p540, %p541
      %p543 = scmp.ne.s32.totalorder %s532, %s533
      %p544 = scmp.eq.s32.totalorder %s40, 0
      %p545 = por %p543, %p544
      %p546 = scmp.ne.s32.totalorder %s532, %s533
      %p547 = scmp.eq.s32.totalorder %s41, 1
      %p548 = por %p546, %p547
      %p550 = scmp.ne.s32.totalorder %s533, %s549
      %p551 = scmp.eq.s32.totalorder %s41, 0
      %p552 = por %p550, %p551
      %s553 = ssub.s32 %s42, %s54
      %p554 = scmp.eq.s32.totalorder %s553, 0
      %s556 = sadd.s32 %s555, 1
      %s557 = scalar_select %p554, %s555, %s556
      %p560 = pneg %p554
      %p561 = scmp.eq.s32.totalorder %s35, 1
      %p562 = por %p560, %p561
      %p563 = scmp.ne.s32.totalorder %s555, %s558
      %p564 = scmp.eq.s32.totalorder %s35, 0
      %p565 = por %p563, %p564
      %p566 = scmp.ne.s32.totalorder %s555, %s558
      %p567 = scmp.eq.s32.totalorder %s40, 1
      %p568 = por %p566, %p567
      %p569 = scmp.ne.s32.totalorder %s558, %s559
      %p570 = scmp.eq.s32.totalorder %s40, 0
      %p571 = por %p569, %p570
      %p572 = scmp.ne.s32.totalorder %s558, %s559
      %p573 = scmp.eq.s32.totalorder %s41, 1
      %p574 = por %p572, %p573
      %p576 = scmp.ne.s32.totalorder %s559, %s575
      %p577 = scmp.eq.s32.totalorder %s41, 0
      %p578 = por %p576, %p577
      %p579 = scmp.le.s32.totalorder 1, %s35
      %p580 = scmp.lt.s32.totalorder %s35, 3
      %p581 = pnand %p579, %p580
      %p582 = pneg %p581
      // Predicated region
      $region9: #{xey_transformer_layer.5} parent=5 // pred_check
        _
      $region10: #{xey_transformer_layer.5} parent=5 // pred_check_branch
        %584 = sbr.rel (%p581) target = $region12
      $region11: #{xey_transformer_layer.5} parent=5 // pred_region
        %s585 = ssub.s32 %s35, 1
        // Predicated region
        $region13: #{xey_transformer_layer.5} parent=11 // pred_check
          %p586 = pneg %p174
        $region14: #{xey_transformer_layer.5} parent=11 // pred_check_branch
          %588 = sbr.rel (%p586) target = $region16
        $region15: #{xey_transformer_layer.5} parent=11 // pred_region
          _
        $region16: #{xey_transformer_layer.5} parent=11 // pred_fallthru
          _
        // Predicated region
        $region17: #{xey_transformer_layer.5} parent=11 // pred_check
          %p589 = pneg %p195
        $region18: #{xey_transformer_layer.5} parent=11 // pred_check_branch
          %591 = sbr.rel (%p589) target = $region20
        $region19: #{xey_transformer_layer.5} parent=11 // pred_region
          _
        $region20: #{xey_transformer_layer.5} parent=11 // pred_fallthru
          _
        // Predicated region
        $region21: #{xey_transformer_layer.5} parent=11 // pred_check
          %p592 = pneg %p216
        $region22: #{xey_transformer_layer.5} parent=11 // pred_check_branch
          %594 = sbr.rel (%p592) target = $region24
        $region23: #{xey_transformer_layer.5} parent=11 // pred_region
          _
        $region24: #{xey_transformer_layer.5} parent=11 // pred_fallthru
          _
        // Predicated region
        $region25: #{xey_transformer_layer.5} parent=11 // pred_check
          %p595 = pneg %p237
        $region26: #{xey_transformer_layer.5} parent=11 // pred_check_branch
          %597 = sbr.rel (%p595) target = $region28
        $region27: #{xey_transformer_layer.5} parent=11 // pred_region
          %s599 = ssub.s32 16, 16
          %600 = vsyncadd [#allocation7], %s599
          %s602 = sshll.u32 [#allocation6], 4
          %s603 = int_to_ptr.vmem [resolvable:$true] %s602
          %605 = dma.hbm_to_vmem [thread:$0]  %s7, 16, %s603, [#allocation7]
        $region28: #{xey_transformer_layer.5} parent=11 // pred_fallthru
          _
        // Predicated region
        $region29: #{xey_transformer_layer.5} parent=11 // pred_check
          %p606 = pneg %p258
        $region30: #{xey_transformer_layer.5} parent=11 // pred_check_branch
          %608 = sbr.rel (%p606) target = $region32
        $region31: #{xey_transformer_layer.5} parent=11 // pred_region
          _
        $region32: #{xey_transformer_layer.5} parent=11 // pred_fallthru
          _
        // Predicated region
        $region33: #{xey_transformer_layer.5} parent=11 // pred_check
          %p609 = pneg %p279
        $region34: #{xey_transformer_layer.5} parent=11 // pred_check_branch
          %611 = sbr.rel (%p609) target = $region36
        $region35: #{xey_transformer_layer.5} parent=11 // pred_region
          %s613 = ssub.s32 16, 16
          %614 = vsyncadd [#allocation10], %s613
          %s616 = sshll.u32 [#allocation9], 4
          %s617 = int_to_ptr.vmem [resolvable:$true] %s616
          %619 = dma.hbm_to_vmem [thread:$0]  %s9, 16, %s617, [#allocation10]
        $region36: #{xey_transformer_layer.5} parent=11 // pred_fallthru
          _
        // Predicated region
        $region37: #{xey_transformer_layer.5} parent=11 // pred_check
          %p620 = pneg %p300
        $region38: #{xey_transformer_layer.5} parent=11 // pred_check_branch
          %622 = sbr.rel (%p620) target = $region40
        $region39: #{xey_transformer_layer.5} parent=11 // pred_region
          _
        $region40: #{xey_transformer_layer.5} parent=11 // pred_fallthru
          _
        // Predicated region
        $region41: #{xey_transformer_layer.5} parent=11 // pred_check
          %p623 = pneg %p321
        $region42: #{xey_transformer_layer.5} parent=11 // pred_check_branch
          %625 = sbr.rel (%p623) target = $region44
        $region43: #{xey_transformer_layer.5} parent=11 // pred_region
          _
        $region44: #{xey_transformer_layer.5} parent=11 // pred_fallthru
          _
        // Predicated region
        $region45: #{xey_transformer_layer.5} parent=11 // pred_check
          %p626 = pneg %p342
        $region46: #{xey_transformer_layer.5} parent=11 // pred_check_branch
          %628 = sbr.rel (%p626) target = $region48
        $region47: #{xey_transformer_layer.5} parent=11 // pred_region
          _
        $region48: #{xey_transformer_layer.5} parent=11 // pred_fallthru
          _
        // Predicated region
        $region49: #{xey_transformer_layer.5} parent=11 // pred_check
          %p629 = pneg %p363
        $region50: #{xey_transformer_layer.5} parent=11 // pred_check_branch
          %631 = sbr.rel (%p629) target = $region52
        $region51: #{xey_transformer_layer.5} parent=11 // pred_region
          _
        $region52: #{xey_transformer_layer.5} parent=11 // pred_fallthru
          _
        // Predicated region
        $region53: #{xey_transformer_layer.5} parent=11 // pred_check
          %p632 = pneg %p384
        $region54: #{xey_transformer_layer.5} parent=11 // pred_check_branch
          %634 = sbr.rel (%p632) target = $region56
        $region55: #{xey_transformer_layer.5} parent=11 // pred_region
          %s636 = ssub.s32 256, 256
          %637 = vsyncadd [#allocation10], %s636
          %s638 = sshll.u32 [#allocation11], 4
          %s639 = int_to_ptr.vmem [resolvable:$true] %s638
          %644 = dma.hbm_to_vmem [thread:$0]  %s14, 256, %s639, [#allocation10], 128, 128, 8
        $region56: #{xey_transformer_layer.5} parent=11 // pred_fallthru
          _
        // Predicated region
        $region57: #{xey_transformer_layer.5} parent=11 // pred_check
          %p645 = pneg %p405
        $region58: #{xey_transformer_layer.5} parent=11 // pred_check_branch
          %647 = sbr.rel (%p645) target = $region60
        $region59: #{xey_transformer_layer.5} parent=11 // pred_region
          %s649 = ssub.s32 16, 16
          %650 = vsyncadd [#allocation13], %s649
          %s652 = sshll.u32 [#allocation12], 4
          %s653 = int_to_ptr.vmem [resolvable:$true] %s652
          %655 = dma.hbm_to_vmem [thread:$0]  %s15, 16, %s653, [#allocation13]
        $region60: #{xey_transformer_layer.5} parent=11 // pred_fallthru
          _
        // Predicated region
        $region61: #{xey_transformer_layer.5} parent=11 // pred_check
          %p656 = pneg %p426
        $region62: #{xey_transformer_layer.5} parent=11 // pred_check_branch
          %658 = sbr.rel (%p656) target = $region64
        $region63: #{xey_transformer_layer.5} parent=11 // pred_region
          _
        $region64: #{xey_transformer_layer.5} parent=11 // pred_fallthru
          _
        // Predicated region
        $region65: #{xey_transformer_layer.5} parent=11 // pred_check
          %p659 = pneg %p447
        $region66: #{xey_transformer_layer.5} parent=11 // pred_check_branch
          %661 = sbr.rel (%p659) target = $region68
        $region67: #{xey_transformer_layer.5} parent=11 // pred_region
          %s663 = ssub.s32 16, 16
          %664 = vsyncadd [#allocation13], %s663
          %s666 = sshll.u32 [#allocation14], 4
          %s667 = int_to_ptr.vmem [resolvable:$true] %s666
          %669 = dma.hbm_to_vmem [thread:$0]  %s17, 16, %s667, [#allocation13]
        $region68: #{xey_transformer_layer.5} parent=11 // pred_fallthru
          _
        // Predicated region
        $region69: #{xey_transformer_layer.5} parent=11 // pred_check
          %p670 = pneg %p468
        $region70: #{xey_transformer_layer.5} parent=11 // pred_check_branch
          %672 = sbr.rel (%p670) target = $region72
        $region71: #{xey_transformer_layer.5} parent=11 // pred_region
          _
        $region72: #{xey_transformer_layer.5} parent=11 // pred_fallthru
          _
        // Predicated region
        $region73: #{xey_transformer_layer.5} parent=11 // pred_check
          %p673 = pneg %p489
        $region74: #{xey_transformer_layer.5} parent=11 // pred_check_branch
          %675 = sbr.rel (%p673) target = $region76
        $region75: #{xey_transformer_layer.5} parent=11 // pred_region
          _
        $region76: #{xey_transformer_layer.5} parent=11 // pred_fallthru
          _
      $region12: #{xey_transformer_layer.5} parent=5 // pred_fallthru
        _
      %p676 = scmp.lt.s32.totalorder %s35, 2
      // Predicated region
      $region77: #{xey_transformer_layer.5} parent=5 // pred_check
        %p677 = pneg %p676
      $region78: #{xey_transformer_layer.5} parent=5 // pred_check_branch
        %679 = sbr.rel (%p677) target = $region80
      $region79: #{xey_transformer_layer.5} parent=5 // pred_region
        // Predicated region
        $region81: #{xey_transformer_layer.5} parent=79 // pred_check
          %p680 = pneg %p67
        $region82: #{xey_transformer_layer.5} parent=79 // pred_check_branch
          %682 = sbr.rel (%p680) target = $region84
        $region83: #{xey_transformer_layer.5} parent=79 // pred_region
          %p683 = scmp.lt.s32.totalorder %s42, 1
          %s684 = scalar_select %p683, %s42, 1
          %s685 = smul.addr %s684, 8
          %s686 = scalar_lea.vmem %s0, %s685
        $region84: #{xey_transformer_layer.5} parent=79 // pred_fallthru
          _
        // Predicated region
        $region85: #{xey_transformer_layer.5} parent=79 // pred_check
          %p687 = pneg %p95
        $region86: #{xey_transformer_layer.5} parent=79 // pred_check_branch
          %689 = sbr.rel (%p687) target = $region88
        $region87: #{xey_transformer_layer.5} parent=79 // pred_region
          %s690 = smul.u32 8, %s43
          %p691 = scmp.lt.s32.totalorder %s42, 1
          %s692 = scalar_select %p691, %s42, 1
          %p693 = scmp.lt.s32.totalorder %s690, 7
          %s694 = scalar_select %p693, %s690, 7
          %s695 = smul.addr %s692, 8
          %s696 = sadd.s32 %s694, %s695
          %s697 = smul.addr %s696, 8
          %s698 = scalar_lea.vmem %s1, %s697
          %s699 = smul.u32 8, %s43
        $region88: #{xey_transformer_layer.5} parent=79 // pred_fallthru
          _
        // Predicated region
        $region89: #{xey_transformer_layer.5} parent=79 // pred_check
          %p700 = pneg %p121
        $region90: #{xey_transformer_layer.5} parent=79 // pred_check_branch
          %702 = sbr.rel (%p700) target = $region92
        $region91: #{xey_transformer_layer.5} parent=79 // pred_region
          %p703 = scmp.lt.s32.totalorder %s42, 1
          %s704 = scalar_select %p703, %s42, 1
          %s705 = smul.addr %s704, 8
          %s706 = scalar_lea.vmem %s2, %s705
        $region92: #{xey_transformer_layer.5} parent=79 // pred_fallthru
          _
        // Predicated region
        $region93: #{xey_transformer_layer.5} parent=79 // pred_check
          %p707 = pneg %p147
        $region94: #{xey_transformer_layer.5} parent=79 // pred_check_branch
          %709 = sbr.rel (%p707) target = $region96
        $region95: #{xey_transformer_layer.5} parent=79 // pred_region
          %p710 = scmp.lt.s32.totalorder %s42, 1
          %s711 = scalar_select %p710, %s42, 1
          %s712 = scalar_lea.vmem %s3, %s711
        $region96: #{xey_transformer_layer.5} parent=79 // pred_fallthru
          _
      $region80: #{xey_transformer_layer.5} parent=5 // pred_fallthru
        _
      %p713 = scmp.le.s32.totalorder 1, %s35
      %p714 = scmp.lt.s32.totalorder %s35, 3
      %p715 = pnand %p713, %p714
      %p716 = pneg %p715
      // Predicated region
      $region97: #{xey_transformer_layer.5} parent=5 // pred_check
        _
      $region98: #{xey_transformer_layer.5} parent=5 // pred_check_branch
        %718 = sbr.rel (%p715) target = $region100
      $region99: #{xey_transformer_layer.5} parent=5 // pred_region
        %s719 = ssub.s32 %s35, 1
        // Predicated region
        $region101: #{xey_transformer_layer.5} parent=99 // pred_check
          %p720 = pneg %p237
        $region102: #{xey_transformer_layer.5} parent=99 // pred_check_branch
          %722 = sbr.rel (%p720) target = $region104
        $region103: #{xey_transformer_layer.5} parent=99 // pred_region
          %723 = dma.done [#allocation7], 16
        $region104: #{xey_transformer_layer.5} parent=99 // pred_fallthru
          _
        // Predicated region
        $region105: #{xey_transformer_layer.5} parent=99 // pred_check
          %p724 = pneg %p279
        $region106: #{xey_transformer_layer.5} parent=99 // pred_check_branch
          %726 = sbr.rel (%p724) target = $region108
        $region107: #{xey_transformer_layer.5} parent=99 // pred_region
          %727 = dma.done [#allocation10], 16
        $region108: #{xey_transformer_layer.5} parent=99 // pred_fallthru
          _
        // Predicated region
        $region109: #{xey_transformer_layer.5} parent=99 // pred_check
          %p728 = pneg %p384
        $region110: #{xey_transformer_layer.5} parent=99 // pred_check_branch
          %730 = sbr.rel (%p728) target = $region112
        $region111: #{xey_transformer_layer.5} parent=99 // pred_region
          %731 = dma.done [#allocation10], 256
        $region112: #{xey_transformer_layer.5} parent=99 // pred_fallthru
          _
        // Predicated region
        $region113: #{xey_transformer_layer.5} parent=99 // pred_check
          %p732 = pneg %p405
        $region114: #{xey_transformer_layer.5} parent=99 // pred_check_branch
          %734 = sbr.rel (%p732) target = $region116
        $region115: #{xey_transformer_layer.5} parent=99 // pred_region
          %735 = dma.done [#allocation13], 16
        $region116: #{xey_transformer_layer.5} parent=99 // pred_fallthru
          _
        // Predicated region
        $region117: #{xey_transformer_layer.5} parent=99 // pred_check
          %p736 = pneg %p447
        $region118: #{xey_transformer_layer.5} parent=99 // pred_check_branch
          %738 = sbr.rel (%p736) target = $region120
        $region119: #{xey_transformer_layer.5} parent=99 // pred_region
          %739 = dma.done [#allocation13], 16
        $region120: #{xey_transformer_layer.5} parent=99 // pred_fallthru
          _
        %p740 = scmp.lt.s32.totalorder %s44, 1
        %s741 = scalar_select %p740, %s44, 1
        %s742 = smul.addr %s741, 8
        %s743 = scalar_lea.vmem %s0, %s742
        %p744 = pneg %p73
        %p745 = pneg %p70
        %s746 = smul.u32 8, %s45
        %p747 = scmp.lt.s32.totalorder %s44, 1
        %s748 = scalar_select %p747, %s44, 1
        %p749 = scmp.lt.s32.totalorder %s746, 7
        %s750 = scalar_select %p749, %s746, 7
        %s751 = smul.addr %s748, 8
        %s752 = sadd.s32 %s750, %s751
        %s753 = smul.addr %s752, 8
        %s754 = scalar_lea.vmem %s1, %s753
        %p755 = pneg %p101
        %p756 = pneg %p98
        %p757 = scmp.lt.s32.totalorder %s44, 1
        %s758 = scalar_select %p757, %s44, 1
        %s759 = smul.addr %s758, 8
        %s760 = scalar_lea.vmem %s2, %s759
        %p761 = pneg %p127
        %p762 = pneg %p124
        %p763 = scmp.lt.s32.totalorder %s44, 1
        %s764 = scalar_select %p763, %s44, 1
        %s765 = scalar_lea.vmem %s3, %s764
        %p766 = pneg %p153
        %p767 = pneg %p150
        %p768 = pneg %p174
        %p769 = pneg %p171
        %p770 = pneg %p195
        %p771 = pneg %p192
        %p772 = pneg %p216
        %p773 = pneg %p213
        %p774 = pneg %p237
        %p775 = pneg %p234
        %p776 = pneg %p258
        %p777 = pneg %p255
        %p778 = pneg %p279
        %p779 = pneg %p276
        %p780 = pneg %p300
        %p781 = pneg %p297
        %p782 = pneg %p321
        %p783 = pneg %p318
        %p784 = pneg %p342
        %p785 = pneg %p339
        %p786 = pneg %p363
        %p787 = pneg %p360
        %p788 = pneg %p384
        %p789 = pneg %p381
        %p790 = pneg %p405
        %p791 = pneg %p402
        %p792 = pneg %p426
        %p793 = pneg %p423
        %p794 = pneg %p447
        %p795 = pneg %p444
        %p796 = pneg %p468
        %p797 = pneg %p465
        %p798 = pneg %p489
        %p799 = pneg %p486
        %p800 = pneg %p517
        %p801 = pneg %p514
        %s802 = sand.u32 %s504, 1
        %s803 = scalar_lea.sflag [#allocation8], %s802
        %s804 = sand.u32 %s504, 1
        %s805 = smul.addr %s804, 64
        %s806 = scalar_lea.vmem [#allocation15], %s805
        %p807 = pneg %p545
        %p808 = pneg %p542
        %p809 = scmp.lt.s32.totalorder %s44, 1
        %s810 = scalar_select %p809, %s44, 1
        %p811 = scmp.lt.s32.totalorder %s45, 0
        %s812 = scalar_select %p811, %s45, 0
        %s813 = sadd.s32 %s812, %s810
        %s814 = smul.addr %s813, 8
        %s815 = scalar_lea.vmem %s21, %s814
        %p816 = pneg %p571
        %p817 = pneg %p568
        %p818 = scmp.lt.s32.totalorder %s44, 1
        %s819 = scalar_select %p818, %s44, 1
        %s820 = scalar_lea.vmem %s22, %s819
        %p821 = scmp.lt.s32.totalorder %s44, 1
        %s822 = scalar_select %p821, %s44, 1
        %s823 = smul.addr %s822, 8
        %s824 = scalar_lea.vmem %s0, %s823
        %s825 = smul.u32 8, %s45
        %p826 = scmp.lt.s32.totalorder %s44, 1
        %s827 = scalar_select %p826, %s44, 1
        %p828 = scmp.lt.s32.totalorder %s825, 7
        %s829 = scalar_select %p828, %s825, 7
        %s830 = smul.addr %s827, 8
        %s831 = sadd.s32 %s829, %s830
        %s832 = smul.addr %s831, 8
        %s833 = scalar_lea.vmem %s1, %s832
        %s834 = smul.u32 8, %s45
        %p835 = scmp.lt.s32.totalorder %s44, 1
        %s836 = scalar_select %p835, %s44, 1
        %s837 = smul.addr %s836, 8
        %s838 = scalar_lea.vmem %s2, %s837
        %p839 = scmp.lt.s32.totalorder %s44, 1
        %s840 = scalar_select %p839, %s44, 1
        %s841 = scalar_lea.vmem %s3, %s840
        %s842 = smul.u32 8, %s45
        %p843 = scmp.lt.s32.totalorder %s44, 1
        %s844 = scalar_select %p843, %s44, 1
        %p845 = scmp.lt.s32.totalorder %s45, 0
        %s846 = scalar_select %p845, %s45, 0
        %s847 = sadd.s32 %s846, %s844
        %s848 = smul.addr %s847, 8
        %s849 = scalar_lea.vmem %s21, %s848
        %p850 = scmp.lt.s32.totalorder %s44, 1
        %s851 = scalar_select %p850, %s44, 1
        %s852 = scalar_lea.vmem %s22, %s851
        %p854 = scmp.eq.s32.totalorder %s45, 0
        // Predicated region
        $region121: #{xey_transformer_layer.5} parent=99 // pred_check
          %p855 = pneg %p854
        $region122: #{xey_transformer_layer.5} parent=99 // pred_check_branch
          %857 = sbr.rel (%p855) target = $region124
        $region123: #{xey_transformer_layer.5} parent=99 // pred_region
          %vm858 = vcmask 122880
          %859 = vst.msk [vmem:[#allocation2] sm:$0x1] %vm858, 0.0
          %860 = vst.msk [vmem:[#allocation3] sm:$0x1] %vm858, 0.0
          %861 = vst.msk [vmem:[#allocation4] sm:$0x1] %vm858, inf
          %862 = vst.msk [vmem:[#allocation5] sm:$0x1] %vm858, -inf
        $region124: #{xey_transformer_layer.5} parent=99 // pred_fallthru
          _
        %v863 = vld [vmem:[%s824] sm:$0xff]
        %s864 = smul.u32 %s45, 8
        %s865 = scalar_lea.vmem %s824, %s864
        %v866 = vld [vmem:[%s865] sm:$0xff]
        %v867 = vld [vmem:[%s838] sm:$0xff]
        %s868 = scalar_lea.vmem %s838, %s864
        %v869 = vld [vmem:[%s868] sm:$0xff]
        %v870 = vld [vmem:[%s841] sm:$0x1]
        %v871 = vld [vmem:[%s4] sm:$0xff]
        %v872 = vld [vmem:[%s4 + $0x8] sm:$0xff]
        %v873 = vpack.c.bf16 %v870, %v870
        %v874 = vpack.c.bf16 %v872, %v871
        %v875 = vld [vmem:[%s5] sm:$0x1]
        %vm876 = vcmask 130048
        %v878 = vsel %vm876, %v873, 0
        %880 = vmatprep.subr.bf16.mxu0 0
        %881 = vmatpush1.bf16.msra.mxu0 %v874
        %882 = vmatprep.subr.bf16.mxu0 0
        %883 = vmatpush1.bf16.msra.mxu0 0
        %884 = vmatprep.subr.bf16.mxu0 0
        %885 = vmatpush1.bf16.msra.mxu0 0
        %886 = vmatprep.subr.bf16.mxu0 0
        %887 = vmatpush1.bf16.msra.mxu0 0
        %888 = vmatprep.subr.bf16.mxu0 0
        %889 = vmatpush1.bf16.msra.mxu0 0
        %890 = vmatprep.subr.bf16.mxu0 0
        %891 = vmatpush1.bf16.msra.mxu0 0
        %892 = vmatprep.subr.bf16.mxu0 0
        %893 = vmatpush1.bf16.msra.mxu0 0
        %894 = vmatprep.subr.bf16.mxu0 0
        %895 = vmatpush1.bf16.msra.mxu0 0
        %896 = vmatprep.subr.bf16.mxu0 0
        %897 = vmatpush1.bf16.msra.mxu0 0
        %898 = vmatprep.subr.bf16.mxu0 0
        %899 = vmatpush1.bf16.msra.mxu0 0
        %900 = vmatprep.subr.bf16.mxu0 0
        %901 = vmatpush1.bf16.msra.mxu0 0
        %902 = vmatprep.subr.bf16.mxu0 0
        %903 = vmatpush1.bf16.msra.mxu0 0
        %904 = vmatprep.subr.bf16.mxu0 0
        %905 = vmatpush1.bf16.msra.mxu0 0
        %906 = vmatprep.subr.bf16.mxu0 0
        %907 = vmatpush1.bf16.msra.mxu0 0
        %908 = vmatprep.subr.bf16.mxu0 0
        %909 = vmatpush1.bf16.msra.mxu0 0
        %910 = vmatprep.subr.bf16.mxu0 0
        %911 = vmatpush1.bf16.msra.mxu0 0
        %912 = vmatprep.mubr.bf16.mxu0 0
        %913 = vmatmul.mubr.bf16.gmra.mrb[0].mxu0 %v878
        %v914 = vpop.f32.mrb[0].mxu0
        %v915 = vadd.f32 %v875, %v914
        %v916 = vpop.f32.mrb[0].mxu0
        %v917 = vpop.f32.mrb[0].mxu0
        %v918 = vpop.f32.mrb[0].mxu0
        %919 = vdwg.mxu0
        %v921 = vcombine.high %v869, %v869
        %v923 = vunpack.c.l.s4 1966171168
        %v924 = vunpack.c.0.s8 %v923
        %v925 = vlaneseq
        %v926 = vshrl.u32 %v925, 7
        %v927 = vsub.s32 %v924, %v926
        %v928 = vrot.slane %v869, %v927
        %v930 = vunpack.c.l.s4 1966171168
        %v931 = vunpack.c.0.s8 %v930
        %v932 = vlaneseq
        %v933 = vshrl.u32 %v932, 7
        %v934 = vsub.s32 %v931, %v933
        %v935 = vrot.slane %v921, %v934
        %v936 = vcombine.high %v928, %v928
        %v937 = vcombine.high %v935, %v935
        %v939 = vunpack.c.l.s4 1966171168
        %v940 = vunpack.c.0.s8 %v939
        %v941 = vlaneseq
        %v942 = vshrl.u32 %v941, 7
        %v943 = vsub.s32 %v940, %v942
        %v944 = vrot.slane %v928, %v943
        %v946 = vunpack.c.l.s4 1966171168
        %v947 = vunpack.c.0.s8 %v946
        %v948 = vlaneseq
        %v949 = vshrl.u32 %v948, 7
        %v950 = vsub.s32 %v947, %v949
        %v951 = vrot.slane %v935, %v950
        %v953 = vunpack.c.l.s4 1966171168
        %v954 = vunpack.c.0.s8 %v953
        %v955 = vlaneseq
        %v956 = vshrl.u32 %v955, 7
        %v957 = vsub.s32 %v954, %v956
        %v958 = vrot.slane %v936, %v957
        %v960 = vunpack.c.l.s4 1966171168
        %v961 = vunpack.c.0.s8 %v960
        %v962 = vlaneseq
        %v963 = vshrl.u32 %v962, 7
        %v964 = vsub.s32 %v961, %v963
        %v965 = vrot.slane %v937, %v964
        %v966 = vcombine.high %v944, %v944
        %v967 = vcombine.high %v951, %v951
        %v968 = vcombine.high %v958, %v958
        %v969 = vcombine.high %v965, %v965
        %v970 = vlaneseq
        %v971 = vshrl.u32 %v970, 7
        %v972 = vsub.s32 0, %v971
        %v973 = vrot.slane %v944, %v972
        %v974 = vlaneseq
        %v975 = vshrl.u32 %v974, 7
        %v976 = vsub.s32 0, %v975
        %v977 = vrot.slane %v958, %v976
        %v978 = vlaneseq
        %v979 = vshrl.u32 %v978, 7
        %v980 = vsub.s32 0, %v979
        %v981 = vrot.slane %v966, %v980
        %v982 = vlaneseq
        %v983 = vshrl.u32 %v982, 7
        %v984 = vsub.s32 0, %v983
        %v985 = vrot.slane %v968, %v984
        %v986 = vlaneseq
        %v987 = vshrl.u32 %v986, 7
        %v988 = vsub.s32 0, %v987
        %v989 = vrot.slane %v951, %v988
        %v990 = vlaneseq
        %v991 = vshrl.u32 %v990, 7
        %v992 = vsub.s32 0, %v991
        %v993 = vrot.slane %v965, %v992
        %v994 = vlaneseq
        %v995 = vshrl.u32 %v994, 7
        %v996 = vsub.s32 0, %v995
        %v997 = vrot.slane %v967, %v996
        %v998 = vlaneseq
        %v999 = vshrl.u32 %v998, 7
        %v1000 = vsub.s32 0, %v999
        %v1001 = vrot.slane %v969, %v1000
        %v1010 = vmul.f32 %v973, %v867
        %v1011 = vmul.f32 %v977, %v867
        %v1012 = vmul.f32 %v981, %v867
        %v1013 = vmul.f32 %v985, %v867
        %v1014 = vmul.f32 %v989, %v867
        %v1015 = vmul.f32 %v993, %v867
        %v1016 = vmul.f32 %v997, %v867
        %v1017 = vmul.f32 %v1001, %v867
        %v1018 = vld [vmem:[%s833] sm:$0xff]
        %v1019 = vld [vmem:[%s833 + $0x8] sm:$0xff]
        %v1020 = vld [vmem:[%s833 + $0x10] sm:$0xff]
        %v1021 = vld [vmem:[%s833 + $0x18] sm:$0xff]
        %v1022 = vld [vmem:[%s833 + $0x20] sm:$0xff]
        %v1023 = vld [vmem:[%s833 + $0x28] sm:$0xff]
        %v1024 = vld [vmem:[%s833 + $0x30] sm:$0xff]
        %v1025 = vld [vmem:[%s833 + $0x38] sm:$0xff]
        %v1026 = vld [vmem:[%s6] sm:$0xff]
        %v1027 = vld [vmem:[%s6 + $0x8] sm:$0xff]
        %v1028 = vpack.c.bf16 %v1019, %v1018
        %v1029 = vpack.c.bf16 %v1021, %v1020
        %v1030 = vpack.c.bf16 %v1023, %v1022
        %v1031 = vpack.c.bf16 %v1025, %v1024
        %v1032 = vpack.c.bf16 %v1027, %v1026
        %v1033 = vld [vmem:[#allocation6] sm:$0x1]
        %v1035 = vlaneseq
        %v1036 = vshrl.u32 %v1035, 7
        %v1037 = vsub.s32 0, %v1036
        %v1038 = vrot.slane %v1033, %v1037
        %v1041 = vsel %vm876, %v1028, 0
        %v1044 = vsel %vm876, %v1029, 0
        %v1047 = vsel %vm876, %v1030, 0
        %v1050 = vsel %vm876, %v1031, 0
        %1052 = vmatprep.subr.bf16.mxu0 0
        %1053 = vmatpush1.bf16.msra.mxu0 %v1032
        %1054 = vmatprep.subr.bf16.mxu0 0
        %1055 = vmatpush1.bf16.msra.mxu0 0
        %1056 = vmatprep.subr.bf16.mxu0 0
        %1057 = vmatpush1.bf16.msra.mxu0 0
        %1058 = vmatprep.subr.bf16.mxu0 0
        %1059 = vmatpush1.bf16.msra.mxu0 0
        %1060 = vmatprep.subr.bf16.mxu0 0
        %1061 = vmatpush1.bf16.msra.mxu0 0
        %1062 = vmatprep.subr.bf16.mxu0 0
        %1063 = vmatpush1.bf16.msra.mxu0 0
        %1064 = vmatprep.subr.bf16.mxu0 0
        %1065 = vmatpush1.bf16.msra.mxu0 0
        %1066 = vmatprep.subr.bf16.mxu0 0
        %1067 = vmatpush1.bf16.msra.mxu0 0
        %1068 = vmatprep.subr.bf16.mxu0 0
        %1069 = vmatpush1.bf16.msra.mxu0 0
        %1070 = vmatprep.subr.bf16.mxu0 0
        %1071 = vmatpush1.bf16.msra.mxu0 0
        %1072 = vmatprep.subr.bf16.mxu0 0
        %1073 = vmatpush1.bf16.msra.mxu0 0
        %1074 = vmatprep.subr.bf16.mxu0 0
        %1075 = vmatpush1.bf16.msra.mxu0 0
        %1076 = vmatprep.subr.bf16.mxu0 0
        %1077 = vmatpush1.bf16.msra.mxu0 0
        %1078 = vmatprep.subr.bf16.mxu0 0
        %1079 = vmatpush1.bf16.msra.mxu0 0
        %1080 = vmatprep.subr.bf16.mxu0 0
        %1081 = vmatpush1.bf16.msra.mxu0 0
        %1082 = vmatprep.subr.bf16.mxu0 0
        %1083 = vmatpush1.bf16.msra.mxu0 0
        %1084 = vmatprep.mubr.bf16.mxu0 0
        %1085 = vmatmul.mubr.bf16.gmra.mrb[0].mxu0 %v1041
        %v1086 = vpop.f32.mrb[0].mxu0
        %v1087 = vadd.f32 %v1038, %v1086
        %v1088 = vpop.f32.mrb[0].mxu0
        %v1089 = vpop.f32.mrb[0].mxu0
        %v1090 = vadd.f32 %v1038, %v1089
        %v1091 = vpop.f32.mrb[0].mxu0
        %1092 = vmatprep.mubr.bf16.mxu0 0
        %1093 = vmatmul.mubr.bf16.gmra.mrb[0].mxu0 %v1044
        %v1094 = vpop.f32.mrb[0].mxu0
        %v1095 = vadd.f32 %v1038, %v1094
        %v1096 = vpop.f32.mrb[0].mxu0
        %v1097 = vpop.f32.mrb[0].mxu0
        %v1098 = vadd.f32 %v1038, %v1097
        %v1099 = vpop.f32.mrb[0].mxu0
        %1100 = vmatprep.mubr.bf16.mxu0 0
        %1101 = vmatmul.mubr.bf16.gmra.mrb[0].mxu0 %v1047
        %v1102 = vpop.f32.mrb[0].mxu0
        %v1103 = vadd.f32 %v1038, %v1102
        %v1104 = vpop.f32.mrb[0].mxu0
        %v1105 = vpop.f32.mrb[0].mxu0
        %v1106 = vadd.f32 %v1038, %v1105
        %v1107 = vpop.f32.mrb[0].mxu0
        %1108 = vmatprep.mubr.bf16.mxu0 0
        %1109 = vmatmul.mubr.bf16.gmra.mrb[0].mxu0 %v1050
        %v1110 = vpop.f32.mrb[0].mxu0
        %v1111 = vadd.f32 %v1038, %v1110
        %v1112 = vpop.f32.mrb[0].mxu0
        %v1113 = vpop.f32.mrb[0].mxu0
        %v1114 = vadd.f32 %v1038, %v1113
        %v1115 = vpop.f32.mrb[0].mxu0
        %1116 = vdwg.mxu0
        %1118 = vset.pattern.permute.xlu0 0
        %1119 = vperm.xlu0 %1118, %v1010
        %v1120 = vpop.permute.xlu0 %1119
        %1123 = vset.pattern.permute.xlu0 0
        %1124 = vperm.xlu0 %1123, %v1011
        %v1125 = vpop.permute.xlu0 %1124
        %1128 = vset.pattern.permute.xlu0 0
        %1129 = vperm.xlu0 %1128, %v1012
        %v1130 = vpop.permute.xlu0 %1129
        %1133 = vset.pattern.permute.xlu0 0
        %1134 = vperm.xlu0 %1133, %v1013
        %v1135 = vpop.permute.xlu0 %1134
        %1138 = vset.pattern.permute.xlu0 0
        %1139 = vperm.xlu0 %1138, %v1014
        %v1140 = vpop.permute.xlu0 %1139
        %1143 = vset.pattern.permute.xlu0 0
        %1144 = vperm.xlu0 %1143, %v1015
        %v1145 = vpop.permute.xlu0 %1144
        %1148 = vset.pattern.permute.xlu0 0
        %1149 = vperm.xlu0 %1148, %v1016
        %v1150 = vpop.permute.xlu0 %1149
        %1153 = vset.pattern.permute.xlu0 0
        %1154 = vperm.xlu0 %1153, %v1017
        %v1155 = vpop.permute.xlu0 %1154
        %v1157 = vmul.f32 %v1087, %v1120
        %v1158 = vmul.f32 %v1090, %v1125
        %v1159 = vmul.f32 %v1095, %v1130
        %v1160 = vmul.f32 %v1098, %v1135
        %v1161 = vmul.f32 %v1103, %v1140
        %v1162 = vmul.f32 %v1106, %v1145
        %v1163 = vmul.f32 %v1111, %v1150
        %v1164 = vmul.f32 %v1114, %v1155
        %v1166 = vcombine.high %v866, %v866
        %v1168 = vunpack.c.l.s4 1966171168
        %v1169 = vunpack.c.0.s8 %v1168
        %v1170 = vlaneseq
        %v1171 = vshrl.u32 %v1170, 7
        %v1172 = vsub.s32 %v1169, %v1171
        %v1173 = vrot.slane %v866, %v1172
        %v1175 = vunpack.c.l.s4 1966171168
        %v1176 = vunpack.c.0.s8 %v1175
        %v1177 = vlaneseq
        %v1178 = vshrl.u32 %v1177, 7
        %v1179 = vsub.s32 %v1176, %v1178
        %v1180 = vrot.slane %v1166, %v1179
        %v1181 = vcombine.high %v1173, %v1173
        %v1182 = vcombine.high %v1180, %v1180
        %v1184 = vunpack.c.l.s4 1966171168
        %v1185 = vunpack.c.0.s8 %v1184
        %v1186 = vlaneseq
        %v1187 = vshrl.u32 %v1186, 7
        %v1188 = vsub.s32 %v1185, %v1187
        %v1189 = vrot.slane %v1173, %v1188
        %v1191 = vunpack.c.l.s4 1966171168
        %v1192 = vunpack.c.0.s8 %v1191
        %v1193 = vlaneseq
        %v1194 = vshrl.u32 %v1193, 7
        %v1195 = vsub.s32 %v1192, %v1194
        %v1196 = vrot.slane %v1180, %v1195
        %v1198 = vunpack.c.l.s4 1966171168
        %v1199 = vunpack.c.0.s8 %v1198
        %v1200 = vlaneseq
        %v1201 = vshrl.u32 %v1200, 7
        %v1202 = vsub.s32 %v1199, %v1201
        %v1203 = vrot.slane %v1181, %v1202
        %v1205 = vunpack.c.l.s4 1966171168
        %v1206 = vunpack.c.0.s8 %v1205
        %v1207 = vlaneseq
        %v1208 = vshrl.u32 %v1207, 7
        %v1209 = vsub.s32 %v1206, %v1208
        %v1210 = vrot.slane %v1182, %v1209
        %v1211 = vcombine.high %v1189, %v1189
        %v1212 = vcombine.high %v1196, %v1196
        %v1213 = vcombine.high %v1203, %v1203
        %v1214 = vcombine.high %v1210, %v1210
        %v1215 = vlaneseq
        %v1216 = vshrl.u32 %v1215, 7
        %v1217 = vsub.s32 0, %v1216
        %v1218 = vrot.slane %v1189, %v1217
        %v1219 = vlaneseq
        %v1220 = vshrl.u32 %v1219, 7
        %v1221 = vsub.s32 0, %v1220
        %v1222 = vrot.slane %v1203, %v1221
        %v1223 = vlaneseq
        %v1224 = vshrl.u32 %v1223, 7
        %v1225 = vsub.s32 0, %v1224
        %v1226 = vrot.slane %v1211, %v1225
        %v1227 = vlaneseq
        %v1228 = vshrl.u32 %v1227, 7
        %v1229 = vsub.s32 0, %v1228
        %v1230 = vrot.slane %v1213, %v1229
        %v1231 = vlaneseq
        %v1232 = vshrl.u32 %v1231, 7
        %v1233 = vsub.s32 0, %v1232
        %v1234 = vrot.slane %v1196, %v1233
        %v1235 = vlaneseq
        %v1236 = vshrl.u32 %v1235, 7
        %v1237 = vsub.s32 0, %v1236
        %v1238 = vrot.slane %v1210, %v1237
        %v1239 = vlaneseq
        %v1240 = vshrl.u32 %v1239, 7
        %v1241 = vsub.s32 0, %v1240
        %v1242 = vrot.slane %v1212, %v1241
        %v1243 = vlaneseq
        %v1244 = vshrl.u32 %v1243, 7
        %v1245 = vsub.s32 0, %v1244
        %v1246 = vrot.slane %v1214, %v1245
        %1256 = vrot.lane.b32.xlu0 %v863, 96
        %v1257 = vpop.permute.xlu0 %1256
        %v1259 = vmul.f32 %v1218, %v1257
        %v1260 = vmul.f32 %v1222, %v1257
        %v1261 = vmul.f32 %v1226, %v1257
        %v1262 = vmul.f32 %v1230, %v1257
        %v1263 = vmul.f32 %v1234, %v1257
        %v1264 = vmul.f32 %v1238, %v1257
        %v1265 = vmul.f32 %v1242, %v1257
        %v1266 = vmul.f32 %v1246, %v1257
        %v1267 = vmul.f32 %v1259, 0.35355338
        %v1268 = vmul.f32 %v1260, 0.35355338
        %v1269 = vmul.f32 %v1261, 0.35355338
        %v1270 = vmul.f32 %v1262, 0.35355338
        %v1271 = vmul.f32 %v1263, 0.35355338
        %v1272 = vmul.f32 %v1264, 0.35355338
        %v1273 = vmul.f32 %v1265, 0.35355338
        %v1274 = vmul.f32 %v1266, 0.35355338
        %v1275 = vadd.f32 %v1157, 1.0
        %v1276 = vadd.f32 %v1158, 1.0
        %v1277 = vadd.f32 %v1159, 1.0
        %v1278 = vadd.f32 %v1160, 1.0
        %v1279 = vadd.f32 %v1161, 1.0
        %v1280 = vadd.f32 %v1162, 1.0
        %v1281 = vadd.f32 %v1163, 1.0
        %v1282 = vadd.f32 %v1164, 1.0
        %v1283 = vmul.f32 %v1267, %v1275
        %v1284 = vmul.f32 %v1268, %v1276
        %v1285 = vmul.f32 %v1269, %v1277
        %v1286 = vmul.f32 %v1270, %v1278
        %v1287 = vmul.f32 %v1271, %v1279
        %v1288 = vmul.f32 %v1272, %v1280
        %v1289 = vmul.f32 %v1273, %v1281
        %v1290 = vmul.f32 %v1274, %v1282
        %1299 = vrot.lane.b32.xlu0 %v1157, 96
        %v1300 = vpop.permute.xlu0 %1299
        %1301 = vrot.lane.b32.xlu0 %v1158, 96
        %v1302 = vpop.permute.xlu0 %1301
        %1303 = vrot.lane.b32.xlu0 %v1159, 96
        %v1304 = vpop.permute.xlu0 %1303
        %1305 = vrot.lane.b32.xlu0 %v1160, 96
        %v1306 = vpop.permute.xlu0 %1305
        %1307 = vrot.lane.b32.xlu0 %v1161, 96
        %v1308 = vpop.permute.xlu0 %1307
        %1309 = vrot.lane.b32.xlu0 %v1162, 96
        %v1310 = vpop.permute.xlu0 %1309
        %1311 = vrot.lane.b32.xlu0 %v1163, 96
        %v1312 = vpop.permute.xlu0 %1311
        %1313 = vrot.lane.b32.xlu0 %v1164, 96
        %v1314 = vpop.permute.xlu0 %1313
        %v1323 = vadd.f32 %v1283, %v1300
        %v1324 = vadd.f32 %v1284, %v1302
        %v1325 = vadd.f32 %v1285, %v1304
        %v1326 = vadd.f32 %v1286, %v1306
        %v1327 = vadd.f32 %v1287, %v1308
        %v1328 = vadd.f32 %v1288, %v1310
        %v1329 = vadd.f32 %v1289, %v1312
        %v1330 = vadd.f32 %v1290, %v1314
        %v1331 = vadd.f32 %v915, 1.0
        %v1332 = vlaneseq
        %v1333 = vshrl.u32 %v1332, 7
        %v1334 = vsub.s32 0, %v1333
        %v1335 = vrot.slane %v1331, %v1334
        %1344 = vrot.lane.b32.xlu0 %v1323, 32
        %v1345 = vpop.permute.xlu0 %1344
        %1346 = vrot.lane.b32.xlu0 %v1324, 32
        %v1347 = vpop.permute.xlu0 %1346
        %1348 = vrot.lane.b32.xlu0 %v1325, 32
        %v1349 = vpop.permute.xlu0 %1348
        %1350 = vrot.lane.b32.xlu0 %v1326, 32
        %v1351 = vpop.permute.xlu0 %1350
        %1352 = vrot.lane.b32.xlu0 %v1327, 32
        %v1353 = vpop.permute.xlu0 %1352
        %1354 = vrot.lane.b32.xlu0 %v1328, 32
        %v1355 = vpop.permute.xlu0 %1354
        %1356 = vrot.lane.b32.xlu0 %v1329, 32
        %v1357 = vpop.permute.xlu0 %1356
        %1358 = vrot.lane.b32.xlu0 %v1330, 32
        %v1359 = vpop.permute.xlu0 %1358
        %v1368 = vmul.f32 %v1335, %v1345
        %v1369 = vmul.f32 %v1335, %v1347
        %v1370 = vmul.f32 %v1335, %v1349
        %v1371 = vmul.f32 %v1335, %v1351
        %v1372 = vmul.f32 %v1335, %v1353
        %v1373 = vmul.f32 %v1335, %v1355
        %v1374 = vmul.f32 %v1335, %v1357
        %v1375 = vmul.f32 %v1335, %v1359
        %v1376 = vlaneseq
        %v1377 = vshrl.u32 %v1376, 7
        %v1378 = vsub.s32 0, %v1377
        %v1379 = vrot.slane %v915, %v1378
        %1388 = vrot.lane.b32.xlu0 %v1368, 96
        %v1389 = vpop.permute.xlu0 %1388
        %1390 = vrot.lane.b32.xlu0 %v1369, 96
        %v1391 = vpop.permute.xlu0 %1390
        %1392 = vrot.lane.b32.xlu0 %v1370, 96
        %v1393 = vpop.permute.xlu0 %1392
        %1394 = vrot.lane.b32.xlu0 %v1371, 96
        %v1395 = vpop.permute.xlu0 %1394
        %1396 = vrot.lane.b32.xlu0 %v1372, 96
        %v1397 = vpop.permute.xlu0 %1396
        %1398 = vrot.lane.b32.xlu0 %v1373, 96
        %v1399 = vpop.permute.xlu0 %1398
        %1400 = vrot.lane.b32.xlu0 %v1374, 96
        %v1401 = vpop.permute.xlu0 %1400
        %1402 = vrot.lane.b32.xlu0 %v1375, 96
        %v1403 = vpop.permute.xlu0 %1402
        %v1412 = vadd.f32 %v1379, %v1389
        %v1413 = vadd.f32 %v1379, %v1391
        %v1414 = vadd.f32 %v1379, %v1393
        %v1415 = vadd.f32 %v1379, %v1395
        %v1416 = vadd.f32 %v1379, %v1397
        %v1417 = vadd.f32 %v1379, %v1399
        %v1418 = vadd.f32 %v1379, %v1401
        %v1419 = vadd.f32 %v1379, %v1403
        %v1420 = vld [vmem:[%s8] sm:$0xff]
        %v1421 = vld [vmem:[%s8 + $0x8] sm:$0xff]
        %v1422 = vld [vmem:[%s8 + $0x10] sm:$0xff]
        %v1423 = vld [vmem:[%s8 + $0x18] sm:$0xff]
        %v1424 = vpack.c.bf16 %v1413, %v1412
        %v1425 = vpack.c.bf16 %v1415, %v1414
        %v1426 = vpack.c.bf16 %v1417, %v1416
        %v1427 = vpack.c.bf16 %v1419, %v1418
        %v1428 = vpack.c.bf16 %v1421, %v1420
        %v1429 = vpack.c.bf16 %v1423, %v1422
        %v1430 = vld [vmem:[#allocation9] sm:$0x1]
        %v1432 = vlaneseq
        %v1433 = vshrl.u32 %v1432, 7
        %v1434 = vsub.s32 0, %v1433
        %v1435 = vrot.slane %v1430, %v1434
        %vm1437 = vcmask 261120
        %v1439 = vsel %vm1437, %v1424, 0
        %v1442 = vsel %vm1437, %v1425, 0
        %v1445 = vsel %vm1437, %v1426, 0
        %v1448 = vsel %vm1437, %v1427, 0
        %1450 = vmatprep.subr.bf16.mxu0 0
        %1451 = vmatpush1.bf16.msra.mxu0 %v1428
        %1452 = vmatprep.subr.bf16.mxu0 0
        %1453 = vmatpush1.bf16.msra.mxu0 %v1429
        %1454 = vmatprep.subr.bf16.mxu0 0
        %1455 = vmatpush1.bf16.msra.mxu0 0
        %1456 = vmatprep.subr.bf16.mxu0 0
        %1457 = vmatpush1.bf16.msra.mxu0 0
        %1458 = vmatprep.subr.bf16.mxu0 0
        %1459 = vmatpush1.bf16.msra.mxu0 0
        %1460 = vmatprep.subr.bf16.mxu0 0
        %1461 = vmatpush1.bf16.msra.mxu0 0
        %1462 = vmatprep.subr.bf16.mxu0 0
        %1463 = vmatpush1.bf16.msra.mxu0 0
        %1464 = vmatprep.subr.bf16.mxu0 0
        %1465 = vmatpush1.bf16.msra.mxu0 0
        %1466 = vmatprep.subr.bf16.mxu0 0
        %1467 = vmatpush1.bf16.msra.mxu0 0
        %1468 = vmatprep.subr.bf16.mxu0 0
        %1469 = vmatpush1.bf16.msra.mxu0 0
        %1470 = vmatprep.subr.bf16.mxu0 0
        %1471 = vmatpush1.bf16.msra.mxu0 0
        %1472 = vmatprep.subr.bf16.mxu0 0
        %1473 = vmatpush1.bf16.msra.mxu0 0
        %1474 = vmatprep.subr.bf16.mxu0 0
        %1475 = vmatpush1.bf16.msra.mxu0 0
        %1476 = vmatprep.subr.bf16.mxu0 0
        %1477 = vmatpush1.bf16.msra.mxu0 0
        %1478 = vmatprep.subr.bf16.mxu0 0
        %1479 = vmatpush1.bf16.msra.mxu0 0
        %1480 = vmatprep.subr.bf16.mxu0 0
        %1481 = vmatpush1.bf16.msra.mxu0 0
        %1482 = vmatprep.mubr.bf16.mxu0 0
        %1483 = vmatmul.mubr.bf16.gmra.mrb[0].mxu0 %v1439
        %v1484 = vpop.f32.mrb[0].mxu0
        %v1485 = vadd.f32 %v1435, %v1484
        %v1486 = vpop.f32.mrb[0].mxu0
        %v1487 = vpop.f32.mrb[0].mxu0
        %v1488 = vadd.f32 %v1435, %v1487
        %v1489 = vpop.f32.mrb[0].mxu0
        %1490 = vmatprep.mubr.bf16.mxu0 0
        %1491 = vmatmul.mubr.bf16.gmra.mrb[0].mxu0 %v1442
        %v1492 = vpop.f32.mrb[0].mxu0
        %v1493 = vadd.f32 %v1435, %v1492
        %v1494 = vpop.f32.mrb[0].mxu0
        %v1495 = vpop.f32.mrb[0].mxu0
        %v1496 = vadd.f32 %v1435, %v1495
        %v1497 = vpop.f32.mrb[0].mxu0
        %1498 = vmatprep.mubr.bf16.mxu0 0
        %1499 = vmatmul.mubr.bf16.gmra.mrb[0].mxu0 %v1445
        %v1500 = vpop.f32.mrb[0].mxu0
        %v1501 = vadd.f32 %v1435, %v1500
        %v1502 = vpop.f32.mrb[0].mxu0
        %v1503 = vpop.f32.mrb[0].mxu0
        %v1504 = vadd.f32 %v1435, %v1503
        %v1505 = vpop.f32.mrb[0].mxu0
        %1506 = vmatprep.mubr.bf16.mxu0 0
        %1507 = vmatmul.mubr.bf16.gmra.mrb[0].mxu0 %v1448
        %v1508 = vpop.f32.mrb[0].mxu0
        %v1509 = vadd.f32 %v1435, %v1508
        %v1510 = vpop.f32.mrb[0].mxu0
        %v1511 = vpop.f32.mrb[0].mxu0
        %v1512 = vadd.f32 %v1435, %v1511
        %v1513 = vpop.f32.mrb[0].mxu0
        %1514 = vdwg.mxu0
        %v1515 = vmul.f32 %v1485, %v1120
        %v1516 = vmul.f32 %v1488, %v1125
        %v1517 = vmul.f32 %v1493, %v1130
        %v1518 = vmul.f32 %v1496, %v1135
        %v1519 = vmul.f32 %v1501, %v1140
        %v1520 = vmul.f32 %v1504, %v1145
        %v1521 = vmul.f32 %v1509, %v1150
        %v1522 = vmul.f32 %v1512, %v1155
        %v1523 = vadd.f32 %v1018, %v1515
        %v1524 = vadd.f32 %v1019, %v1516
        %v1525 = vadd.f32 %v1020, %v1517
        %v1526 = vadd.f32 %v1021, %v1518
        %v1527 = vadd.f32 %v1022, %v1519
        %v1528 = vadd.f32 %v1023, %v1520
        %v1529 = vadd.f32 %v1024, %v1521
        %v1530 = vadd.f32 %v1025, %v1522
        %v1531 = vld [vmem:[%s12] sm:$0x1]
        %v1532 = vld [vmem:[%s13] sm:$0x1]
        %v1533 = vsel %vm876, %v1523, 0.0
        %1534 = vadd.xlane.f32.xlu0 %v1533
        %v1535 = vpop.xlane.xlu0 %1534
        %v1536 = vsel %vm876, %v1524, 0.0
        %1537 = vadd.xlane.f32.xlu0 %v1536
        %v1538 = vpop.xlane.xlu0 %1537
        %v1539 = vsel %vm876, %v1525, 0.0
        %1540 = vadd.xlane.f32.xlu0 %v1539
        %v1541 = vpop.xlane.xlu0 %1540
        %v1542 = vsel %vm876, %v1526, 0.0
        %1543 = vadd.xlane.f32.xlu0 %v1542
        %v1544 = vpop.xlane.xlu0 %1543
        %v1545 = vsel %vm876, %v1527, 0.0
        %1546 = vadd.xlane.f32.xlu0 %v1545
        %v1547 = vpop.xlane.xlu0 %1546
        %v1548 = vsel %vm876, %v1528, 0.0
        %1549 = vadd.xlane.f32.xlu0 %v1548
        %v1550 = vpop.xlane.xlu0 %1549
        %v1551 = vsel %vm876, %v1529, 0.0
        %1552 = vadd.xlane.f32.xlu0 %v1551
        %v1553 = vpop.xlane.xlu0 %1552
        %v1554 = vsel %vm876, %v1530, 0.0
        %1555 = vadd.xlane.f32.xlu0 %v1554
        %v1556 = vpop.xlane.xlu0 %1555
        %v1557 = vrcp.pop 16.0
        %v1558 = vmul.f32 %v1535, %v1557
        %v1559 = vmul.f32 %v1538, %v1557
        %v1560 = vmul.f32 %v1541, %v1557
        %v1561 = vmul.f32 %v1544, %v1557
        %v1562 = vmul.f32 %v1547, %v1557
        %v1563 = vmul.f32 %v1550, %v1557
        %v1564 = vmul.f32 %v1553, %v1557
        %v1565 = vmul.f32 %v1556, %v1557
        %v1566 = vsub.f32 %v1523, %v1558
        %v1567 = vsub.f32 %v1524, %v1559
        %v1568 = vsub.f32 %v1525, %v1560
        %v1569 = vsub.f32 %v1526, %v1561
        %v1570 = vsub.f32 %v1527, %v1562
        %v1571 = vsub.f32 %v1528, %v1563
        %v1572 = vsub.f32 %v1529, %v1564
        %v1573 = vsub.f32 %v1530, %v1565
        %v1574 = vmul.f32 %v1566, %v1566
        %v1575 = vmul.f32 %v1567, %v1567
        %v1576 = vmul.f32 %v1568, %v1568
        %v1577 = vmul.f32 %v1569, %v1569
        %v1578 = vmul.f32 %v1570, %v1570
        %v1579 = vmul.f32 %v1571, %v1571
        %v1580 = vmul.f32 %v1572, %v1572
        %v1581 = vmul.f32 %v1573, %v1573
        %v1582 = vsel %vm876, %v1574, 0.0
        %1583 = vadd.xlane.f32.xlu0 %v1582
        %v1584 = vpop.xlane.xlu0 %1583
        %v1585 = vsel %vm876, %v1575, 0.0
        %1586 = vadd.xlane.f32.xlu0 %v1585
        %v1587 = vpop.xlane.xlu0 %1586
        %v1588 = vsel %vm876, %v1576, 0.0
        %1589 = vadd.xlane.f32.xlu0 %v1588
        %v1590 = vpop.xlane.xlu0 %1589
        %v1591 = vsel %vm876, %v1577, 0.0
        %1592 = vadd.xlane.f32.xlu0 %v1591
        %v1593 = vpop.xlane.xlu0 %1592
        %v1594 = vsel %vm876, %v1578, 0.0
        %1595 = vadd.xlane.f32.xlu0 %v1594
        %v1596 = vpop.xlane.xlu0 %1595
        %v1597 = vsel %vm876, %v1579, 0.0
        %1598 = vadd.xlane.f32.xlu0 %v1597
        %v1599 = vpop.xlane.xlu0 %1598
        %v1600 = vsel %vm876, %v1580, 0.0
        %1601 = vadd.xlane.f32.xlu0 %v1600
        %v1602 = vpop.xlane.xlu0 %1601
        %v1603 = vsel %vm876, %v1581, 0.0
        %1604 = vadd.xlane.f32.xlu0 %v1603
        %v1605 = vpop.xlane.xlu0 %1604
        %v1606 = vmul.f32 %v1584, %v1557
        %v1607 = vmul.f32 %v1587, %v1557
        %v1608 = vmul.f32 %v1590, %v1557
        %v1609 = vmul.f32 %v1593, %v1557
        %v1610 = vmul.f32 %v1596, %v1557
        %v1611 = vmul.f32 %v1599, %v1557
        %v1612 = vmul.f32 %v1602, %v1557
        %v1613 = vmul.f32 %v1605, %v1557
        %v1614 = vadd.f32 %v1606, 1e-05
        %v1615 = vadd.f32 %v1607, 1e-05
        %v1616 = vadd.f32 %v1608, 1e-05
        %v1617 = vadd.f32 %v1609, 1e-05
        %v1618 = vadd.f32 %v1610, 1e-05
        %v1619 = vadd.f32 %v1611, 1e-05
        %v1620 = vadd.f32 %v1612, 1e-05
        %v1621 = vadd.f32 %v1613, 1e-05
        %v1622 = vrsqrt.pop %v1614
        %v1623 = vrsqrt.pop %v1615
        %v1624 = vrsqrt.pop %v1616
        %v1625 = vrsqrt.pop %v1617
        %v1626 = vrsqrt.pop %v1618
        %v1627 = vrsqrt.pop %v1619
        %v1628 = vrsqrt.pop %v1620
        %v1629 = vrsqrt.pop %v1621
        %v1630 = vmul.f32 %v1566, %v1622
        %v1631 = vmul.f32 %v1567, %v1623
        %v1632 = vmul.f32 %v1568, %v1624
        %v1633 = vmul.f32 %v1569, %v1625
        %v1634 = vmul.f32 %v1570, %v1626
        %v1635 = vmul.f32 %v1571, %v1627
        %v1636 = vmul.f32 %v1572, %v1628
        %v1637 = vmul.f32 %v1573, %v1629
        %v1639 = vlaneseq
        %v1640 = vshrl.u32 %v1639, 7
        %v1641 = vsub.s32 0, %v1640
        %v1642 = vrot.slane %v1531, %v1641
        %v1644 = vmul.f32 %v1630, %v1642
        %v1645 = vmul.f32 %v1631, %v1642
        %v1646 = vmul.f32 %v1632, %v1642
        %v1647 = vmul.f32 %v1633, %v1642
        %v1648 = vmul.f32 %v1634, %v1642
        %v1649 = vmul.f32 %v1635, %v1642
        %v1650 = vmul.f32 %v1636, %v1642
        %v1651 = vmul.f32 %v1637, %v1642
        %v1653 = vlaneseq
        %v1654 = vshrl.u32 %v1653, 7
        %v1655 = vsub.s32 0, %v1654
        %v1656 = vrot.slane %v1532, %v1655
        %v1658 = vadd.f32 %v1644, %v1656
        %v1659 = vadd.f32 %v1645, %v1656
        %v1660 = vadd.f32 %v1646, %v1656
        %v1661 = vadd.f32 %v1647, %v1656
        %v1662 = vadd.f32 %v1648, %v1656
        %v1663 = vadd.f32 %v1649, %v1656
        %v1664 = vadd.f32 %v1650, %v1656
        %v1665 = vadd.f32 %v1651, %v1656
        %v1666 = vld [vmem:[#allocation11] sm:$0xff]
        %v1667 = vld [vmem:[#allocation11 + $0x8] sm:$0xff]
        %v1668 = vpack.c.bf16 %v1659, %v1658
        %v1669 = vpack.c.bf16 %v1661, %v1660
        %v1670 = vpack.c.bf16 %v1663, %v1662
        %v1671 = vpack.c.bf16 %v1665, %v1664
        %v1672 = vpack.c.bf16 %v1667, %v1666
        %v1673 = vld [vmem:[#allocation12] sm:$0x1]
        %v1675 = vlaneseq
        %v1676 = vshrl.u32 %v1675, 7
        %v1677 = vsub.s32 0, %v1676
        %v1678 = vrot.slane %v1673, %v1677
        %v1681 = vsel %vm876, %v1668, 0
        %v1684 = vsel %vm876, %v1669, 0
        %v1687 = vsel %vm876, %v1670, 0
        %v1690 = vsel %vm876, %v1671, 0
        %1692 = vmatprep.subr.bf16.mxu0 0
        %1693 = vmatpush1.bf16.msra.mxu0 %v1672
        %1694 = vmatprep.subr.bf16.mxu0 0
        %1695 = vmatpush1.bf16.msra.mxu0 0
        %1696 = vmatprep.subr.bf16.mxu0 0
        %1697 = vmatpush1.bf16.msra.mxu0 0
        %1698 = vmatprep.subr.bf16.mxu0 0
        %1699 = vmatpush1.bf16.msra.mxu0 0
        %1700 = vmatprep.subr.bf16.mxu0 0
        %1701 = vmatpush1.bf16.msra.mxu0 0
        %1702 = vmatprep.subr.bf16.mxu0 0
        %1703 = vmatpush1.bf16.msra.mxu0 0
        %1704 = vmatprep.subr.bf16.mxu0 0
        %1705 = vmatpush1.bf16.msra.mxu0 0
        %1706 = vmatprep.subr.bf16.mxu0 0
        %1707 = vmatpush1.bf16.msra.mxu0 0
        %1708 = vmatprep.subr.bf16.mxu0 0
        %1709 = vmatpush1.bf16.msra.mxu0 0
        %1710 = vmatprep.subr.bf16.mxu0 0
        %1711 = vmatpush1.bf16.msra.mxu0 0
        %1712 = vmatprep.subr.bf16.mxu0 0
        %1713 = vmatpush1.bf16.msra.mxu0 0
        %1714 = vmatprep.subr.bf16.mxu0 0
        %1715 = vmatpush1.bf16.msra.mxu0 0
        %1716 = vmatprep.subr.bf16.mxu0 0
        %1717 = vmatpush1.bf16.msra.mxu0 0
        %1718 = vmatprep.subr.bf16.mxu0 0
        %1719 = vmatpush1.bf16.msra.mxu0 0
        %1720 = vmatprep.subr.bf16.mxu0 0
        %1721 = vmatpush1.bf16.msra.mxu0 0
        %1722 = vmatprep.subr.bf16.mxu0 0
        %1723 = vmatpush1.bf16.msra.mxu0 0
        %1724 = vmatprep.mubr.bf16.mxu0 0
        %1725 = vmatmul.mubr.bf16.gmra.mrb[0].mxu0 %v1681
        %v1726 = vpop.f32.mrb[0].mxu0
        %v1727 = vadd.f32 %v1678, %v1726
        %v1728 = vpop.f32.mrb[0].mxu0
        %v1729 = vpop.f32.mrb[0].mxu0
        %v1730 = vadd.f32 %v1678, %v1729
        %v1731 = vpop.f32.mrb[0].mxu0
        %1732 = vmatprep.mubr.bf16.mxu0 0
        %1733 = vmatmul.mubr.bf16.gmra.mrb[0].mxu0 %v1684
        %v1734 = vpop.f32.mrb[0].mxu0
        %v1735 = vadd.f32 %v1678, %v1734
        %v1736 = vpop.f32.mrb[0].mxu0
        %v1737 = vpop.f32.mrb[0].mxu0
        %v1738 = vadd.f32 %v1678, %v1737
        %v1739 = vpop.f32.mrb[0].mxu0
        %1740 = vmatprep.mubr.bf16.mxu0 0
        %1741 = vmatmul.mubr.bf16.gmra.mrb[0].mxu0 %v1687
        %v1742 = vpop.f32.mrb[0].mxu0
        %v1743 = vadd.f32 %v1678, %v1742
        %v1744 = vpop.f32.mrb[0].mxu0
        %v1745 = vpop.f32.mrb[0].mxu0
        %v1746 = vadd.f32 %v1678, %v1745
        %v1747 = vpop.f32.mrb[0].mxu0
        %1748 = vmatprep.mubr.bf16.mxu0 0
        %1749 = vmatmul.mubr.bf16.gmra.mrb[0].mxu0 %v1690
        %v1750 = vpop.f32.mrb[0].mxu0
        %v1751 = vadd.f32 %v1678, %v1750
        %v1752 = vpop.f32.mrb[0].mxu0
        %v1753 = vpop.f32.mrb[0].mxu0
        %v1754 = vadd.f32 %v1678, %v1753
        %v1755 = vpop.f32.mrb[0].mxu0
        %1756 = vdwg.mxu0
        %v1757 = vmax.f32 %v1727, 0.0
        %v1758 = vmax.f32 %v1730, 0.0
        %v1759 = vmax.f32 %v1735, 0.0
        %v1760 = vmax.f32 %v1738, 0.0
        %v1761 = vmax.f32 %v1743, 0.0
        %v1762 = vmax.f32 %v1746, 0.0
        %v1763 = vmax.f32 %v1751, 0.0
        %v1764 = vmax.f32 %v1754, 0.0
        %v1765 = vld [vmem:[%s16] sm:$0xff]
        %v1766 = vld [vmem:[%s16 + $0x8] sm:$0xff]
        %v1767 = vld [vmem:[%s16 + $0x10] sm:$0xff]
        %v1768 = vld [vmem:[%s16 + $0x18] sm:$0xff]
        %v1769 = vpack.c.bf16 %v1758, %v1757
        %v1770 = vpack.c.bf16 %v1760, %v1759
        %v1771 = vpack.c.bf16 %v1762, %v1761
        %v1772 = vpack.c.bf16 %v1764, %v1763
        %v1773 = vpack.c.bf16 %v1766, %v1765
        %v1774 = vpack.c.bf16 %v1768, %v1767
        %v1775 = vld [vmem:[#allocation14] sm:$0x1]
        %v1777 = vlaneseq
        %v1778 = vshrl.u32 %v1777, 7
        %v1779 = vsub.s32 0, %v1778
        %v1780 = vrot.slane %v1775, %v1779
        %v1783 = vsel %vm1437, %v1769, 0
        %v1786 = vsel %vm1437, %v1770, 0
        %v1789 = vsel %vm1437, %v1771, 0
        %v1792 = vsel %vm1437, %v1772, 0
        %1794 = vmatprep.subr.bf16.mxu0 0
        %1795 = vmatpush1.bf16.msra.mxu0 %v1773
        %1796 = vmatprep.subr.bf16.mxu0 0
        %1797 = vmatpush1.bf16.msra.mxu0 %v1774
        %1798 = vmatprep.subr.bf16.mxu0 0
        %1799 = vmatpush1.bf16.msra.mxu0 0
        %1800 = vmatprep.subr.bf16.mxu0 0
        %1801 = vmatpush1.bf16.msra.mxu0 0
        %1802 = vmatprep.subr.bf16.mxu0 0
        %1803 = vmatpush1.bf16.msra.mxu0 0
        %1804 = vmatprep.subr.bf16.mxu0 0
        %1805 = vmatpush1.bf16.msra.mxu0 0
        %1806 = vmatprep.subr.bf16.mxu0 0
        %1807 = vmatpush1.bf16.msra.mxu0 0
        %1808 = vmatprep.subr.bf16.mxu0 0
        %1809 = vmatpush1.bf16.msra.mxu0 0
        %1810 = vmatprep.subr.bf16.mxu0 0
        %1811 = vmatpush1.bf16.msra.mxu0 0
        %1812 = vmatprep.subr.bf16.mxu0 0
        %1813 = vmatpush1.bf16.msra.mxu0 0
        %1814 = vmatprep.subr.bf16.mxu0 0
        %1815 = vmatpush1.bf16.msra.mxu0 0
        %1816 = vmatprep.subr.bf16.mxu0 0
        %1817 = vmatpush1.bf16.msra.mxu0 0
        %1818 = vmatprep.subr.bf16.mxu0 0
        %1819 = vmatpush1.bf16.msra.mxu0 0
        %1820 = vmatprep.subr.bf16.mxu0 0
        %1821 = vmatpush1.bf16.msra.mxu0 0
        %1822 = vmatprep.subr.bf16.mxu0 0
        %1823 = vmatpush1.bf16.msra.mxu0 0
        %1824 = vmatprep.subr.bf16.mxu0 0
        %1825 = vmatpush1.bf16.msra.mxu0 0
        %1826 = vmatprep.mubr.bf16.mxu0 0
        %1827 = vmatmul.mubr.bf16.gmra.mrb[0].mxu0 %v1783
        %v1828 = vpop.f32.mrb[0].mxu0
        %v1829 = vadd.f32 %v1780, %v1828
        %v1830 = vpop.f32.mrb[0].mxu0
        %v1831 = vpop.f32.mrb[0].mxu0
        %v1832 = vadd.f32 %v1780, %v1831
        %v1833 = vpop.f32.mrb[0].mxu0
        %1834 = vmatprep.mubr.bf16.mxu0 0
        %1835 = vmatmul.mubr.bf16.gmra.mrb[0].mxu0 %v1786
        %v1836 = vpop.f32.mrb[0].mxu0
        %v1837 = vadd.f32 %v1780, %v1836
        %v1838 = vpop.f32.mrb[0].mxu0
        %v1839 = vpop.f32.mrb[0].mxu0
        %v1840 = vadd.f32 %v1780, %v1839
        %v1841 = vpop.f32.mrb[0].mxu0
        %1842 = vmatprep.mubr.bf16.mxu0 0
        %1843 = vmatmul.mubr.bf16.gmra.mrb[0].mxu0 %v1789
        %v1844 = vpop.f32.mrb[0].mxu0
        %v1845 = vadd.f32 %v1780, %v1844
        %v1846 = vpop.f32.mrb[0].mxu0
        %v1847 = vpop.f32.mrb[0].mxu0
        %v1848 = vadd.f32 %v1780, %v1847
        %v1849 = vpop.f32.mrb[0].mxu0
        %1850 = vmatprep.mubr.bf16.mxu0 0
        %1851 = vmatmul.mubr.bf16.gmra.mrb[0].mxu0 %v1792
        %v1852 = vpop.f32.mrb[0].mxu0
        %v1853 = vadd.f32 %v1780, %v1852
        %v1854 = vpop.f32.mrb[0].mxu0
        %v1855 = vpop.f32.mrb[0].mxu0
        %v1856 = vadd.f32 %v1780, %v1855
        %v1857 = vpop.f32.mrb[0].mxu0
        %1858 = vdwg.mxu0
        %v1859 = vadd.f32 %v1658, %v1829
        %v1860 = vadd.f32 %v1659, %v1832
        %v1861 = vadd.f32 %v1660, %v1837
        %v1862 = vadd.f32 %v1661, %v1840
        %v1863 = vadd.f32 %v1662, %v1845
        %v1864 = vadd.f32 %v1663, %v1848
        %v1865 = vadd.f32 %v1664, %v1853
        %v1866 = vadd.f32 %v1665, %v1856
        %v1867 = vld [vmem:[%s18] sm:$0x1]
        %v1868 = vld [vmem:[%s19] sm:$0x1]
        %v1869 = vsel %vm876, %v1859, 0.0
        %1870 = vadd.xlane.f32.xlu0 %v1869
        %v1871 = vpop.xlane.xlu0 %1870
        %v1872 = vsel %vm876, %v1860, 0.0
        %1873 = vadd.xlane.f32.xlu0 %v1872
        %v1874 = vpop.xlane.xlu0 %1873
        %v1875 = vsel %vm876, %v1861, 0.0
        %1876 = vadd.xlane.f32.xlu0 %v1875
        %v1877 = vpop.xlane.xlu0 %1876
        %v1878 = vsel %vm876, %v1862, 0.0
        %1879 = vadd.xlane.f32.xlu0 %v1878
        %v1880 = vpop.xlane.xlu0 %1879
        %v1881 = vsel %vm876, %v1863, 0.0
        %1882 = vadd.xlane.f32.xlu0 %v1881
        %v1883 = vpop.xlane.xlu0 %1882
        %v1884 = vsel %vm876, %v1864, 0.0
        %1885 = vadd.xlane.f32.xlu0 %v1884
        %v1886 = vpop.xlane.xlu0 %1885
        %v1887 = vsel %vm876, %v1865, 0.0
        %1888 = vadd.xlane.f32.xlu0 %v1887
        %v1889 = vpop.xlane.xlu0 %1888
        %v1890 = vsel %vm876, %v1866, 0.0
        %1891 = vadd.xlane.f32.xlu0 %v1890
        %v1892 = vpop.xlane.xlu0 %1891
        %v1893 = vmul.f32 %v1871, %v1557
        %v1894 = vmul.f32 %v1874, %v1557
        %v1895 = vmul.f32 %v1877, %v1557
        %v1896 = vmul.f32 %v1880, %v1557
        %v1897 = vmul.f32 %v1883, %v1557
        %v1898 = vmul.f32 %v1886, %v1557
        %v1899 = vmul.f32 %v1889, %v1557
        %v1900 = vmul.f32 %v1892, %v1557
        %v1901 = vsub.f32 %v1859, %v1893
        %v1902 = vsub.f32 %v1860, %v1894
        %v1903 = vsub.f32 %v1861, %v1895
        %v1904 = vsub.f32 %v1862, %v1896
        %v1905 = vsub.f32 %v1863, %v1897
        %v1906 = vsub.f32 %v1864, %v1898
        %v1907 = vsub.f32 %v1865, %v1899
        %v1908 = vsub.f32 %v1866, %v1900
        %v1909 = vmul.f32 %v1901, %v1901
        %v1910 = vmul.f32 %v1902, %v1902
        %v1911 = vmul.f32 %v1903, %v1903
        %v1912 = vmul.f32 %v1904, %v1904
        %v1913 = vmul.f32 %v1905, %v1905
        %v1914 = vmul.f32 %v1906, %v1906
        %v1915 = vmul.f32 %v1907, %v1907
        %v1916 = vmul.f32 %v1908, %v1908
        %v1917 = vsel %vm876, %v1909, 0.0
        %1918 = vadd.xlane.f32.xlu0 %v1917
        %v1919 = vpop.xlane.xlu0 %1918
        %v1920 = vsel %vm876, %v1910, 0.0
        %1921 = vadd.xlane.f32.xlu0 %v1920
        %v1922 = vpop.xlane.xlu0 %1921
        %v1923 = vsel %vm876, %v1911, 0.0
        %1924 = vadd.xlane.f32.xlu0 %v1923
        %v1925 = vpop.xlane.xlu0 %1924
        %v1926 = vsel %vm876, %v1912, 0.0
        %1927 = vadd.xlane.f32.xlu0 %v1926
        %v1928 = vpop.xlane.xlu0 %1927
        %v1929 = vsel %vm876, %v1913, 0.0
        %1930 = vadd.xlane.f32.xlu0 %v1929
        %v1931 = vpop.xlane.xlu0 %1930
        %v1932 = vsel %vm876, %v1914, 0.0
        %1933 = vadd.xlane.f32.xlu0 %v1932
        %v1934 = vpop.xlane.xlu0 %1933
        %v1935 = vsel %vm876, %v1915, 0.0
        %1936 = vadd.xlane.f32.xlu0 %v1935
        %v1937 = vpop.xlane.xlu0 %1936
        %v1938 = vsel %vm876, %v1916, 0.0
        %1939 = vadd.xlane.f32.xlu0 %v1938
        %v1940 = vpop.xlane.xlu0 %1939
        %v1941 = vmul.f32 %v1919, %v1557
        %v1942 = vmul.f32 %v1922, %v1557
        %v1943 = vmul.f32 %v1925, %v1557
        %v1944 = vmul.f32 %v1928, %v1557
        %v1945 = vmul.f32 %v1931, %v1557
        %v1946 = vmul.f32 %v1934, %v1557
        %v1947 = vmul.f32 %v1937, %v1557
        %v1948 = vmul.f32 %v1940, %v1557
        %v1949 = vadd.f32 %v1941, 1e-05
        %v1950 = vadd.f32 %v1942, 1e-05
        %v1951 = vadd.f32 %v1943, 1e-05
        %v1952 = vadd.f32 %v1944, 1e-05
        %v1953 = vadd.f32 %v1945, 1e-05
        %v1954 = vadd.f32 %v1946, 1e-05
        %v1955 = vadd.f32 %v1947, 1e-05
        %v1956 = vadd.f32 %v1948, 1e-05
        %v1957 = vrsqrt.pop %v1949
        %v1958 = vrsqrt.pop %v1950
        %v1959 = vrsqrt.pop %v1951
        %v1960 = vrsqrt.pop %v1952
        %v1961 = vrsqrt.pop %v1953
        %v1962 = vrsqrt.pop %v1954
        %v1963 = vrsqrt.pop %v1955
        %v1964 = vrsqrt.pop %v1956
        %v1965 = vmul.f32 %v1901, %v1957
        %v1966 = vmul.f32 %v1902, %v1958
        %v1967 = vmul.f32 %v1903, %v1959
        %v1968 = vmul.f32 %v1904, %v1960
        %v1969 = vmul.f32 %v1905, %v1961
        %v1970 = vmul.f32 %v1906, %v1962
        %v1971 = vmul.f32 %v1907, %v1963
        %v1972 = vmul.f32 %v1908, %v1964
        %v1974 = vlaneseq
        %v1975 = vshrl.u32 %v1974, 7
        %v1976 = vsub.s32 0, %v1975
        %v1977 = vrot.slane %v1867, %v1976
        %v1979 = vmul.f32 %v1965, %v1977
        %v1980 = vmul.f32 %v1966, %v1977
        %v1981 = vmul.f32 %v1967, %v1977
        %v1982 = vmul.f32 %v1968, %v1977
        %v1983 = vmul.f32 %v1969, %v1977
        %v1984 = vmul.f32 %v1970, %v1977
        %v1985 = vmul.f32 %v1971, %v1977
        %v1986 = vmul.f32 %v1972, %v1977
        %v1988 = vlaneseq
        %v1989 = vshrl.u32 %v1988, 7
        %v1990 = vsub.s32 0, %v1989
        %v1991 = vrot.slane %v1868, %v1990
        %v1993 = vadd.f32 %v1979, %v1991
        %v1994 = vadd.f32 %v1980, %v1991
        %v1995 = vadd.f32 %v1981, %v1991
        %v1996 = vadd.f32 %v1982, %v1991
        %v1997 = vadd.f32 %v1983, %v1991
        %v1998 = vadd.f32 %v1984, %v1991
        %v1999 = vadd.f32 %v1985, %v1991
        %v2000 = vadd.f32 %v1986, %v1991
        %2001 = vst.msk [vmem:[%s806] sm:$0xff] %vm876, %v1993
        %2002 = vst.msk [vmem:[%s806 + $0x8] sm:$0xff] %vm876, %v1994
        %2003 = vst.msk [vmem:[%s806 + $0x10] sm:$0xff] %vm876, %v1995
        %2004 = vst.msk [vmem:[%s806 + $0x18] sm:$0xff] %vm876, %v1996
        %2005 = vst.msk [vmem:[%s806 + $0x20] sm:$0xff] %vm876, %v1997
        %2006 = vst.msk [vmem:[%s806 + $0x28] sm:$0xff] %vm876, %v1998
        %2007 = vst.msk [vmem:[%s806 + $0x30] sm:$0xff] %vm876, %v1999
        %2008 = vst.msk [vmem:[%s806 + $0x38] sm:$0xff] %vm876, %v2000
        %v2009 = vld [vmem:[#allocation2] sm:$0x1]
        %v2010 = vsel %vm876, %v1018, 0.0
        %v2011 = vsel %vm876, %v1019, 0.0
        %v2012 = vadd.f32 %v2010, %v2011
        %v2013 = vsel %vm876, %v1020, 0.0
        %v2014 = vadd.f32 %v2012, %v2013
        %v2015 = vsel %vm876, %v1021, 0.0
        %v2016 = vadd.f32 %v2014, %v2015
        %v2017 = vsel %vm876, %v1022, 0.0
        %v2018 = vadd.f32 %v2016, %v2017
        %v2019 = vsel %vm876, %v1023, 0.0
        %v2020 = vadd.f32 %v2018, %v2019
        %v2021 = vsel %vm876, %v1024, 0.0
        %v2022 = vadd.f32 %v2020, %v2021
        %v2023 = vsel %vm876, %v1025, 0.0
        %v2024 = vadd.f32 %v2022, %v2023
        %v2025 = vrot.slane %v2024, 4
        %v2026 = vadd.f32 %v2024, %v2025
        %v2027 = vrot.slane %v2026, 2
        %v2028 = vadd.f32 %v2026, %v2027
        %v2029 = vrot.slane %v2028, 1
        %v2030 = vadd.f32 %v2028, %v2029
        %v2031 = vadd.f32 %v2009, %v2030
        %vm2032 = vcmask 122880
        %2033 = vst.msk [vmem:[#allocation2] sm:$0x1] %vm2032, %v2031
        %v2034 = vld [vmem:[#allocation3] sm:$0x1]
        %v2035 = vmul.f32 %v1018, %v1018
        %v2036 = vmul.f32 %v1019, %v1019
        %v2037 = vmul.f32 %v1020, %v1020
        %v2038 = vmul.f32 %v1021, %v1021
        %v2039 = vmul.f32 %v1022, %v1022
        %v2040 = vmul.f32 %v1023, %v1023
        %v2041 = vmul.f32 %v1024, %v1024
        %v2042 = vmul.f32 %v1025, %v1025
        %v2043 = vsel %vm876, %v2035, 0.0
        %v2044 = vsel %vm876, %v2036, 0.0
        %v2045 = vadd.f32 %v2043, %v2044
        %v2046 = vsel %vm876, %v2037, 0.0
        %v2047 = vadd.f32 %v2045, %v2046
        %v2048 = vsel %vm876, %v2038, 0.0
        %v2049 = vadd.f32 %v2047, %v2048
        %v2050 = vsel %vm876, %v2039, 0.0
        %v2051 = vadd.f32 %v2049, %v2050
        %v2052 = vsel %vm876, %v2040, 0.0
        %v2053 = vadd.f32 %v2051, %v2052
        %v2054 = vsel %vm876, %v2041, 0.0
        %v2055 = vadd.f32 %v2053, %v2054
        %v2056 = vsel %vm876, %v2042, 0.0
        %v2057 = vadd.f32 %v2055, %v2056
        %v2058 = vrot.slane %v2057, 4
        %v2059 = vadd.f32 %v2057, %v2058
        %v2060 = vrot.slane %v2059, 2
        %v2061 = vadd.f32 %v2059, %v2060
        %v2062 = vrot.slane %v2061, 1
        %v2063 = vadd.f32 %v2061, %v2062
        %v2064 = vadd.f32 %v2034, %v2063
        %2065 = vst.msk [vmem:[#allocation3] sm:$0x1] %vm2032, %v2064
        %v2066 = vld [vmem:[#allocation4] sm:$0x1]
        %v2067 = vsel %vm876, %v1018, inf
        %v2068 = vsel %vm876, %v1019, inf
        %v2069 = vsel %vm876, %v1020, inf
        %v2070 = vsel %vm876, %v1021, inf
        %v2071 = vsel %vm876, %v1022, inf
        %v2072 = vmin.f32 %v2067, %v2071
        %v2073 = vsel %vm876, %v1023, inf
        %v2074 = vmin.f32 %v2068, %v2073
        %v2075 = vsel %vm876, %v1024, inf
        %v2076 = vmin.f32 %v2069, %v2075
        %v2077 = vsel %vm876, %v1025, inf
        %v2078 = vmin.f32 %v2070, %v2077
        %v2079 = vmin.f32 %v2072, %v2074
        %v2080 = vmin.f32 %v2076, %v2078
        %v2081 = vmin.f32 %v2079, %v2080
        %v2082 = vrot.slane %v2081, 4
        %v2083 = vmin.f32 %v2081, %v2082
        %v2084 = vrot.slane %v2083, 2
        %v2085 = vmin.f32 %v2083, %v2084
        %v2086 = vrot.slane %v2085, 1
        %v2087 = vmin.f32 %v2085, %v2086
        %v2088 = vmin.f32 %v2066, %v2087
        %2089 = vst.msk [vmem:[#allocation4] sm:$0x1] %vm2032, %v2088
        %v2090 = vld [vmem:[#allocation5] sm:$0x1]
        %v2091 = vsel %vm876, %v1018, -inf
        %v2092 = vsel %vm876, %v1019, -inf
        %v2093 = vsel %vm876, %v1020, -inf
        %v2094 = vsel %vm876, %v1021, -inf
        %v2095 = vsel %vm876, %v1022, -inf
        %v2096 = vmax.f32 %v2091, %v2095
        %v2097 = vsel %vm876, %v1023, -inf
        %v2098 = vmax.f32 %v2092, %v2097
        %v2099 = vsel %vm876, %v1024, -inf
        %v2100 = vmax.f32 %v2093, %v2099
        %v2101 = vsel %vm876, %v1025, -inf
        %v2102 = vmax.f32 %v2094, %v2101
        %v2103 = vmax.f32 %v2096, %v2098
        %v2104 = vmax.f32 %v2100, %v2102
        %v2105 = vmax.f32 %v2103, %v2104
        %v2106 = vrot.slane %v2105, 4
        %v2107 = vmax.f32 %v2105, %v2106
        %v2108 = vrot.slane %v2107, 2
        %v2109 = vmax.f32 %v2107, %v2108
        %v2110 = vrot.slane %v2109, 1
        %v2111 = vmax.f32 %v2109, %v2110
        %v2112 = vmax.f32 %v2090, %v2111
        %2113 = vst.msk [vmem:[#allocation5] sm:$0x1] %vm2032, %v2112
        // Predicated region
        $region125: #{xey_transformer_layer.5} parent=99 // pred_check
          %p2114 = pneg %p854
        $region126: #{xey_transformer_layer.5} parent=99 // pred_check_branch
          %2116 = sbr.rel (%p2114) target = $region128
        $region127: #{xey_transformer_layer.5} parent=99 // pred_region
          %v2117 = vld [vmem:[#allocation2] sm:$0x1]
          %v2118 = vmul.f32 %v2117, 0.015625
          %v2119 = vld [vmem:[#allocation3] sm:$0x1]
          %v2120 = vmul.f32 %v2118, 64.0
          %v2121 = vmul.f32 %v2120, %v2118
          %v2122 = vsub.f32 %v2119, %v2121
          %v2123 = vmul.f32 %v2122, 0.015873017
          %v2124 = vmax.f32 %v2123, 0.0
          %v2125 = vrsqrt.pop %v2124
          %v2126 = vmul.f32 %v2124, %v2125
          %vm2127 = vcmp.eq.f32.partialorder %v2124, inf
          %v2128 = vsel %vm2127, %v2124, %v2126
          %vm2129 = vcmp.eq.f32.partialorder %v2124, 0.0
          %v2130 = vand.u32 %v2124, 2147483648
          %v2131 = vsel %vm2129, %v2130, %v2128
          %2132 = vst.msk [vmem:[%s852] sm:$0x1] %vm2032, %v2118
          %v2133 = vld [vmem:[#allocation4] sm:$0x1]
          %v2135 = vlaneseq
          %v2136 = vshrl.u32 %v2135, 7
          %v2137 = vsub.s32 0, %v2136
          %v2138 = vrot.slane %v2133, %v2137
          %2139 = vrot.lane.b32.xlu0 %v2138, 16
          %v2140 = vpop.permute.xlu0 %2139
          %vm2142 = vcmask 254080
          %2143 = vst.msk [vmem:[%s852] sm:$0x1] %vm2142, %v2140
          %v2144 = vld [vmem:[#allocation5] sm:$0x1]
          %v2146 = vlaneseq
          %v2147 = vshrl.u32 %v2146, 7
          %v2148 = vsub.s32 0, %v2147
          %v2149 = vrot.slane %v2144, %v2148
          %2150 = vrot.lane.b32.xlu0 %v2149, 32
          %v2151 = vpop.permute.xlu0 %2150
          %vm2153 = vcmask 385280
          %2154 = vst.msk [vmem:[%s852] sm:$0x1] %vm2153, %v2151
          %v2156 = vlaneseq
          %v2157 = vshrl.u32 %v2156, 7
          %v2158 = vsub.s32 0, %v2157
          %v2159 = vrot.slane %v2131, %v2158
          %2160 = vrot.lane.b32.xlu0 %v2159, 48
          %v2161 = vpop.permute.xlu0 %2160
          %vm2163 = vcmask 516480
          %2164 = vst.msk [vmem:[%s852] sm:$0x1] %vm2163, %v2161
        $region128: #{xey_transformer_layer.5} parent=99 // pred_fallthru
          _
        %vm2165 = vcmp.gt.f32.partialorder %v867, 0.0
        %v2166 = vsel %vm2165, 1, 0
        %2167 = vset.pattern.permute.xlu0 0
        %2168 = vperm.xlu0 %2167, %v2166
        %v2169 = vpop.permute.xlu0 %2168
        %vm2170 = vcmp.eq.s32.totalorder %v2169, 1
        %v2171 = vsel %vm2170, %v1323, -1e+30
        %v2172 = vsel %vm2170, %v1324, -1e+30
        %v2173 = vsel %vm2170, %v1325, -1e+30
        %v2174 = vsel %vm2170, %v1326, -1e+30
        %v2175 = vsel %vm2170, %v1327, -1e+30
        %v2176 = vsel %vm2170, %v1328, -1e+30
        %v2177 = vsel %vm2170, %v1329, -1e+30
        %v2178 = vsel %vm2170, %v1330, -1e+30
        %v2179 = vsel %vm1437, %v2171, -inf
        %v2180 = vrot.slane %v2179, 4
        %v2181 = vmax.f32 %v2179, %v2180
        %v2182 = vrot.slane %v2181, 2
        %v2183 = vmax.f32 %v2181, %v2182
        %v2184 = vrot.slane %v2183, 1
        %v2185 = vmax.f32 %v2183, %v2184
        %v2186 = vsel %vm1437, %v2172, -inf
        %v2187 = vrot.slane %v2186, 4
        %v2188 = vmax.f32 %v2186, %v2187
        %v2189 = vrot.slane %v2188, 2
        %v2190 = vmax.f32 %v2188, %v2189
        %v2191 = vrot.slane %v2190, 1
        %v2192 = vmax.f32 %v2190, %v2191
        %v2193 = vsel %vm1437, %v2173, -inf
        %v2194 = vrot.slane %v2193, 4
        %v2195 = vmax.f32 %v2193, %v2194
        %v2196 = vrot.slane %v2195, 2
        %v2197 = vmax.f32 %v2195, %v2196
        %v2198 = vrot.slane %v2197, 1
        %v2199 = vmax.f32 %v2197, %v2198
        %v2200 = vsel %vm1437, %v2174, -inf
        %v2201 = vrot.slane %v2200, 4
        %v2202 = vmax.f32 %v2200, %v2201
        %v2203 = vrot.slane %v2202, 2
        %v2204 = vmax.f32 %v2202, %v2203
        %v2205 = vrot.slane %v2204, 1
        %v2206 = vmax.f32 %v2204, %v2205
        %v2207 = vsel %vm1437, %v2175, -inf
        %v2208 = vrot.slane %v2207, 4
        %v2209 = vmax.f32 %v2207, %v2208
        %v2210 = vrot.slane %v2209, 2
        %v2211 = vmax.f32 %v2209, %v2210
        %v2212 = vrot.slane %v2211, 1
        %v2213 = vmax.f32 %v2211, %v2212
        %v2214 = vsel %vm1437, %v2176, -inf
        %v2215 = vrot.slane %v2214, 4
        %v2216 = vmax.f32 %v2214, %v2215
        %v2217 = vrot.slane %v2216, 2
        %v2218 = vmax.f32 %v2216, %v2217
        %v2219 = vrot.slane %v2218, 1
        %v2220 = vmax.f32 %v2218, %v2219
        %v2221 = vsel %vm1437, %v2177, -inf
        %v2222 = vrot.slane %v2221, 4
        %v2223 = vmax.f32 %v2221, %v2222
        %v2224 = vrot.slane %v2223, 2
        %v2225 = vmax.f32 %v2223, %v2224
        %v2226 = vrot.slane %v2225, 1
        %v2227 = vmax.f32 %v2225, %v2226
        %v2228 = vsel %vm1437, %v2178, -inf
        %v2229 = vrot.slane %v2228, 4
        %v2230 = vmax.f32 %v2228, %v2229
        %v2231 = vrot.slane %v2230, 2
        %v2232 = vmax.f32 %v2230, %v2231
        %v2233 = vrot.slane %v2232, 1
        %v2234 = vmax.f32 %v2232, %v2233
        %v2235 = vsub.f32 %v2171, %v2185
        %v2236 = vsub.f32 %v2172, %v2192
        %v2237 = vsub.f32 %v2173, %v2199
        %v2238 = vsub.f32 %v2174, %v2206
        %v2239 = vsub.f32 %v2175, %v2213
        %v2240 = vsub.f32 %v2176, %v2220
        %v2241 = vsub.f32 %v2177, %v2227
        %v2242 = vsub.f32 %v2178, %v2234
        %v2243 = vmul.f32 %v2235, 1.442695
        %v2244 = vpow.pop %v2243
        %v2245 = vmul.f32 %v2236, 1.442695
        %v2246 = vpow.pop %v2245
        %v2247 = vmul.f32 %v2237, 1.442695
        %v2248 = vpow.pop %v2247
        %v2249 = vmul.f32 %v2238, 1.442695
        %v2250 = vpow.pop %v2249
        %v2251 = vmul.f32 %v2239, 1.442695
        %v2252 = vpow.pop %v2251
        %v2253 = vmul.f32 %v2240, 1.442695
        %v2254 = vpow.pop %v2253
        %v2255 = vmul.f32 %v2241, 1.442695
        %v2256 = vpow.pop %v2255
        %v2257 = vmul.f32 %v2242, 1.442695
        %v2258 = vpow.pop %v2257
        %v2259 = vsel %vm2170, %v2244, 0.0
        %v2260 = vsel %vm2170, %v2246, 0.0
        %v2261 = vsel %vm2170, %v2248, 0.0
        %v2262 = vsel %vm2170, %v2250, 0.0
        %v2263 = vsel %vm2170, %v2252, 0.0
        %v2264 = vsel %vm2170, %v2254, 0.0
        %v2265 = vsel %vm2170, %v2256, 0.0
        %v2266 = vsel %vm2170, %v2258, 0.0
        %v2267 = vsel %vm1437, %v2259, 0.0
        %v2268 = vrot.slane %v2267, 4
        %v2269 = vadd.f32 %v2267, %v2268
        %v2270 = vrot.slane %v2269, 2
        %v2271 = vadd.f32 %v2269, %v2270
        %v2272 = vrot.slane %v2271, 1
        %v2273 = vadd.f32 %v2271, %v2272
        %v2274 = vsel %vm1437, %v2260, 0.0
        %v2275 = vrot.slane %v2274, 4
        %v2276 = vadd.f32 %v2274, %v2275
        %v2277 = vrot.slane %v2276, 2
        %v2278 = vadd.f32 %v2276, %v2277
        %v2279 = vrot.slane %v2278, 1
        %v2280 = vadd.f32 %v2278, %v2279
        %v2281 = vsel %vm1437, %v2261, 0.0
        %v2282 = vrot.slane %v2281, 4
        %v2283 = vadd.f32 %v2281, %v2282
        %v2284 = vrot.slane %v2283, 2
        %v2285 = vadd.f32 %v2283, %v2284
        %v2286 = vrot.slane %v2285, 1
        %v2287 = vadd.f32 %v2285, %v2286
        %v2288 = vsel %vm1437, %v2262, 0.0
        %v2289 = vrot.slane %v2288, 4
        %v2290 = vadd.f32 %v2288, %v2289
        %v2291 = vrot.slane %v2290, 2
        %v2292 = vadd.f32 %v2290, %v2291
        %v2293 = vrot.slane %v2292, 1
        %v2294 = vadd.f32 %v2292, %v2293
        %v2295 = vsel %vm1437, %v2263, 0.0
        %v2296 = vrot.slane %v2295, 4
        %v2297 = vadd.f32 %v2295, %v2296
        %v2298 = vrot.slane %v2297, 2
        %v2299 = vadd.f32 %v2297, %v2298
        %v2300 = vrot.slane %v2299, 1
        %v2301 = vadd.f32 %v2299, %v2300
        %v2302 = vsel %vm1437, %v2264, 0.0
        %v2303 = vrot.slane %v2302, 4
        %v2304 = vadd.f32 %v2302, %v2303
        %v2305 = vrot.slane %v2304, 2
        %v2306 = vadd.f32 %v2304, %v2305
        %v2307 = vrot.slane %v2306, 1
        %v2308 = vadd.f32 %v2306, %v2307
        %v2309 = vsel %vm1437, %v2265, 0.0
        %v2310 = vrot.slane %v2309, 4
        %v2311 = vadd.f32 %v2309, %v2310
        %v2312 = vrot.slane %v2311, 2
        %v2313 = vadd.f32 %v2311, %v2312
        %v2314 = vrot.slane %v2313, 1
        %v2315 = vadd.f32 %v2313, %v2314
        %v2316 = vsel %vm1437, %v2266, 0.0
        %v2317 = vrot.slane %v2316, 4
        %v2318 = vadd.f32 %v2316, %v2317
        %v2319 = vrot.slane %v2318, 2
        %v2320 = vadd.f32 %v2318, %v2319
        %v2321 = vrot.slane %v2320, 1
        %v2322 = vadd.f32 %v2320, %v2321
        %v2323 = vmax.f32 %v2273, 1e-30
        %v2324 = vmax.f32 %v2280, 1e-30
        %v2325 = vmax.f32 %v2287, 1e-30
        %v2326 = vmax.f32 %v2294, 1e-30
        %v2327 = vmax.f32 %v2301, 1e-30
        %v2328 = vmax.f32 %v2308, 1e-30
        %v2329 = vmax.f32 %v2315, 1e-30
        %v2330 = vmax.f32 %v2322, 1e-30
        %v2331 = vrcp.pop %v2323
        %v2332 = vmul.f32 %v2259, %v2331
        %v2333 = vrcp.pop %v2324
        %v2334 = vmul.f32 %v2260, %v2333
        %v2335 = vrcp.pop %v2325
        %v2336 = vmul.f32 %v2261, %v2335
        %v2337 = vrcp.pop %v2326
        %v2338 = vmul.f32 %v2262, %v2337
        %v2339 = vrcp.pop %v2327
        %v2340 = vmul.f32 %v2263, %v2339
        %v2341 = vrcp.pop %v2328
        %v2342 = vmul.f32 %v2264, %v2341
        %v2343 = vrcp.pop %v2329
        %v2344 = vmul.f32 %v2265, %v2343
        %v2345 = vrcp.pop %v2330
        %v2346 = vmul.f32 %v2266, %v2345
        %2347 = vrot.lane.b32.xlu0 %v863, 64
        %v2348 = vpop.permute.xlu0 %2347
        %v2350 = vmul.f32 %v2332, %v2348
        %v2351 = vmul.f32 %v2334, %v2348
        %v2352 = vmul.f32 %v2336, %v2348
        %v2353 = vmul.f32 %v2338, %v2348
        %v2354 = vmul.f32 %v2340, %v2348
        %v2355 = vmul.f32 %v2342, %v2348
        %v2356 = vmul.f32 %v2344, %v2348
        %v2357 = vmul.f32 %v2346, %v2348
        %v2358 = vsel %vm1437, %v2350, 0.0
        %v2359 = vrot.slane %v2358, 4
        %v2360 = vadd.f32 %v2358, %v2359
        %v2361 = vrot.slane %v2360, 2
        %v2362 = vadd.f32 %v2360, %v2361
        %v2363 = vrot.slane %v2362, 1
        %v2364 = vadd.f32 %v2362, %v2363
        %v2365 = vsel %vm1437, %v2351, 0.0
        %v2366 = vrot.slane %v2365, 4
        %v2367 = vadd.f32 %v2365, %v2366
        %v2368 = vrot.slane %v2367, 2
        %v2369 = vadd.f32 %v2367, %v2368
        %v2370 = vrot.slane %v2369, 1
        %v2371 = vadd.f32 %v2369, %v2370
        %v2372 = vsel %vm1437, %v2352, 0.0
        %v2373 = vrot.slane %v2372, 4
        %v2374 = vadd.f32 %v2372, %v2373
        %v2375 = vrot.slane %v2374, 2
        %v2376 = vadd.f32 %v2374, %v2375
        %v2377 = vrot.slane %v2376, 1
        %v2378 = vadd.f32 %v2376, %v2377
        %v2379 = vsel %vm1437, %v2353, 0.0
        %v2380 = vrot.slane %v2379, 4
        %v2381 = vadd.f32 %v2379, %v2380
        %v2382 = vrot.slane %v2381, 2
        %v2383 = vadd.f32 %v2381, %v2382
        %v2384 = vrot.slane %v2383, 1
        %v2385 = vadd.f32 %v2383, %v2384
        %v2386 = vsel %vm1437, %v2354, 0.0
        %v2387 = vrot.slane %v2386, 4
        %v2388 = vadd.f32 %v2386, %v2387
        %v2389 = vrot.slane %v2388, 2
        %v2390 = vadd.f32 %v2388, %v2389
        %v2391 = vrot.slane %v2390, 1
        %v2392 = vadd.f32 %v2390, %v2391
        %v2393 = vsel %vm1437, %v2355, 0.0
        %v2394 = vrot.slane %v2393, 4
        %v2395 = vadd.f32 %v2393, %v2394
        %v2396 = vrot.slane %v2395, 2
        %v2397 = vadd.f32 %v2395, %v2396
        %v2398 = vrot.slane %v2397, 1
        %v2399 = vadd.f32 %v2397, %v2398
        %v2400 = vsel %vm1437, %v2356, 0.0
        %v2401 = vrot.slane %v2400, 4
        %v2402 = vadd.f32 %v2400, %v2401
        %v2403 = vrot.slane %v2402, 2
        %v2404 = vadd.f32 %v2402, %v2403
        %v2405 = vrot.slane %v2404, 1
        %v2406 = vadd.f32 %v2404, %v2405
        %v2407 = vsel %vm1437, %v2357, 0.0
        %v2408 = vrot.slane %v2407, 4
        %v2409 = vadd.f32 %v2407, %v2408
        %v2410 = vrot.slane %v2409, 2
        %v2411 = vadd.f32 %v2409, %v2410
        %v2412 = vrot.slane %v2411, 1
        %v2413 = vadd.f32 %v2411, %v2412
        %vm2422 = vcmask 1041409
        %v2423 = vsel %vm2422, %v2371, %v2364
        %vm2424 = vcmask 1042434
        %v2425 = vsel %vm2424, %v2378, %v2423
        %vm2426 = vcmask 1043459
        %v2427 = vsel %vm2426, %v2385, %v2425
        %vm2428 = vcmask 1044484
        %v2429 = vsel %vm2428, %v2392, %v2427
        %vm2430 = vcmask 1045509
        %v2431 = vsel %vm2430, %v2399, %v2429
        %vm2432 = vcmask 1046534
        %v2433 = vsel %vm2432, %v2406, %v2431
        %vm2434 = vcmask 1047559
        %v2435 = vsel %vm2434, %v2413, %v2433
        %2436 = vrot.lane.b32.xlu0 %v2435, 96
        %v2437 = vpop.permute.xlu0 %2436
        %v2439 = vmul.f32 %v1335, %v2437
        %2441 = vrot.lane.b32.xlu0 %v2439, 96
        %v2442 = vpop.permute.xlu0 %2441
        %v2444 = vadd.f32 %v1379, %v2442
        %v2445 = vld [vmem:[%s10] sm:$0xff]
        %v2446 = vld [vmem:[%s10 + $0x8] sm:$0xff]
        %v2447 = vld [vmem:[%s10 + $0x10] sm:$0xff]
        %v2448 = vld [vmem:[%s10 + $0x18] sm:$0xff]
        %v2449 = vpack.c.bf16 %v2444, %v2444
        %v2450 = vpack.c.bf16 %v2446, %v2445
        %v2451 = vpack.c.bf16 %v2448, %v2447
        %v2452 = vld [vmem:[%s11] sm:$0x1]
        %v2454 = vlaneseq
        %v2455 = vshrl.u32 %v2454, 7
        %v2456 = vsub.s32 0, %v2455
        %v2457 = vrot.slane %v2452, %v2456
        %2460 = vrot.lane.b32.xlu0 %v2449, 64
        %v2461 = vpop.permute.xlu0 %2460
        %v2463 = vsel %vm1437, %v2461, 0
        %2465 = vmatprep.subr.bf16.mxu0 0
        %2466 = vmatpush1.bf16.msra.mxu0 %v2450
        %2467 = vmatprep.subr.bf16.mxu0 0
        %2468 = vmatpush1.bf16.msra.mxu0 %v2451
        %2469 = vmatprep.subr.bf16.mxu0 0
        %2470 = vmatpush1.bf16.msra.mxu0 0
        %2471 = vmatprep.subr.bf16.mxu0 0
        %2472 = vmatpush1.bf16.msra.mxu0 0
        %2473 = vmatprep.subr.bf16.mxu0 0
        %2474 = vmatpush1.bf16.msra.mxu0 0
        %2475 = vmatprep.subr.bf16.mxu0 0
        %2476 = vmatpush1.bf16.msra.mxu0 0
        %2477 = vmatprep.subr.bf16.mxu0 0
        %2478 = vmatpush1.bf16.msra.mxu0 0
        %2479 = vmatprep.subr.bf16.mxu0 0
        %2480 = vmatpush1.bf16.msra.mxu0 0
        %2481 = vmatprep.subr.bf16.mxu0 0
        %2482 = vmatpush1.bf16.msra.mxu0 0
        %2483 = vmatprep.subr.bf16.mxu0 0
        %2484 = vmatpush1.bf16.msra.mxu0 0
        %2485 = vmatprep.subr.bf16.mxu0 0
        %2486 = vmatpush1.bf16.msra.mxu0 0
        %2487 = vmatprep.subr.bf16.mxu0 0
        %2488 = vmatpush1.bf16.msra.mxu0 0
        %2489 = vmatprep.subr.bf16.mxu0 0
        %2490 = vmatpush1.bf16.msra.mxu0 0
        %2491 = vmatprep.subr.bf16.mxu0 0
        %2492 = vmatpush1.bf16.msra.mxu0 0
        %2493 = vmatprep.subr.bf16.mxu0 0
        %2494 = vmatpush1.bf16.msra.mxu0 0
        %2495 = vmatprep.subr.bf16.mxu0 0
        %2496 = vmatpush1.bf16.msra.mxu0 0
        %2497 = vmatprep.mubr.bf16.mxu0 0
        %2498 = vmatmul.mubr.bf16.gmra.mrb[0].mxu0 %v2463
        %v2499 = vpop.f32.mrb[0].mxu0
        %v2500 = vadd.f32 %v2457, %v2499
        %v2501 = vpop.f32.mrb[0].mxu0
        %v2502 = vpop.f32.mrb[0].mxu0
        %v2503 = vpop.f32.mrb[0].mxu0
        %2504 = vdwg.mxu0
        %2505 = vset.pattern.permute.xlu0 0
        %2506 = vperm.xlu0 %2505, %v869
        %v2507 = vpop.permute.xlu0 %2506
        %v2509 = vmul.f32 %v2500, %v2507
        %2510 = vst.msk [vmem:[%s849] sm:$0xff] %vm1437, %v2509
        %s2511 = sand.u32 %s504, 1
        %s2512 = scalar_lea.sflag [#allocation8], %s2511
        %s2513 = sand.u32 %s504, 1
        %s2514 = smul.addr %s2513, 64
        %s2515 = scalar_lea.vmem [#allocation15], %s2514
        %p2516 = scmp.lt.s32.totalorder %s44, 1
        %s2517 = scalar_select %p2516, %s44, 1
        %p2518 = scmp.lt.s32.totalorder %s45, 0
        %s2519 = scalar_select %p2518, %s45, 0
        %s2520 = sadd.s32 %s2519, %s2517
        %s2521 = smul.addr %s2520, 8
        %s2522 = scalar_lea.vmem %s21, %s2521
        %p2523 = scmp.lt.s32.totalorder %s44, 1
        %s2524 = scalar_select %p2523, %s44, 1
        %s2525 = scalar_lea.vmem %s22, %s2524
        // Predicated region
        $region129: #{xey_transformer_layer.5} parent=99 // pred_check
          %p2526 = pneg %p514
        $region130: #{xey_transformer_layer.5} parent=99 // pred_check_branch
          %2528 = sbr.rel (%p2526) target = $region132
        $region131: #{xey_transformer_layer.5} parent=99 // pred_region
          %s2529 = smul.u32 8, %s45
          %s2531 = ssub.s32 1024, 1024
          %2532 = vsyncadd %s2512, %s2531
          %s2533 = smul.addr %s44, 8
          %s2534 = sadd.s32 %s2529, %s2533
          %s2535 = smul.addr %s2534, 128
          %s2536 = scalar_lea.hbm %s20, %s2535
          %s2537 = sshll.u32 %s2515, 4
          %s2538 = int_to_ptr.vmem [resolvable:$true] %s2537
          %2543 = dma.vmem_to_hbm [thread:$0]  %s2538, 1024, %s2536, %s2512, 128, 128, 8
        $region132: #{xey_transformer_layer.5} parent=99 // pred_fallthru
          _
        // Predicated region
        $region133: #{xey_transformer_layer.5} parent=99 // pred_check
          %p2544 = pneg %p542
        $region134: #{xey_transformer_layer.5} parent=99 // pred_check_branch
          %2546 = sbr.rel (%p2544) target = $region136
        $region135: #{xey_transformer_layer.5} parent=99 // pred_region
          _
        $region136: #{xey_transformer_layer.5} parent=99 // pred_fallthru
          _
        // Predicated region
        $region137: #{xey_transformer_layer.5} parent=99 // pred_check
          %p2547 = pneg %p568
        $region138: #{xey_transformer_layer.5} parent=99 // pred_check_branch
          %2549 = sbr.rel (%p2547) target = $region140
        $region139: #{xey_transformer_layer.5} parent=99 // pred_region
          _
        $region140: #{xey_transformer_layer.5} parent=99 // pred_fallthru
          _
      $region100: #{xey_transformer_layer.5} parent=5 // pred_fallthru
        _
      %p2550 = scmp.le.s32.totalorder 2, %s35
      // Predicated region
      $region141: #{xey_transformer_layer.5} parent=5 // pred_check
        %p2551 = pneg %p2550
      $region142: #{xey_transformer_layer.5} parent=5 // pred_check_branch
        %2553 = sbr.rel (%p2551) target = $region144
      $region143: #{xey_transformer_layer.5} parent=5 // pred_region
        %s2554 = ssub.s32 %s35, 2
        // Predicated region
        $region145: #{xey_transformer_layer.5} parent=143 // pred_check
          %p2555 = pneg %p520
        $region146: #{xey_transformer_layer.5} parent=143 // pred_check_branch
          %2557 = sbr.rel (%p2555) target = $region148
        $region147: #{xey_transformer_layer.5} parent=143 // pred_region
          %s2558 = sand.u32 %s505, 1
          %s2559 = scalar_lea.sflag [#allocation8], %s2558
          %s2560 = sand.u32 %s505, 1
          %s2561 = smul.addr %s2560, 64
          %s2562 = scalar_lea.vmem [#allocation15], %s2561
          %2563 = dma.done %s2559, 1024
        $region148: #{xey_transformer_layer.5} parent=143 // pred_fallthru
          _
        // Predicated region
        $region149: #{xey_transformer_layer.5} parent=143 // pred_check
          %p2564 = pneg %p548
        $region150: #{xey_transformer_layer.5} parent=143 // pred_check_branch
          %2566 = sbr.rel (%p2564) target = $region152
        $region151: #{xey_transformer_layer.5} parent=143 // pred_region
          %p2567 = scmp.lt.s32.totalorder %s46, 1
          %s2568 = scalar_select %p2567, %s46, 1
          %p2569 = scmp.lt.s32.totalorder %s47, 0
          %s2570 = scalar_select %p2569, %s47, 0
          %s2571 = sadd.s32 %s2570, %s2568
          %s2572 = smul.addr %s2571, 8
          %s2573 = scalar_lea.vmem %s21, %s2572
        $region152: #{xey_transformer_layer.5} parent=143 // pred_fallthru
          _
        // Predicated region
        $region153: #{xey_transformer_layer.5} parent=143 // pred_check
          %p2574 = pneg %p574
        $region154: #{xey_transformer_layer.5} parent=143 // pred_check_branch
          %2576 = sbr.rel (%p2574) target = $region156
        $region155: #{xey_transformer_layer.5} parent=143 // pred_region
          %p2577 = scmp.lt.s32.totalorder %s46, 1
          %s2578 = scalar_select %p2577, %s46, 1
          %s2579 = scalar_lea.vmem %s22, %s2578
        $region156: #{xey_transformer_layer.5} parent=143 // pred_fallthru
          _
      $region144: #{xey_transformer_layer.5} parent=5 // pred_fallthru
        _
    $region6: #{xey_transformer_layer.5} parent=1 // loop_footer
      %s39 = sadd.s32 1, %s35
    $region7: #{xey_transformer_layer.5} parent=1 // loop_footer_branch
      %34 = sbr.rel target = $region3
    $region8: #{xey_transformer_layer.5} parent=1 // loop_exit
      _
    %2580 = vsyncpa [#allocation7], 1
    %s2581 = scalar_lea.sflag [#allocation7], 1
    %2582 = vsyncpa %s2581, 1
    %2583 = vsyncpa [#allocation10], 1
    %2584 = vsyncpa [#allocation13], 1
    %2585 = vsyncpa [#allocation8], 1
    %s2586 = scalar_lea.sflag [#allocation8], 1
    %2587 = vsyncpa %s2586, 1

</llo_original>
